<compile_context>
chip_gen: v7x
topology: tpu7x:2x2x1
jax: 0.10.0
libtpu: 0.0.40
codegen_flags: <defaults>
</compile_context>

<pallas_src>
import math
from functools import partial

import jax
import jax.numpy as jnp
from jax.experimental import pallas as pl
from jax.experimental.pallas import tpu as pltpu


def compute_kernel_size(kernel_shape):
    """Mirror of DiscreteContinuousConv.__init__ kernel_size logic."""
    if isinstance(kernel_shape, int):
        kernel_shape = [kernel_shape]
    if len(kernel_shape) == 1:
        return math.ceil(kernel_shape[0] / 2)
    elif len(kernel_shape) == 2:
        return kernel_shape[0] // 2 * kernel_shape[1] + kernel_shape[0] % 2
    raise ValueError("kernel_shape should be either one- or two-dimensional.")


def init_disco_conv_params(key, in_channels, out_channels, kernel_shape,
                           groups=1, bias=True, dtype=jnp.float32):
    """Deterministic parameter init matching the PyTorch __init__ shapes."""
    if in_channels % groups != 0:
        raise ValueError("in_channels must be a multiple of groups")
    if out_channels % groups != 0:
        raise ValueError("out_channels must be a multiple of groups")
    kernel_size = compute_kernel_size(kernel_shape)
    groupsize = in_channels // groups
    scale = math.sqrt(1.0 / groupsize / kernel_size)
    weight = scale * jax.random.normal(
        key, (out_channels, groupsize, kernel_size), dtype=dtype)
    b = jnp.zeros((out_channels,), dtype=dtype) if bias else None
    return weight, b, kernel_size, groupsize


def _vmem_capacity_bytes():
    """Per-core VMEM capacity; conservative default if the query fails."""
    try:
        return int(pltpu.get_tpu_info().vmem_capacity_bytes)
    except Exception:
        return 64 * 1024 * 1024          # v7x per-TensorCore VMEM


def _plan_tiles(Wo, Ho, BC, P, out_itemsize):
    """Pick NW (output longitudes per grid step) and vmem_limit_bytes from the
    actual VMEM bill.  Generation-aware via _vmem_capacity_bytes()."""
    cap = _vmem_capacity_bytes()
    budget = int(cap * 0.80)             # ~51 MiB on v7x, ~102 MiB on v5e/v6e
    # resident operands: doubled Z^T (bf16) + psi (bf16) + bias (f32)
    resident = 2 * P * BC * 2 + Ho * P * 2 + BC * 4
    divs = [d for d in range(1, Wo + 1) if Wo % d == 0]

    def fits(nw):
        return resident + 2 * nw * Ho * BC * out_itemsize <= budget

    nw = 1
    # prefer an even step count >= 4 so both v7x TensorCores stay busy
    for d in divs:
        steps = Wo // d
        if fits(d) and steps >= 4 and steps % 2 == 0:
            nw = max(nw, d)
    if nw == 1:
        for d in divs:
            if fits(d) and Wo // d >= 2:
                nw = max(nw, d)

    bill = resident + 2 * nw * Ho * BC * out_itemsize
    vmem_limit = int(min(int(cap * 0.9), max(bill + (8 << 20), 32 << 20)))
    return nw, vmem_limit


def _disco_conv_kernel(z2_ref, psi_ref, b_ref, o_ref, *,
                       NW, P, shift_stride, align):
    """One block of NW output longitudes.

    z2_ref:  (2*P, BC)   bf16  circularly doubled, weight-folded input Z^T
                               (rows ordered p = wi*K*Hi + k*Hi + hi)
    psi_ref: (Ho, P)     bf16  filter basis, same contraction ordering
    b_ref:   (1, BC)     f32   bias (tiled over batch)
    o_ref:   (NW, Ho, BC)      output tile: one (Ho, BC) slab per longitude
    """
    psi = psi_ref[...]                    # resident, loaded once per step
    bvec = b_ref[...]
    wo0 = pl.program_id(0) * NW
    for j in range(NW):                   # static unroll over longitudes
        start = (wo0 + j) * shift_stride  # = wo * ps * K * Hi
        if align > 1:
            start = pl.multiple_of(start, align)
        # dynamic sublane window == Z rolled by wo*ps along the wi axis
        zwin = z2_ref[pl.ds(start, P), :]                       # (P, BC) bf16
        acc = jnp.dot(psi, zwin, preferred_element_type=jnp.float32)  # (Ho, BC)
        o_ref[j] = (acc + bvec).astype(o_ref.dtype)


def disco_conv_forward(x, psi0, weight, bias, *, groups, nlat_out, nlon_out):
    """x: (B, C_in, H_in, W_in) NCHW.  psi0: (K, H_out, H_in, W_in) dense
    filter basis.  weight: (C_out, groupsize, K).  bias: (C_out,) or None.
    Returns NCHW (B, C_out, H_out, W_out)."""
    B, Cin, Hi, Wi = x.shape
    Cout, gs, K = weight.shape
    G = groups
    og = Cout // G
    assert Cin == G * gs
    assert Wi % nlon_out == 0
    assert psi0.shape == (K, nlat_out, Hi, Wi)
    Ho, Wo = nlat_out, nlon_out
    ps = Wi // Wo                      # longitude shift per output step
    KH = K * Hi
    P = Wi * KH                        # fused contraction depth (wi, k, hi)
    BC = B * Cout

    # --- Step A hoisted out of the kernel (grid-invariant): fold the grouped
    #     weight into the input in f32, cast ONCE to bf16.
    #     Z[b,g,o,wi,k,hi] = sum_c weight[g,o,c,k] * x[b,g,c,hi,wi]
    xg = x.reshape(B, G, gs, Hi, Wi).astype(jnp.float32)
    wgrp = weight.reshape(G, og, gs, K).astype(jnp.float32)
    z = jnp.einsum("gock,bgchw->bgowkh", wgrp, xg)
    # Z^T with rows p = wi*K*Hi + k*Hi + hi and columns m = b*Cout + co
    zT = jnp.transpose(z, (3, 4, 5, 0, 1, 2)).reshape(P, BC).astype(jnp.bfloat16)
    # circular doubling: the per-longitude roll becomes a contiguous window,
    # so no Wo-expanded tensor is ever built
    z2 = jnp.concatenate([zT, zT], axis=0)                      # (2P, BC)

    # --- psi at its natural size, bf16, same contraction ordering (wi, k, hi)
    psiT = jnp.transpose(psi0.astype(jnp.bfloat16), (1, 3, 0, 2)).reshape(Ho, P)

    if bias is None:
        bias = jnp.zeros((Cout,), jnp.float32)
    bias2 = jnp.tile(bias.astype(jnp.float32), B).reshape(1, BC)

    out_dtype = x.dtype
    NW, vmem_limit = _plan_tiles(Wo, Ho, BC, P, jnp.dtype(out_dtype).itemsize)
    shift_stride = ps * KH
    align = 16 if shift_stride % 16 == 0 else (8 if shift_stride % 8 == 0 else 1)

    out3 = pl.pallas_call(
        partial(_disco_conv_kernel, NW=NW, P=P,
                shift_stride=shift_stride, align=align),
        out_shape=jax.ShapeDtypeStruct((Wo, Ho, BC), out_dtype),
        grid=(Wo // NW,),
        in_specs=[
            # all inputs are grid-invariant -> VMEM-resident, single-buffered
            pl.BlockSpec((2 * P, BC), lambda i: (0, 0),
                         pipeline_mode=pl.Buffered(1)),
            pl.BlockSpec((Ho, P), lambda i: (0, 0),
                         pipeline_mode=pl.Buffered(1)),
            pl.BlockSpec((1, BC), lambda i: (0, 0),
                         pipeline_mode=pl.Buffered(1)),
        ],
        out_specs=pl.BlockSpec((NW, Ho, BC), lambda i: (i, 0, 0)),
        compiler_params=pltpu.CompilerParams(
            dimension_semantics=("parallel",),
            vmem_limit_bytes=vmem_limit),
    )(z2, psiT, bias2)

    # (Wo, Ho, B*Cout) -> (B, Cout, Ho, Wo)
    return out3.reshape(Wo, Ho, B, Cout).transpose(2, 3, 1, 0)


if __name__ == "__main__":
    # Small, deterministic example consistent with the module.
    B = 2
    in_channels = 8
    out_channels = 8
    groups = 2
    kernel_shape = [3, 4]          # -> kernel_size = 3//2 * 4 + 3%2 = 5
    Hi = Wi = 16                   # nlat_in, nlon_in
    Ho = Wo = 16                   # nlat_out, nlon_out

    key = jax.random.PRNGKey(0)
    k_w, k_x, k_psi = jax.random.split(key, 3)

    weight, bias, K, gs = init_disco_conv_params(
        k_w, in_channels, out_channels, kernel_shape, groups=groups, bias=True)

    x = jax.random.normal(k_x, (B, in_channels, Hi, Wi), dtype=jnp.float32)
    # synthetic dense filter-basis tensor (stand-in for the sparse quadrature psi)
    psi0 = jax.random.normal(k_psi, (K, Ho, Hi, Wi), dtype=jnp.float32) / (Hi * Wi)

    fwd = jax.jit(partial(disco_conv_forward, groups=groups,
                          nlat_out=Ho, nlon_out=Wo))
    out = jax.block_until_ready(fwd(x, psi0, weight, bias))

    # pure-JAX f32 reference (original grouped DISCO formulation)
    ps = Wi // Wo
    wo_i = jnp.arange(Wo)
    wi_i = jnp.arange(Wi)
    idx = (wi_i[None, :] - wo_i[:, None] * ps) % Wi
    psi_t = jnp.take(psi0, idx, axis=3)                          # (K,Ho,Hi,Wo,Wi)
    psi_e = jnp.transpose(psi_t, (0, 2, 4, 1, 3)).reshape(K, Hi * Wi, Ho * Wo)
    x2 = x.reshape(B, in_channels, Hi * Wi)
    y = jnp.einsum("bcn,knm->bckm", x2, psi_e)                   # (B,C,K,Ho*Wo)
    yg = y.reshape(B, groups, gs, K, Ho * Wo)
    wg = weight.reshape(groups, out_channels // groups, gs, K)
    ref = jnp.einsum("gock,bgckm->bgom", wg, yg).reshape(B, out_channels, Ho * Wo)
    ref = ref + bias[None, :, None]
    ref = ref.reshape(B, out_channels, Ho, Wo)

    err = float(jnp.max(jnp.abs(out - ref)))
    scale = float(jnp.max(jnp.abs(ref))) + 1e-6
    # bf16 MXU operands with f32 accumulation -> allow ~1% relative error
    assert err / scale < 3e-2, f"mismatch vs reference: abs={err}, rel={err / scale}"
    print("KERNEL_OK")
</pallas_src>

<mosaic_0001>
module attributes {stable_mosaic.version = 11 : i64} {
  func.func @_disco_conv_kernel(%arg0: i32, %arg1: memref<2560x16xbf16, #tpu.memory_space<vmem>>, %arg2: memref<16x1280xbf16, #tpu.memory_space<vmem>>, %arg3: memref<1x16xf32, #tpu.memory_space<vmem>>, %arg4: memref<4x16x16xf32, #tpu.memory_space<vmem>>) attributes {dimension_semantics = [#tpu.dimension_semantics<parallel>], iteration_bounds = array<i64: 4>, scalar_prefetch = 0 : i64, scratch_operands = 0 : i64, tpu.core_type = #tpu.core_type<tc>, window_params = [{pipeline_mode = #tpu.pipeline_mode<synchronous>, transform_indices = @transform_0, window_bounds = array<i64: 2560, 16>}, {pipeline_mode = #tpu.pipeline_mode<synchronous>, transform_indices = @transform_1, window_bounds = array<i64: 16, 1280>}, {pipeline_mode = #tpu.pipeline_mode<synchronous>, transform_indices = @transform_2, window_bounds = array<i64: 1, 16>}, {transform_indices = @transform_3, window_bounds = array<i64: 4, 16, 16>}]} {
    %c0 = arith.constant 0 : index
    %c0_0 = arith.constant 0 : index
    %0 = vector.load %arg2[%c0, %c0_0] : memref<16x1280xbf16, #tpu.memory_space<vmem>>, vector<16x1280xbf16>
    %c0_1 = arith.constant 0 : index
    %c0_2 = arith.constant 0 : index
    %1 = vector.load %arg3[%c0_1, %c0_2] : memref<1x16xf32, #tpu.memory_space<vmem>>, vector<1x16xf32>
    %c4_i32 = arith.constant 4 : i32
    %2 = arith.muli %arg0, %c4_i32 : i32
    %c0_i32 = arith.constant 0 : i32
    %3 = arith.addi %2, %c0_i32 : i32
    %c80_i32 = arith.constant 80 : i32
    %4 = arith.muli %3, %c80_i32 : i32
    %5 = tpu.assume_multiple %4, 16 : i32
    %6 = arith.index_cast %5 : i32 to index
    %c0_3 = arith.constant 0 : index
    %7 = vector.load %arg1[%6, %c0_3] : memref<2560x16xbf16, #tpu.memory_space<vmem>>, vector<1280x16xbf16>
    %cst = arith.constant dense<0.000000e+00> : vector<16x16xf32>
    %8 = tpu.matmul %0, %7, %cst {dimension_numbers = #tpu.dot_dimension_numbers<[1], [0], [0], [1], [0, 0, 1, 1], [], []>} : vector<16x1280xbf16>, vector<1280x16xbf16>, vector<16x16xf32> -> vector<16x16xf32>
    %9 = vector.broadcast %1 : vector<1x16xf32> to vector<16x16xf32>
    %10 = arith.addf %8, %9 : vector<16x16xf32>
    %c0_4 = arith.constant 0 : index
    %c0_5 = arith.constant 0 : index
    %c0_6 = arith.constant 0 : index
    %11 = vector.load %arg4[%c0_4, %c0_5, %c0_6] : memref<4x16x16xf32, #tpu.memory_space<vmem>>, vector<1x16x16xf32>
    %12 = vector.shape_cast %11 : vector<1x16x16xf32> to vector<16x16xf32>
    %13 = vector.shape_cast %10 : vector<16x16xf32> to vector<1x16x16xf32>
    tpu.vector_store %arg4[%c0_4, %c0_5, %c0_6], %13 {strides = array<i32>} : memref<4x16x16xf32, #tpu.memory_space<vmem>>, vector<1x16x16xf32>,
    %c1_i32 = arith.constant 1 : i32
    %14 = arith.addi %2, %c1_i32 : i32
    %c80_i32_7 = arith.constant 80 : i32
    %15 = arith.muli %14, %c80_i32_7 : i32
    %16 = tpu.assume_multiple %15, 16 : i32
    %17 = arith.index_cast %16 : i32 to index
    %c0_8 = arith.constant 0 : index
    %18 = vector.load %arg1[%17, %c0_8] : memref<2560x16xbf16, #tpu.memory_space<vmem>>, vector<1280x16xbf16>
    %cst_9 = arith.constant dense<0.000000e+00> : vector<16x16xf32>
    %19 = tpu.matmul %0, %18, %cst_9 {dimension_numbers = #tpu.dot_dimension_numbers<[1], [0], [0], [1], [0, 0, 1, 1], [], []>} : vector<16x1280xbf16>, vector<1280x16xbf16>, vector<16x16xf32> -> vector<16x16xf32>
    %20 = vector.broadcast %1 : vector<1x16xf32> to vector<16x16xf32>
    %21 = arith.addf %19, %20 : vector<16x16xf32>
    %c1 = arith.constant 1 : index
    %c0_10 = arith.constant 0 : index
    %c0_11 = arith.constant 0 : index
    %22 = vector.load %arg4[%c1, %c0_10, %c0_11] : memref<4x16x16xf32, #tpu.memory_space<vmem>>, vector<1x16x16xf32>
    %23 = vector.shape_cast %22 : vector<1x16x16xf32> to vector<16x16xf32>
    %24 = vector.shape_cast %21 : vector<16x16xf32> to vector<1x16x16xf32>
    tpu.vector_store %arg4[%c1, %c0_10, %c0_11], %24 {strides = array<i32>} : memref<4x16x16xf32, #tpu.memory_space<vmem>>, vector<1x16x16xf32>,
    %c2_i32 = arith.constant 2 : i32
    %25 = arith.addi %2, %c2_i32 : i32
    %c80_i32_12 = arith.constant 80 : i32
    %26 = arith.muli %25, %c80_i32_12 : i32
    %27 = tpu.assume_multiple %26, 16 : i32
    %28 = arith.index_cast %27 : i32 to index
    %c0_13 = arith.constant 0 : index
    %29 = vector.load %arg1[%28, %c0_13] : memref<2560x16xbf16, #tpu.memory_space<vmem>>, vector<1280x16xbf16>
    %cst_14 = arith.constant dense<0.000000e+00> : vector<16x16xf32>
    %30 = tpu.matmul %0, %29, %cst_14 {dimension_numbers = #tpu.dot_dimension_numbers<[1], [0], [0], [1], [0, 0, 1, 1], [], []>} : vector<16x1280xbf16>, vector<1280x16xbf16>, vector<16x16xf32> -> vector<16x16xf32>
    %31 = vector.broadcast %1 : vector<1x16xf32> to vector<16x16xf32>
    %32 = arith.addf %30, %31 : vector<16x16xf32>
    %c2 = arith.constant 2 : index
    %c0_15 = arith.constant 0 : index
    %c0_16 = arith.constant 0 : index
    %33 = vector.load %arg4[%c2, %c0_15, %c0_16] : memref<4x16x16xf32, #tpu.memory_space<vmem>>, vector<1x16x16xf32>
    %34 = vector.shape_cast %33 : vector<1x16x16xf32> to vector<16x16xf32>
    %35 = vector.shape_cast %32 : vector<16x16xf32> to vector<1x16x16xf32>
    tpu.vector_store %arg4[%c2, %c0_15, %c0_16], %35 {strides = array<i32>} : memref<4x16x16xf32, #tpu.memory_space<vmem>>, vector<1x16x16xf32>,
    %c3_i32 = arith.constant 3 : i32
    %36 = arith.addi %2, %c3_i32 : i32
    %c80_i32_17 = arith.constant 80 : i32
    %37 = arith.muli %36, %c80_i32_17 : i32
    %38 = tpu.assume_multiple %37, 16 : i32
    %39 = arith.index_cast %38 : i32 to index
    %c0_18 = arith.constant 0 : index
    %40 = vector.load %arg1[%39, %c0_18] : memref<2560x16xbf16, #tpu.memory_space<vmem>>, vector<1280x16xbf16>
    %cst_19 = arith.constant dense<0.000000e+00> : vector<16x16xf32>
    %41 = tpu.matmul %0, %40, %cst_19 {dimension_numbers = #tpu.dot_dimension_numbers<[1], [0], [0], [1], [0, 0, 1, 1], [], []>} : vector<16x1280xbf16>, vector<1280x16xbf16>, vector<16x16xf32> -> vector<16x16xf32>
    %42 = vector.broadcast %1 : vector<1x16xf32> to vector<16x16xf32>
    %43 = arith.addf %41, %42 : vector<16x16xf32>
    %c3 = arith.constant 3 : index
    %c0_20 = arith.constant 0 : index
    %c0_21 = arith.constant 0 : index
    %44 = vector.load %arg4[%c3, %c0_20, %c0_21] : memref<4x16x16xf32, #tpu.memory_space<vmem>>, vector<1x16x16xf32>
    %45 = vector.shape_cast %44 : vector<1x16x16xf32> to vector<16x16xf32>
    %46 = vector.shape_cast %43 : vector<16x16xf32> to vector<1x16x16xf32>
    tpu.vector_store %arg4[%c3, %c0_20, %c0_21], %46 {strides = array<i32>} : memref<4x16x16xf32, #tpu.memory_space<vmem>>, vector<1x16x16xf32>,
    return
  }
  func.func @transform_0(%arg0: i32) -> (i32, i32) {
    %c0_i32 = arith.constant 0 : i32
    %c0_i32_0 = arith.constant 0 : i32
    %c0_i32_1 = arith.constant 0 : i32
    return %c0_i32, %c0_i32_0 : i32, i32
  }
  func.func @transform_1(%arg0: i32) -> (i32, i32) {
    %c0_i32 = arith.constant 0 : i32
    %c0_i32_0 = arith.constant 0 : i32
    %c0_i32_1 = arith.constant 0 : i32
    return %c0_i32, %c0_i32_0 : i32, i32
  }
  func.func @transform_2(%arg0: i32) -> (i32, i32) {
    %c0_i32 = arith.constant 0 : i32
    %c0_i32_0 = arith.constant 0 : i32
    %c0_i32_1 = arith.constant 0 : i32
    return %c0_i32, %c0_i32_0 : i32, i32
  }
  func.func @transform_3(%arg0: i32) -> (i32, i32, i32) {
    %c0_i32 = arith.constant 0 : i32
    %c0_i32_0 = arith.constant 0 : i32
    %c0_i32_1 = arith.constant 0 : i32
    return %arg0, %c0_i32, %c0_i32_0 : i32, i32, i32
  }
}

</mosaic_0001>

<llo_original>
// kernel: tile.9
$region0: #{tile.9}
  %s0 = inlined_call_operand.vmem [shape: f32[2,8], index: 0, kind: input, shape index: {}]
  %s1 = inlined_call_operand.vmem [shape: f32[1,16], index: 1, kind: output, shape index: {}]
  $region1: #{tile.9} parent=0
    #allocation0 [shape = 'u8[4096]{0}', space=vmem, size = 0x1000, scoped, tag = 'scoped mem for output reshape']
    #allocation1 [shape = 'u8[4096]{0}', space=vmem, size = 0x1000, scoped, tag = 'scoped mem for input reshape']
    %s3 = sshllo.u32 0, 2
    %v4 = vld [vmem:[%s0] sm:%s3]
    %5 = vst [vmem:[#allocation1] sm:%s3] %v4
    %v6 = vld [vmem:[#allocation1] sm:$0x1]
    %vm7 = vcmask 64512
    %8 = vst.msk [vmem:[#allocation0] sm:$0x1] %vm7, %v6
    %s9 = scalar_lea.vmem [#allocation1], 1
    %v10 = vld [vmem:[%s9] sm:$0x1]
    %11 = vrot.lane.b32.xlu0 %v10, 8
    %v12 = vpop.permute.xlu0 %11
    %vm13 = vcmask 130112
    %14 = vst.msk [vmem:[#allocation0] sm:$0x1] %vm13, %v12
    %s16 = sshllo.u32 0, 1
    %v18 = vld [vmem:[#allocation0] sm:%s16]
    %s19 = sshllo.u32 0, 1
    %20 = vst [vmem:[%s1] sm:%s19] %v18

// kernel: tile.8
$region0: #{tile.8}
  #allocation0 [shape = 's32[1]{0}', space=sflag, size = 0x4, scoped, tag = 'scoped memory for tile.8']
  %s0 = inlined_call_operand.vmem [shape: f32[8], index: 0, kind: input, shape index: {}]
  %s1 = inlined_call_operand.vmem [shape: f32[2,8], index: 1, kind: output, shape index: {}]
  // Predicated region
  $region2: #{tile.8} parent=0 // pred_check
    _
  $region3: #{tile.8} parent=0 // pred_check_branch
    %3 = sbr.rel (0) target = $region5
  $region4: #{tile.8} parent=0 // pred_region
    _
  $region5: #{tile.8} parent=0 // pred_fallthru
    _
  %v4 = vld [vmem:[%s0] ss:$0 sm:$0xff]
  %5 = vst [vmem:[%s1] sm:$0x3] %v4

// kernel: disco_conv_forward.1
$region0: #{disco_conv_forward.1}
  #allocation0 [shape = 'u32[]', space=smem, size = 0x4, offset = 0x4, fixed_abs, tag = 'smem constant byte address 0x4 - core index']
  #allocation1 [shape = 'u32[144,128]{1,0:T(1,128)}', space=vmem, size = 0x12000, scoped, tag = 'internal scratch']
  %s0 = inlined_call_operand.vmem [shape: bf16[2560,16], index: 0, kind: input, shape index: {}]
  %s1 = inlined_call_operand.vmem [shape: bf16[16,1280], index: 1, kind: input, shape index: {}]
  %s2 = inlined_call_operand.vmem [shape: f32[1,16], index: 2, kind: input, shape index: {}]
  %s3 = inlined_call_operand.vmem [shape: f32[16,16,16], index: 3, kind: output, shape index: {}]
  %s4 = sld [smem:[#allocation0]]
  $region45: #{disco_conv_forward.1} parent=0
    _
  %s6 = ssub.s32 1, %s4
  %s7 = scalar_select 0, %s6, %s4
  loop: start=0, step=1, limit=6
  $region2: #{disco_conv_forward.1} parent=0 // loop_pre_header
    _
  $region3: #{disco_conv_forward.1} parent=0 // loop_header
    %s9 = sphi 0, %s13
    %p10 = scmp.ge.s32.totalorder %s9, 6
    %s17 = sphi 0, %s17
    %s19 = sphi 0, %s17
    %s20 = sphi 0, %s19
    %s34 = sphi 0, %s20
    %s38 = sphi 0, %s38
    %s40 = sphi 0, %s38
    %s41 = sphi 0, %s40
    %s55 = sphi 0, %s41
    %s59 = sphi 0, %s59
    %s61 = sphi 0, %s59
    %s62 = sphi 0, %s61
    %s76 = sphi 0, %s62
    %s82 = sphi 0, %s84
    %s85 = sphi 0, %s82
    %s86 = sphi 0, %s85
    %s102 = sphi 0, %s86
  $region4: #{disco_conv_forward.1} parent=0 // loop_header_branch
    %12 = sbr.rel (%p10) target = $region8
  $region5: #{disco_conv_forward.1} parent=0 // loop_body
    %s14 = ssub.s32 %s9, 1
    %s15 = ssub.s32 %s9, 2
    %s16 = sadd.s32 %s9, 1
    %s18 = sadd.s32 %s17, 1
    %p21 = scmp.eq.s32.totalorder %s9, 3
    %p22 = scmp.ne.s32.totalorder %s17, %s19
    %p23 = scmp.eq.s32.totalorder %s9, 0
    %p24 = por %p22, %p23
    %p25 = scmp.ne.s32.totalorder %s17, %s19
    %p26 = scmp.eq.s32.totalorder %s14, 3
    %p27 = por %p25, %p26
    %p28 = scmp.ne.s32.totalorder %s19, %s20
    %p29 = scmp.eq.s32.totalorder %s14, 0
    %p30 = por %p28, %p29
    %p31 = scmp.ne.s32.totalorder %s19, %s20
    %p32 = scmp.eq.s32.totalorder %s15, 3
    %p33 = por %p31, %p32
    %p35 = scmp.ne.s32.totalorder %s20, %s34
    %p36 = scmp.eq.s32.totalorder %s15, 0
    %p37 = por %p35, %p36
    %s39 = sadd.s32 %s38, 1
    %p42 = scmp.eq.s32.totalorder %s9, 3
    %p43 = scmp.ne.s32.totalorder %s38, %s40
    %p44 = scmp.eq.s32.totalorder %s9, 0
    %p45 = por %p43, %p44
    %p46 = scmp.ne.s32.totalorder %s38, %s40
    %p47 = scmp.eq.s32.totalorder %s14, 3
    %p48 = por %p46, %p47
    %p49 = scmp.ne.s32.totalorder %s40, %s41
    %p50 = scmp.eq.s32.totalorder %s14, 0
    %p51 = por %p49, %p50
    %p52 = scmp.ne.s32.totalorder %s40, %s41
    %p53 = scmp.eq.s32.totalorder %s15, 3
    %p54 = por %p52, %p53
    %p56 = scmp.ne.s32.totalorder %s41, %s55
    %p57 = scmp.eq.s32.totalorder %s15, 0
    %p58 = por %p56, %p57
    %s60 = sadd.s32 %s59, 1
    %p63 = scmp.eq.s32.totalorder %s9, 3
    %p64 = scmp.ne.s32.totalorder %s59, %s61
    %p65 = scmp.eq.s32.totalorder %s9, 0
    %p66 = por %p64, %p65
    %p67 = scmp.ne.s32.totalorder %s59, %s61
    %p68 = scmp.eq.s32.totalorder %s14, 3
    %p69 = por %p67, %p68
    %p70 = scmp.ne.s32.totalorder %s61, %s62
    %p71 = scmp.eq.s32.totalorder %s14, 0
    %p72 = por %p70, %p71
    %p73 = scmp.ne.s32.totalorder %s61, %s62
    %p74 = scmp.eq.s32.totalorder %s15, 3
    %p75 = por %p73, %p74
    %p77 = scmp.ne.s32.totalorder %s62, %s76
    %p78 = scmp.eq.s32.totalorder %s15, 0
    %p79 = por %p77, %p78
    %s80 = ssub.s32 %s9, %s16
    %p81 = scmp.eq.s32.totalorder %s80, 0
    %s83 = sadd.s32 %s82, 1
    %s84 = scalar_select %p81, %s82, %s83
    %p87 = pneg %p81
    %p88 = scmp.eq.s32.totalorder %s9, 3
    %p89 = por %p87, %p88
    %p90 = scmp.ne.s32.totalorder %s82, %s85
    %p91 = scmp.eq.s32.totalorder %s9, 0
    %p92 = por %p90, %p91
    %p93 = scmp.ne.s32.totalorder %s82, %s85
    %p94 = scmp.eq.s32.totalorder %s14, 3
    %p95 = por %p93, %p94
    %p96 = scmp.ne.s32.totalorder %s85, %s86
    %p97 = scmp.eq.s32.totalorder %s14, 0
    %p98 = por %p96, %p97
    %p99 = scmp.ne.s32.totalorder %s85, %s86
    %p100 = scmp.eq.s32.totalorder %s15, 3
    %p101 = por %p99, %p100
    %p103 = scmp.ne.s32.totalorder %s86, %s102
    %p104 = scmp.eq.s32.totalorder %s15, 0
    %p105 = por %p103, %p104
    %p106 = scmp.le.s32.totalorder 1, %s9
    %p107 = scmp.lt.s32.totalorder %s9, 5
    %p108 = pnand %p106, %p107
    %p109 = pneg %p108
    // Predicated region
    $region9: #{disco_conv_forward.1} parent=5 // pred_check
      _
    $region10: #{disco_conv_forward.1} parent=5 // pred_check_branch
      %111 = sbr.rel (%p108) target = $region12
    $region11: #{disco_conv_forward.1} parent=5 // pred_region
      %s112 = ssub.s32 %s9, 1
      // Predicated region
      $region13: #{disco_conv_forward.1} parent=11 // pred_check
        %p113 = pneg %p30
      $region14: #{disco_conv_forward.1} parent=11 // pred_check_branch
        %115 = sbr.rel (%p113) target = $region16
      $region15: #{disco_conv_forward.1} parent=11 // pred_region
        _
      $region16: #{disco_conv_forward.1} parent=11 // pred_fallthru
        _
      // Predicated region
      $region17: #{disco_conv_forward.1} parent=11 // pred_check
        %p116 = pneg %p51
      $region18: #{disco_conv_forward.1} parent=11 // pred_check_branch
        %118 = sbr.rel (%p116) target = $region20
      $region19: #{disco_conv_forward.1} parent=11 // pred_region
        _
      $region20: #{disco_conv_forward.1} parent=11 // pred_fallthru
        _
      // Predicated region
      $region21: #{disco_conv_forward.1} parent=11 // pred_check
        %p119 = pneg %p72
      $region22: #{disco_conv_forward.1} parent=11 // pred_check_branch
        %121 = sbr.rel (%p119) target = $region24
      $region23: #{disco_conv_forward.1} parent=11 // pred_region
        _
      $region24: #{disco_conv_forward.1} parent=11 // pred_fallthru
        _
    $region12: #{disco_conv_forward.1} parent=5 // pred_fallthru
      _
    %p122 = scmp.lt.s32.totalorder %s9, 4
    // Predicated region
    $region25: #{disco_conv_forward.1} parent=5 // pred_check
      %p123 = pneg %p122
    $region26: #{disco_conv_forward.1} parent=5 // pred_check_branch
      %125 = sbr.rel (%p123) target = $region28
    $region27: #{disco_conv_forward.1} parent=5 // pred_region
      _
    $region28: #{disco_conv_forward.1} parent=5 // pred_fallthru
      _
    %p126 = scmp.le.s32.totalorder 1, %s9
    %p127 = scmp.lt.s32.totalorder %s9, 5
    %p128 = pnand %p126, %p127
    %p129 = pneg %p128
    // Predicated region
    $region29: #{disco_conv_forward.1} parent=5 // pred_check
      _
    $region30: #{disco_conv_forward.1} parent=5 // pred_check_branch
      %131 = sbr.rel (%p128) target = $region32
    $region31: #{disco_conv_forward.1} parent=5 // pred_region
      %s132 = ssub.s32 %s9, 1
      %p133 = pneg %p30
      %p134 = pneg %p27
      %p135 = pneg %p51
      %p136 = pneg %p48
      %p137 = pneg %p72
      %p138 = pneg %p69
      %p139 = pneg %p98
      %p140 = pneg %p95
      %s141 = smul.u32 4, %s14
      %p142 = scmp.lt.s32.totalorder %s141, 15
      %s143 = scalar_select %p142, %s141, 15
      %s144 = smul.addr %s143, 2
      %s145 = smul.addr %s144, 8
      %s146 = scalar_lea.vmem %s3, %s145
      %s147 = smul.u32 4, %s14
      %p148 = scmp.lt.s32.totalorder %s147, 15
      %s149 = scalar_select %p148, %s147, 15
      %s150 = smul.addr %s149, 2
      %s151 = smul.addr %s150, 8
      %s152 = scalar_lea.vmem %s3, %s151
      %s153 = smul.u32 4, %s14
      %v155 = vld [vmem:[%s1] sm:$0xff]
      %v156 = vld [vmem:[%s1 + $0x8] sm:$0xff]
      %v157 = vld [vmem:[%s1 + $0x10] sm:$0xff]
      %v158 = vld [vmem:[%s1 + $0x18] sm:$0xff]
      %v159 = vld [vmem:[%s1 + $0x20] sm:$0xff]
      %v160 = vld [vmem:[%s1 + $0x28] sm:$0xff]
      %v161 = vld [vmem:[%s1 + $0x30] sm:$0xff]
      %v162 = vld [vmem:[%s1 + $0x38] sm:$0xff]
      %v163 = vld [vmem:[%s1 + $0x40] sm:$0xff]
      %v164 = vld [vmem:[%s1 + $0x48] sm:$0xff]
      %v165 = vld [vmem:[%s2] sm:$0x1]
      %s166 = smul.u32 %s14, 4
      %s167 = smul.u32 %s14, 320
      %s168 = sshra.s32 %s167, 3
      %s169 = sand.u32 %s167, 7
      %s170 = smul.addr %s168, 4
      %s171 = scalar_lea.vmem %s0, %s170
      %v172 = vld [vmem:[%s171] sm:$0xf]
      %v173 = vld [vmem:[%s171 + $0x4] sm:$0xf]
      %v174 = vld [vmem:[%s171 + $0x8] sm:$0xf]
      %v175 = vld [vmem:[%s171 + $0xc] sm:$0xf]
      %v176 = vld [vmem:[%s171 + $0x10] sm:$0xf]
      %v177 = vld [vmem:[%s171 + $0x14] sm:$0xf]
      %v178 = vld [vmem:[%s171 + $0x18] sm:$0xf]
      %v179 = vld [vmem:[%s171 + $0x1c] sm:$0xf]
      %v180 = vld [vmem:[%s171 + $0x20] sm:$0xf]
      %v181 = vld [vmem:[%s171 + $0x24] sm:$0xf]
      %v182 = vld [vmem:[%s171 + $0x28] sm:$0xf]
      %v183 = vld [vmem:[%s171 + $0x2c] sm:$0xf]
      %v184 = vld [vmem:[%s171 + $0x30] sm:$0xf]
      %v185 = vld [vmem:[%s171 + $0x34] sm:$0xf]
      %v186 = vld [vmem:[%s171 + $0x38] sm:$0xf]
      %v187 = vld [vmem:[%s171 + $0x3c] sm:$0xf]
      %v188 = vld [vmem:[%s171 + $0x40] sm:$0xf]
      %v189 = vld [vmem:[%s171 + $0x44] sm:$0xf]
      %v190 = vld [vmem:[%s171 + $0x48] sm:$0xf]
      %v191 = vld [vmem:[%s171 + $0x4c] sm:$0xf]
      %v192 = vld [vmem:[%s171 + $0x50] sm:$0xf]
      %v193 = vld [vmem:[%s171 + $0x54] sm:$0xf]
      %v194 = vld [vmem:[%s171 + $0x58] sm:$0xf]
      %v195 = vld [vmem:[%s171 + $0x5c] sm:$0xf]
      %v196 = vld [vmem:[%s171 + $0x60] sm:$0xf]
      %v197 = vld [vmem:[%s171 + $0x64] sm:$0xf]
      %v198 = vld [vmem:[%s171 + $0x68] sm:$0xf]
      %v199 = vld [vmem:[%s171 + $0x6c] sm:$0xf]
      %v200 = vld [vmem:[%s171 + $0x70] sm:$0xf]
      %v201 = vld [vmem:[%s171 + $0x74] sm:$0xf]
      %v202 = vld [vmem:[%s171 + $0x78] sm:$0xf]
      %v203 = vld [vmem:[%s171 + $0x7c] sm:$0xf]
      %v204 = vld [vmem:[%s171 + $0x80] sm:$0xf]
      %v205 = vld [vmem:[%s171 + $0x84] sm:$0xf]
      %v206 = vld [vmem:[%s171 + $0x88] sm:$0xf]
      %v207 = vld [vmem:[%s171 + $0x8c] sm:$0xf]
      %v208 = vld [vmem:[%s171 + $0x90] sm:$0xf]
      %v209 = vld [vmem:[%s171 + $0x94] sm:$0xf]
      %v210 = vld [vmem:[%s171 + $0x98] sm:$0xf]
      %v211 = vld [vmem:[%s171 + $0x9c] sm:$0xf]
      %v212 = vld [vmem:[%s171 + $0xa0] sm:$0xf]
      %v213 = vld [vmem:[%s171 + $0xa4] sm:$0xf]
      %v214 = vld [vmem:[%s171 + $0xa8] sm:$0xf]
      %v215 = vld [vmem:[%s171 + $0xac] sm:$0xf]
      %v216 = vld [vmem:[%s171 + $0xb0] sm:$0xf]
      %v217 = vld [vmem:[%s171 + $0xb4] sm:$0xf]
      %v218 = vld [vmem:[%s171 + $0xb8] sm:$0xf]
      %v219 = vld [vmem:[%s171 + $0xbc] sm:$0xf]
      %v220 = vld [vmem:[%s171 + $0xc0] sm:$0xf]
      %v221 = vld [vmem:[%s171 + $0xc4] sm:$0xf]
      %v222 = vld [vmem:[%s171 + $0xc8] sm:$0xf]
      %v223 = vld [vmem:[%s171 + $0xcc] sm:$0xf]
      %v224 = vld [vmem:[%s171 + $0xd0] sm:$0xf]
      %v225 = vld [vmem:[%s171 + $0xd4] sm:$0xf]
      %v226 = vld [vmem:[%s171 + $0xd8] sm:$0xf]
      %v227 = vld [vmem:[%s171 + $0xdc] sm:$0xf]
      %v228 = vld [vmem:[%s171 + $0xe0] sm:$0xf]
      %v229 = vld [vmem:[%s171 + $0xe4] sm:$0xf]
      %v230 = vld [vmem:[%s171 + $0xe8] sm:$0xf]
      %v231 = vld [vmem:[%s171 + $0xec] sm:$0xf]
      %v232 = vld [vmem:[%s171 + $0xf0] sm:$0xf]
      %v233 = vld [vmem:[%s171 + $0xf4] sm:$0xf]
      %v234 = vld [vmem:[%s171 + $0xf8] sm:$0xf]
      %v235 = vld [vmem:[%s171 + $0xfc] sm:$0xf]
      %v236 = vld [vmem:[%s171 + $0x100] sm:$0xf]
      %v237 = vld [vmem:[%s171 + $0x104] sm:$0xf]
      %v238 = vld [vmem:[%s171 + $0x108] sm:$0xf]
      %v239 = vld [vmem:[%s171 + $0x10c] sm:$0xf]
      %v240 = vld [vmem:[%s171 + $0x110] sm:$0xf]
      %v241 = vld [vmem:[%s171 + $0x114] sm:$0xf]
      %v242 = vld [vmem:[%s171 + $0x118] sm:$0xf]
      %v243 = vld [vmem:[%s171 + $0x11c] sm:$0xf]
      %v244 = vld [vmem:[%s171 + $0x120] sm:$0xf]
      %v245 = vld [vmem:[%s171 + $0x124] sm:$0xf]
      %v246 = vld [vmem:[%s171 + $0x128] sm:$0xf]
      %v247 = vld [vmem:[%s171 + $0x12c] sm:$0xf]
      %v248 = vld [vmem:[%s171 + $0x130] sm:$0xf]
      %v249 = vld [vmem:[%s171 + $0x134] sm:$0xf]
      %v250 = vld [vmem:[%s171 + $0x138] sm:$0xf]
      %v251 = vld [vmem:[%s171 + $0x13c] sm:$0xf]
      %v252 = vld [vmem:[%s171 + $0x140] sm:$0xf]
      %v253 = vld [vmem:[%s171 + $0x144] sm:$0xf]
      %v254 = vld [vmem:[%s171 + $0x148] sm:$0xf]
      %v255 = vld [vmem:[%s171 + $0x14c] sm:$0xf]
      %v256 = vld [vmem:[%s171 + $0x150] sm:$0xf]
      %v257 = vld [vmem:[%s171 + $0x154] sm:$0xf]
      %v258 = vld [vmem:[%s171 + $0x158] sm:$0xf]
      %v259 = vld [vmem:[%s171 + $0x15c] sm:$0xf]
      %v260 = vld [vmem:[%s171 + $0x160] sm:$0xf]
      %v261 = vld [vmem:[%s171 + $0x164] sm:$0xf]
      %v262 = vld [vmem:[%s171 + $0x168] sm:$0xf]
      %v263 = vld [vmem:[%s171 + $0x16c] sm:$0xf]
      %v264 = vld [vmem:[%s171 + $0x170] sm:$0xf]
      %v265 = vld [vmem:[%s171 + $0x174] sm:$0xf]
      %v266 = vld [vmem:[%s171 + $0x178] sm:$0xf]
      %v267 = vld [vmem:[%s171 + $0x17c] sm:$0xf]
      %v268 = vld [vmem:[%s171 + $0x180] sm:$0xf]
      %v269 = vld [vmem:[%s171 + $0x184] sm:$0xf]
      %v270 = vld [vmem:[%s171 + $0x188] sm:$0xf]
      %v271 = vld [vmem:[%s171 + $0x18c] sm:$0xf]
      %v272 = vld [vmem:[%s171 + $0x190] sm:$0xf]
      %v273 = vld [vmem:[%s171 + $0x194] sm:$0xf]
      %v274 = vld [vmem:[%s171 + $0x198] sm:$0xf]
      %v275 = vld [vmem:[%s171 + $0x19c] sm:$0xf]
      %v276 = vld [vmem:[%s171 + $0x1a0] sm:$0xf]
      %v277 = vld [vmem:[%s171 + $0x1a4] sm:$0xf]
      %v278 = vld [vmem:[%s171 + $0x1a8] sm:$0xf]
      %v279 = vld [vmem:[%s171 + $0x1ac] sm:$0xf]
      %v280 = vld [vmem:[%s171 + $0x1b0] sm:$0xf]
      %v281 = vld [vmem:[%s171 + $0x1b4] sm:$0xf]
      %v282 = vld [vmem:[%s171 + $0x1b8] sm:$0xf]
      %v283 = vld [vmem:[%s171 + $0x1bc] sm:$0xf]
      %v284 = vld [vmem:[%s171 + $0x1c0] sm:$0xf]
      %v285 = vld [vmem:[%s171 + $0x1c4] sm:$0xf]
      %v286 = vld [vmem:[%s171 + $0x1c8] sm:$0xf]
      %v287 = vld [vmem:[%s171 + $0x1cc] sm:$0xf]
      %v288 = vld [vmem:[%s171 + $0x1d0] sm:$0xf]
      %v289 = vld [vmem:[%s171 + $0x1d4] sm:$0xf]
      %v290 = vld [vmem:[%s171 + $0x1d8] sm:$0xf]
      %v291 = vld [vmem:[%s171 + $0x1dc] sm:$0xf]
      %v292 = vld [vmem:[%s171 + $0x1e0] sm:$0xf]
      %v293 = vld [vmem:[%s171 + $0x1e4] sm:$0xf]
      %v294 = vld [vmem:[%s171 + $0x1e8] sm:$0xf]
      %v295 = vld [vmem:[%s171 + $0x1ec] sm:$0xf]
      %v296 = vld [vmem:[%s171 + $0x1f0] sm:$0xf]
      %v297 = vld [vmem:[%s171 + $0x1f4] sm:$0xf]
      %v298 = vld [vmem:[%s171 + $0x1f8] sm:$0xf]
      %v299 = vld [vmem:[%s171 + $0x1fc] sm:$0xf]
      %v300 = vld [vmem:[%s171 + $0x200] sm:$0xf]
      %v301 = vld [vmem:[%s171 + $0x204] sm:$0xf]
      %v302 = vld [vmem:[%s171 + $0x208] sm:$0xf]
      %v303 = vld [vmem:[%s171 + $0x20c] sm:$0xf]
      %v304 = vld [vmem:[%s171 + $0x210] sm:$0xf]
      %v305 = vld [vmem:[%s171 + $0x214] sm:$0xf]
      %v306 = vld [vmem:[%s171 + $0x218] sm:$0xf]
      %v307 = vld [vmem:[%s171 + $0x21c] sm:$0xf]
      %v308 = vld [vmem:[%s171 + $0x220] sm:$0xf]
      %v309 = vld [vmem:[%s171 + $0x224] sm:$0xf]
      %v310 = vld [vmem:[%s171 + $0x228] sm:$0xf]
      %v311 = vld [vmem:[%s171 + $0x22c] sm:$0xf]
      %v312 = vld [vmem:[%s171 + $0x230] sm:$0xf]
      %v313 = vld [vmem:[%s171 + $0x234] sm:$0xf]
      %v314 = vld [vmem:[%s171 + $0x238] sm:$0xf]
      %v315 = vld [vmem:[%s171 + $0x23c] sm:$0xf]
      %v316 = vld [vmem:[%s171 + $0x240] sm:$0xf]
      %v317 = vld [vmem:[%s171 + $0x244] sm:$0xf]
      %v318 = vld [vmem:[%s171 + $0x248] sm:$0xf]
      %v319 = vld [vmem:[%s171 + $0x24c] sm:$0xf]
      %v320 = vld [vmem:[%s171 + $0x250] sm:$0xf]
      %v321 = vld [vmem:[%s171 + $0x254] sm:$0xf]
      %v322 = vld [vmem:[%s171 + $0x258] sm:$0xf]
      %v323 = vld [vmem:[%s171 + $0x25c] sm:$0xf]
      %v324 = vld [vmem:[%s171 + $0x260] sm:$0xf]
      %v325 = vld [vmem:[%s171 + $0x264] sm:$0xf]
      %v326 = vld [vmem:[%s171 + $0x268] sm:$0xf]
      %v327 = vld [vmem:[%s171 + $0x26c] sm:$0xf]
      %v328 = vld [vmem:[%s171 + $0x270] sm:$0xf]
      %v329 = vld [vmem:[%s171 + $0x274] sm:$0xf]
      %v330 = vld [vmem:[%s171 + $0x278] sm:$0xf]
      %v331 = vld [vmem:[%s171 + $0x27c] sm:$0xf]
      %v333 = vlaneseq
      %v334 = vshrl.u32 %v333, 7
      %v335 = vsub.s32 0, %v334
      %v336 = vrot.slane %v165, %v335
      %v348 = vunpack.c.l.b16 %v155
      %v349 = vunpack.c.h.b16 %v155
      %v350 = vunpack.c.l.b16 %v156
      %v351 = vunpack.c.h.b16 %v156
      %v352 = vunpack.c.l.b16 %v157
      %v353 = vunpack.c.h.b16 %v157
      %v354 = vunpack.c.l.b16 %v158
      %v355 = vunpack.c.h.b16 %v158
      %v356 = vunpack.c.l.b16 %v159
      %v357 = vunpack.c.h.b16 %v159
      %v358 = vunpack.c.l.b16 %v160
      %v359 = vunpack.c.h.b16 %v160
      %v360 = vunpack.c.l.b16 %v161
      %v361 = vunpack.c.h.b16 %v161
      %v362 = vunpack.c.l.b16 %v162
      %v363 = vunpack.c.h.b16 %v162
      %v364 = vunpack.c.l.b16 %v163
      %v365 = vunpack.c.h.b16 %v163
      %v366 = vunpack.c.l.b16 %v164
      %v367 = vunpack.c.h.b16 %v164
      %v368 = vpack.c.b16 %v358, %v348
      %v369 = vpack.c.b16 %v359, %v349
      %v370 = vpack.c.b16 %v360, %v350
      %v371 = vpack.c.b16 %v361, %v351
      %v372 = vpack.c.b16 %v362, %v352
      %v373 = vpack.c.b16 %v363, %v353
      %v374 = vpack.c.b16 %v364, %v354
      %v375 = vpack.c.b16 %v365, %v355
      %v376 = vpack.c.b16 %v366, %v356
      %v377 = vpack.c.b16 %v367, %v357
      %v548 = vunpack.c.l.b16 %v172
      %v549 = vunpack.c.l.b16 %v173
      %v550 = vunpack.c.l.b16 %v174
      %v551 = vunpack.c.l.b16 %v175
      %v552 = vunpack.c.l.b16 %v176
      %v553 = vunpack.c.l.b16 %v177
      %v554 = vunpack.c.l.b16 %v178
      %v555 = vunpack.c.l.b16 %v179
      %v556 = vunpack.c.l.b16 %v180
      %v557 = vunpack.c.l.b16 %v181
      %v558 = vunpack.c.l.b16 %v182
      %v559 = vunpack.c.l.b16 %v183
      %v560 = vunpack.c.l.b16 %v184
      %v561 = vunpack.c.l.b16 %v185
      %v562 = vunpack.c.l.b16 %v186
      %v563 = vunpack.c.l.b16 %v187
      %v564 = vunpack.c.l.b16 %v188
      %v565 = vunpack.c.l.b16 %v189
      %v566 = vunpack.c.l.b16 %v190
      %v567 = vunpack.c.l.b16 %v191
      %v568 = vunpack.c.l.b16 %v192
      %v569 = vunpack.c.l.b16 %v193
      %v570 = vunpack.c.l.b16 %v194
      %v571 = vunpack.c.l.b16 %v195
      %v572 = vunpack.c.l.b16 %v196
      %v573 = vunpack.c.l.b16 %v197
      %v574 = vunpack.c.l.b16 %v198
      %v575 = vunpack.c.l.b16 %v199
      %v576 = vunpack.c.l.b16 %v200
      %v577 = vunpack.c.l.b16 %v201
      %v578 = vunpack.c.l.b16 %v202
      %v579 = vunpack.c.l.b16 %v203
      %v580 = vunpack.c.l.b16 %v204
      %v581 = vunpack.c.l.b16 %v205
      %v582 = vunpack.c.l.b16 %v206
      %v583 = vunpack.c.l.b16 %v207
      %v584 = vunpack.c.l.b16 %v208
      %v585 = vunpack.c.l.b16 %v209
      %v586 = vunpack.c.l.b16 %v210
      %v587 = vunpack.c.l.b16 %v211
      %v588 = vunpack.c.l.b16 %v212
      %v589 = vunpack.c.l.b16 %v213
      %v590 = vunpack.c.l.b16 %v214
      %v591 = vunpack.c.l.b16 %v215
      %v592 = vunpack.c.l.b16 %v216
      %v593 = vunpack.c.l.b16 %v217
      %v594 = vunpack.c.l.b16 %v218
      %v595 = vunpack.c.l.b16 %v219
      %v596 = vunpack.c.l.b16 %v220
      %v597 = vunpack.c.l.b16 %v221
      %v598 = vunpack.c.l.b16 %v222
      %v599 = vunpack.c.l.b16 %v223
      %v600 = vunpack.c.l.b16 %v224
      %v601 = vunpack.c.l.b16 %v225
      %v602 = vunpack.c.l.b16 %v226
      %v603 = vunpack.c.l.b16 %v227
      %v604 = vunpack.c.l.b16 %v228
      %v605 = vunpack.c.l.b16 %v229
      %v606 = vunpack.c.l.b16 %v230
      %v607 = vunpack.c.l.b16 %v231
      %v608 = vunpack.c.l.b16 %v232
      %v609 = vunpack.c.l.b16 %v233
      %v610 = vunpack.c.l.b16 %v234
      %v611 = vunpack.c.l.b16 %v235
      %v612 = vunpack.c.l.b16 %v236
      %v613 = vunpack.c.l.b16 %v237
      %v614 = vunpack.c.l.b16 %v238
      %v615 = vunpack.c.l.b16 %v239
      %v616 = vunpack.c.l.b16 %v240
      %v617 = vunpack.c.l.b16 %v241
      %v618 = vunpack.c.l.b16 %v242
      %v619 = vunpack.c.l.b16 %v243
      %v620 = vunpack.c.l.b16 %v244
      %v621 = vunpack.c.l.b16 %v245
      %v622 = vunpack.c.l.b16 %v246
      %v623 = vunpack.c.l.b16 %v247
      %v624 = vunpack.c.l.b16 %v248
      %v625 = vunpack.c.l.b16 %v249
      %v626 = vunpack.c.l.b16 %v250
      %v627 = vunpack.c.l.b16 %v251
      %v628 = vunpack.c.l.b16 %v252
      %v629 = vunpack.c.l.b16 %v253
      %v630 = vunpack.c.l.b16 %v254
      %v631 = vunpack.c.l.b16 %v255
      %v632 = vunpack.c.l.b16 %v256
      %v633 = vunpack.c.l.b16 %v257
      %v634 = vunpack.c.l.b16 %v258
      %v635 = vunpack.c.l.b16 %v259
      %v636 = vunpack.c.l.b16 %v260
      %v637 = vunpack.c.l.b16 %v261
      %v638 = vunpack.c.l.b16 %v262
      %v639 = vunpack.c.l.b16 %v263
      %v640 = vunpack.c.l.b16 %v264
      %v641 = vunpack.c.l.b16 %v265
      %v642 = vunpack.c.l.b16 %v266
      %v643 = vunpack.c.l.b16 %v267
      %v644 = vunpack.c.l.b16 %v268
      %v645 = vunpack.c.l.b16 %v269
      %v646 = vunpack.c.l.b16 %v270
      %v647 = vunpack.c.l.b16 %v271
      %v648 = vunpack.c.l.b16 %v272
      %v649 = vunpack.c.l.b16 %v273
      %v650 = vunpack.c.l.b16 %v274
      %v651 = vunpack.c.l.b16 %v275
      %v652 = vunpack.c.l.b16 %v276
      %v653 = vunpack.c.l.b16 %v277
      %v654 = vunpack.c.l.b16 %v278
      %v655 = vunpack.c.l.b16 %v279
      %v656 = vunpack.c.l.b16 %v280
      %v657 = vunpack.c.l.b16 %v281
      %v658 = vunpack.c.l.b16 %v282
      %v659 = vunpack.c.l.b16 %v283
      %v660 = vunpack.c.l.b16 %v284
      %v661 = vunpack.c.l.b16 %v285
      %v662 = vunpack.c.l.b16 %v286
      %v663 = vunpack.c.l.b16 %v287
      %v664 = vunpack.c.l.b16 %v288
      %v665 = vunpack.c.l.b16 %v289
      %v666 = vunpack.c.l.b16 %v290
      %v667 = vunpack.c.l.b16 %v291
      %v668 = vunpack.c.l.b16 %v292
      %v669 = vunpack.c.l.b16 %v293
      %v670 = vunpack.c.l.b16 %v294
      %v671 = vunpack.c.l.b16 %v295
      %v672 = vunpack.c.l.b16 %v296
      %v673 = vunpack.c.l.b16 %v297
      %v674 = vunpack.c.l.b16 %v298
      %v675 = vunpack.c.l.b16 %v299
      %v676 = vunpack.c.l.b16 %v300
      %v677 = vunpack.c.l.b16 %v301
      %v678 = vunpack.c.l.b16 %v302
      %v679 = vunpack.c.l.b16 %v303
      %v680 = vunpack.c.l.b16 %v304
      %v681 = vunpack.c.l.b16 %v305
      %v682 = vunpack.c.l.b16 %v306
      %v683 = vunpack.c.l.b16 %v307
      %v684 = vunpack.c.l.b16 %v308
      %v685 = vunpack.c.l.b16 %v309
      %v686 = vunpack.c.l.b16 %v310
      %v687 = vunpack.c.l.b16 %v311
      %v688 = vunpack.c.l.b16 %v312
      %v689 = vunpack.c.l.b16 %v313
      %v690 = vunpack.c.l.b16 %v314
      %v691 = vunpack.c.l.b16 %v315
      %v692 = vunpack.c.l.b16 %v316
      %v693 = vunpack.c.l.b16 %v317
      %v694 = vunpack.c.l.b16 %v318
      %v695 = vunpack.c.l.b16 %v319
      %v696 = vunpack.c.l.b16 %v320
      %v697 = vunpack.c.l.b16 %v321
      %v698 = vunpack.c.l.b16 %v322
      %v699 = vunpack.c.l.b16 %v323
      %v700 = vunpack.c.l.b16 %v324
      %v701 = vunpack.c.l.b16 %v325
      %v702 = vunpack.c.l.b16 %v326
      %v703 = vunpack.c.l.b16 %v327
      %v704 = vunpack.c.l.b16 %v328
      %v705 = vunpack.c.l.b16 %v329
      %v706 = vunpack.c.l.b16 %v330
      %v707 = vunpack.c.l.b16 %v331
      %v708 = vpack.c.b16 %v549, %v548
      %v709 = vpack.c.b16 %v551, %v550
      %v710 = vpack.c.b16 %v553, %v552
      %v711 = vpack.c.b16 %v555, %v554
      %v712 = vpack.c.b16 %v557, %v556
      %v713 = vpack.c.b16 %v559, %v558
      %v714 = vpack.c.b16 %v561, %v560
      %v715 = vpack.c.b16 %v563, %v562
      %v716 = vpack.c.b16 %v565, %v564
      %v717 = vpack.c.b16 %v567, %v566
      %v718 = vpack.c.b16 %v569, %v568
      %v719 = vpack.c.b16 %v571, %v570
      %v720 = vpack.c.b16 %v573, %v572
      %v721 = vpack.c.b16 %v575, %v574
      %v722 = vpack.c.b16 %v577, %v576
      %v723 = vpack.c.b16 %v579, %v578
      %v724 = vpack.c.b16 %v581, %v580
      %v725 = vpack.c.b16 %v583, %v582
      %v726 = vpack.c.b16 %v585, %v584
      %v727 = vpack.c.b16 %v587, %v586
      %v728 = vpack.c.b16 %v589, %v588
      %v729 = vpack.c.b16 %v591, %v590
      %v730 = vpack.c.b16 %v593, %v592
      %v731 = vpack.c.b16 %v595, %v594
      %v732 = vpack.c.b16 %v597, %v596
      %v733 = vpack.c.b16 %v599, %v598
      %v734 = vpack.c.b16 %v601, %v600
      %v735 = vpack.c.b16 %v603, %v602
      %v736 = vpack.c.b16 %v605, %v604
      %v737 = vpack.c.b16 %v607, %v606
      %v738 = vpack.c.b16 %v609, %v608
      %v739 = vpack.c.b16 %v611, %v610
      %v740 = vpack.c.b16 %v613, %v612
      %v741 = vpack.c.b16 %v615, %v614
      %v742 = vpack.c.b16 %v617, %v616
      %v743 = vpack.c.b16 %v619, %v618
      %v744 = vpack.c.b16 %v621, %v620
      %v745 = vpack.c.b16 %v623, %v622
      %v746 = vpack.c.b16 %v625, %v624
      %v747 = vpack.c.b16 %v627, %v626
      %v748 = vpack.c.b16 %v629, %v628
      %v749 = vpack.c.b16 %v631, %v630
      %v750 = vpack.c.b16 %v633, %v632
      %v751 = vpack.c.b16 %v635, %v634
      %v752 = vpack.c.b16 %v637, %v636
      %v753 = vpack.c.b16 %v639, %v638
      %v754 = vpack.c.b16 %v641, %v640
      %v755 = vpack.c.b16 %v643, %v642
      %v756 = vpack.c.b16 %v645, %v644
      %v757 = vpack.c.b16 %v647, %v646
      %v758 = vpack.c.b16 %v649, %v648
      %v759 = vpack.c.b16 %v651, %v650
      %v760 = vpack.c.b16 %v653, %v652
      %v761 = vpack.c.b16 %v655, %v654
      %v762 = vpack.c.b16 %v657, %v656
      %v763 = vpack.c.b16 %v659, %v658
      %v764 = vpack.c.b16 %v661, %v660
      %v765 = vpack.c.b16 %v663, %v662
      %v766 = vpack.c.b16 %v665, %v664
      %v767 = vpack.c.b16 %v667, %v666
      %v768 = vpack.c.b16 %v669, %v668
      %v769 = vpack.c.b16 %v671, %v670
      %v770 = vpack.c.b16 %v673, %v672
      %v771 = vpack.c.b16 %v675, %v674
      %v772 = vpack.c.b16 %v677, %v676
      %v773 = vpack.c.b16 %v679, %v678
      %v774 = vpack.c.b16 %v681, %v680
      %v775 = vpack.c.b16 %v683, %v682
      %v776 = vpack.c.b16 %v685, %v684
      %v777 = vpack.c.b16 %v687, %v686
      %v778 = vpack.c.b16 %v689, %v688
      %v779 = vpack.c.b16 %v691, %v690
      %v780 = vpack.c.b16 %v693, %v692
      %v781 = vpack.c.b16 %v695, %v694
      %v782 = vpack.c.b16 %v697, %v696
      %v783 = vpack.c.b16 %v699, %v698
      %v784 = vpack.c.b16 %v701, %v700
      %v785 = vpack.c.b16 %v703, %v702
      %v786 = vpack.c.b16 %v705, %v704
      %v787 = vpack.c.b16 %v707, %v706
      %868 = vmatprep.subr.bf16.mxu0 0
      %869 = vmatpush1.bf16.msra.mxu0 %v708
      %870 = vmatprep.subr.bf16.mxu0 0
      %871 = vmatpush1.bf16.msra.mxu0 %v709
      %872 = vmatprep.subr.bf16.mxu0 0
      %873 = vmatpush1.bf16.msra.mxu0 %v710
      %874 = vmatprep.subr.bf16.mxu0 0
      %875 = vmatpush1.bf16.msra.mxu0 %v711
      %876 = vmatprep.subr.bf16.mxu0 0
      %877 = vmatpush1.bf16.msra.mxu0 %v712
      %878 = vmatprep.subr.bf16.mxu0 0
      %879 = vmatpush1.bf16.msra.mxu0 %v713
      %880 = vmatprep.subr.bf16.mxu0 0
      %881 = vmatpush1.bf16.msra.mxu0 %v714
      %882 = vmatprep.subr.bf16.mxu0 0
      %883 = vmatpush1.bf16.msra.mxu0 %v715
      %884 = vmatprep.subr.bf16.mxu0 0
      %885 = vmatpush1.bf16.msra.mxu0 %v716
      %886 = vmatprep.subr.bf16.mxu0 0
      %887 = vmatpush1.bf16.msra.mxu0 %v717
      %888 = vmatprep.subr.bf16.mxu0 0
      %889 = vmatpush1.bf16.msra.mxu0 %v718
      %890 = vmatprep.subr.bf16.mxu0 0
      %891 = vmatpush1.bf16.msra.mxu0 %v719
      %892 = vmatprep.subr.bf16.mxu0 0
      %893 = vmatpush1.bf16.msra.mxu0 %v720
      %894 = vmatprep.subr.bf16.mxu0 0
      %895 = vmatpush1.bf16.msra.mxu0 %v721
      %896 = vmatprep.subr.bf16.mxu0 0
      %897 = vmatpush1.bf16.msra.mxu0 %v722
      %898 = vmatprep.subr.bf16.mxu0 0
      %899 = vmatpush1.bf16.msra.mxu0 %v723
      %900 = vmatprep.mubr.bf16.mxu0 %v369
      %901 = vmatmul.mubr.bf16.gmra.mrb[0].mxu0 %v368
      %v902 = vpop.f32.mrb[0].mxu0
      %v903 = vadd.f32 %v336, %v902
      %v904 = vpop.f32.mrb[0].mxu0
      %v905 = vpop.f32.mrb[0].mxu0
      %v906 = vadd.f32 %v336, %v905
      %v907 = vpop.f32.mrb[0].mxu0
      %908 = vdwg.mxu0
      %909 = vmatprep.subr.bf16.mxu0 0
      %910 = vmatpush1.bf16.msra.mxu0 %v724
      %911 = vmatprep.subr.bf16.mxu0 0
      %912 = vmatpush1.bf16.msra.mxu0 %v725
      %913 = vmatprep.subr.bf16.mxu0 0
      %914 = vmatpush1.bf16.msra.mxu0 %v726
      %915 = vmatprep.subr.bf16.mxu0 0
      %916 = vmatpush1.bf16.msra.mxu0 %v727
      %917 = vmatprep.subr.bf16.mxu0 0
      %918 = vmatpush1.bf16.msra.mxu0 %v728
      %919 = vmatprep.subr.bf16.mxu0 0
      %920 = vmatpush1.bf16.msra.mxu0 %v729
      %921 = vmatprep.subr.bf16.mxu0 0
      %922 = vmatpush1.bf16.msra.mxu0 %v730
      %923 = vmatprep.subr.bf16.mxu0 0
      %924 = vmatpush1.bf16.msra.mxu0 %v731
      %925 = vmatprep.subr.bf16.mxu0 0
      %926 = vmatpush1.bf16.msra.mxu0 %v732
      %927 = vmatprep.subr.bf16.mxu0 0
      %928 = vmatpush1.bf16.msra.mxu0 %v733
      %929 = vmatprep.subr.bf16.mxu0 0
      %930 = vmatpush1.bf16.msra.mxu0 %v734
      %931 = vmatprep.subr.bf16.mxu0 0
      %932 = vmatpush1.bf16.msra.mxu0 %v735
      %933 = vmatprep.subr.bf16.mxu0 0
      %934 = vmatpush1.bf16.msra.mxu0 %v736
      %935 = vmatprep.subr.bf16.mxu0 0
      %936 = vmatpush1.bf16.msra.mxu0 %v737
      %937 = vmatprep.subr.bf16.mxu0 0
      %938 = vmatpush1.bf16.msra.mxu0 %v738
      %939 = vmatprep.subr.bf16.mxu0 0
      %940 = vmatpush1.bf16.msra.mxu0 %v739
      %941 = vmatprep.mubr.bf16.mxu0 %v371
      %942 = vmatmul.mubr.bf16.gmra.mrb[0].mxu0 %v370
      %v943 = vpop.f32.mrb[0].mxu0
      %v944 = vadd.f32 %v903, %v943
      %v945 = vpop.f32.mrb[0].mxu0
      %v946 = vpop.f32.mrb[0].mxu0
      %v947 = vadd.f32 %v906, %v946
      %v948 = vpop.f32.mrb[0].mxu0
      %949 = vdwg.mxu0
      %950 = vmatprep.subr.bf16.mxu0 0
      %951 = vmatpush1.bf16.msra.mxu0 %v740
      %952 = vmatprep.subr.bf16.mxu0 0
      %953 = vmatpush1.bf16.msra.mxu0 %v741
      %954 = vmatprep.subr.bf16.mxu0 0
      %955 = vmatpush1.bf16.msra.mxu0 %v742
      %956 = vmatprep.subr.bf16.mxu0 0
      %957 = vmatpush1.bf16.msra.mxu0 %v743
      %958 = vmatprep.subr.bf16.mxu0 0
      %959 = vmatpush1.bf16.msra.mxu0 %v744
      %960 = vmatprep.subr.bf16.mxu0 0
      %961 = vmatpush1.bf16.msra.mxu0 %v745
      %962 = vmatprep.subr.bf16.mxu0 0
      %963 = vmatpush1.bf16.msra.mxu0 %v746
      %964 = vmatprep.subr.bf16.mxu0 0
      %965 = vmatpush1.bf16.msra.mxu0 %v747
      %966 = vmatprep.subr.bf16.mxu0 0
      %967 = vmatpush1.bf16.msra.mxu0 %v748
      %968 = vmatprep.subr.bf16.mxu0 0
      %969 = vmatpush1.bf16.msra.mxu0 %v749
      %970 = vmatprep.subr.bf16.mxu0 0
      %971 = vmatpush1.bf16.msra.mxu0 %v750
      %972 = vmatprep.subr.bf16.mxu0 0
      %973 = vmatpush1.bf16.msra.mxu0 %v751
      %974 = vmatprep.subr.bf16.mxu0 0
      %975 = vmatpush1.bf16.msra.mxu0 %v752
      %976 = vmatprep.subr.bf16.mxu0 0
      %977 = vmatpush1.bf16.msra.mxu0 %v753
      %978 = vmatprep.subr.bf16.mxu0 0
      %979 = vmatpush1.bf16.msra.mxu0 %v754
      %980 = vmatprep.subr.bf16.mxu0 0
      %981 = vmatpush1.bf16.msra.mxu0 %v755
      %982 = vmatprep.mubr.bf16.mxu0 %v373
      %983 = vmatmul.mubr.bf16.gmra.mrb[0].mxu0 %v372
      %v984 = vpop.f32.mrb[0].mxu0
      %v985 = vadd.f32 %v944, %v984
      %v986 = vpop.f32.mrb[0].mxu0
      %v987 = vpop.f32.mrb[0].mxu0
      %v988 = vadd.f32 %v947, %v987
      %v989 = vpop.f32.mrb[0].mxu0
      %990 = vdwg.mxu0
      %991 = vmatprep.subr.bf16.mxu0 0
      %992 = vmatpush1.bf16.msra.mxu0 %v756
      %993 = vmatprep.subr.bf16.mxu0 0
      %994 = vmatpush1.bf16.msra.mxu0 %v757
      %995 = vmatprep.subr.bf16.mxu0 0
      %996 = vmatpush1.bf16.msra.mxu0 %v758
      %997 = vmatprep.subr.bf16.mxu0 0
      %998 = vmatpush1.bf16.msra.mxu0 %v759
      %999 = vmatprep.subr.bf16.mxu0 0
      %1000 = vmatpush1.bf16.msra.mxu0 %v760
      %1001 = vmatprep.subr.bf16.mxu0 0
      %1002 = vmatpush1.bf16.msra.mxu0 %v761
      %1003 = vmatprep.subr.bf16.mxu0 0
      %1004 = vmatpush1.bf16.msra.mxu0 %v762
      %1005 = vmatprep.subr.bf16.mxu0 0
      %1006 = vmatpush1.bf16.msra.mxu0 %v763
      %1007 = vmatprep.subr.bf16.mxu0 0
      %1008 = vmatpush1.bf16.msra.mxu0 %v764
      %1009 = vmatprep.subr.bf16.mxu0 0
      %1010 = vmatpush1.bf16.msra.mxu0 %v765
      %1011 = vmatprep.subr.bf16.mxu0 0
      %1012 = vmatpush1.bf16.msra.mxu0 %v766
      %1013 = vmatprep.subr.bf16.mxu0 0
      %1014 = vmatpush1.bf16.msra.mxu0 %v767
      %1015 = vmatprep.subr.bf16.mxu0 0
      %1016 = vmatpush1.bf16.msra.mxu0 %v768
      %1017 = vmatprep.subr.bf16.mxu0 0
      %1018 = vmatpush1.bf16.msra.mxu0 %v769
      %1019 = vmatprep.subr.bf16.mxu0 0
      %1020 = vmatpush1.bf16.msra.mxu0 %v770
      %1021 = vmatprep.subr.bf16.mxu0 0
      %1022 = vmatpush1.bf16.msra.mxu0 %v771
      %1023 = vmatprep.mubr.bf16.mxu0 %v375
      %1024 = vmatmul.mubr.bf16.gmra.mrb[0].mxu0 %v374
      %v1025 = vpop.f32.mrb[0].mxu0
      %v1026 = vadd.f32 %v985, %v1025
      %v1027 = vpop.f32.mrb[0].mxu0
      %v1028 = vpop.f32.mrb[0].mxu0
      %v1029 = vadd.f32 %v988, %v1028
      %v1030 = vpop.f32.mrb[0].mxu0
      %1031 = vdwg.mxu0
      %1032 = vmatprep.subr.bf16.mxu0 0
      %1033 = vmatpush1.bf16.msra.mxu0 %v772
      %1034 = vmatprep.subr.bf16.mxu0 0
      %1035 = vmatpush1.bf16.msra.mxu0 %v773
      %1036 = vmatprep.subr.bf16.mxu0 0
      %1037 = vmatpush1.bf16.msra.mxu0 %v774
      %1038 = vmatprep.subr.bf16.mxu0 0
      %1039 = vmatpush1.bf16.msra.mxu0 %v775
      %1040 = vmatprep.subr.bf16.mxu0 0
      %1041 = vmatpush1.bf16.msra.mxu0 %v776
      %1042 = vmatprep.subr.bf16.mxu0 0
      %1043 = vmatpush1.bf16.msra.mxu0 %v777
      %1044 = vmatprep.subr.bf16.mxu0 0
      %1045 = vmatpush1.bf16.msra.mxu0 %v778
      %1046 = vmatprep.subr.bf16.mxu0 0
      %1047 = vmatpush1.bf16.msra.mxu0 %v779
      %1048 = vmatprep.subr.bf16.mxu0 0
      %1049 = vmatpush1.bf16.msra.mxu0 %v780
      %1050 = vmatprep.subr.bf16.mxu0 0
      %1051 = vmatpush1.bf16.msra.mxu0 %v781
      %1052 = vmatprep.subr.bf16.mxu0 0
      %1053 = vmatpush1.bf16.msra.mxu0 %v782
      %1054 = vmatprep.subr.bf16.mxu0 0
      %1055 = vmatpush1.bf16.msra.mxu0 %v783
      %1056 = vmatprep.subr.bf16.mxu0 0
      %1057 = vmatpush1.bf16.msra.mxu0 %v784
      %1058 = vmatprep.subr.bf16.mxu0 0
      %1059 = vmatpush1.bf16.msra.mxu0 %v785
      %1060 = vmatprep.subr.bf16.mxu0 0
      %1061 = vmatpush1.bf16.msra.mxu0 %v786
      %1062 = vmatprep.subr.bf16.mxu0 0
      %1063 = vmatpush1.bf16.msra.mxu0 %v787
      %1064 = vmatprep.mubr.bf16.mxu0 %v377
      %1065 = vmatmul.mubr.bf16.gmra.mrb[0].mxu0 %v376
      %v1066 = vpop.f32.mrb[0].mxu0
      %v1067 = vadd.f32 %v1026, %v1066
      %v1068 = vpop.f32.mrb[0].mxu0
      %v1069 = vpop.f32.mrb[0].mxu0
      %v1070 = vadd.f32 %v1029, %v1069
      %v1071 = vpop.f32.mrb[0].mxu0
      %1072 = vdwg.mxu0
      %vm1073 = vcmask 130048
      %1074 = vst.msk [vmem:[%s152] sm:$0xff] %vm1073, %v1067
      %1075 = vst.msk [vmem:[%s152 + $0x8] sm:$0xff] %vm1073, %v1070
      %s1076 = sadd.s32 %s166, 1
      %s1077 = smul.u32 %s1076, 80
      %s1078 = sshra.s32 %s1077, 3
      %s1079 = sand.u32 %s1077, 7
      %s1080 = smul.addr %s1078, 4
      %s1081 = scalar_lea.vmem %s0, %s1080
      %v1082 = vld [vmem:[%s1081] sm:$0xf]
      %v1083 = vld [vmem:[%s1081 + $0x4] sm:$0xf]
      %v1084 = vld [vmem:[%s1081 + $0x8] sm:$0xf]
      %v1085 = vld [vmem:[%s1081 + $0xc] sm:$0xf]
      %v1086 = vld [vmem:[%s1081 + $0x10] sm:$0xf]
      %v1087 = vld [vmem:[%s1081 + $0x14] sm:$0xf]
      %v1088 = vld [vmem:[%s1081 + $0x18] sm:$0xf]
      %v1089 = vld [vmem:[%s1081 + $0x1c] sm:$0xf]
      %v1090 = vld [vmem:[%s1081 + $0x20] sm:$0xf]
      %v1091 = vld [vmem:[%s1081 + $0x24] sm:$0xf]
      %v1092 = vld [vmem:[%s1081 + $0x28] sm:$0xf]
      %v1093 = vld [vmem:[%s1081 + $0x2c] sm:$0xf]
      %v1094 = vld [vmem:[%s1081 + $0x30] sm:$0xf]
      %v1095 = vld [vmem:[%s1081 + $0x34] sm:$0xf]
      %v1096 = vld [vmem:[%s1081 + $0x38] sm:$0xf]
      %v1097 = vld [vmem:[%s1081 + $0x3c] sm:$0xf]
      %v1098 = vld [vmem:[%s1081 + $0x40] sm:$0xf]
      %v1099 = vld [vmem:[%s1081 + $0x44] sm:$0xf]
      %v1100 = vld [vmem:[%s1081 + $0x48] sm:$0xf]
      %v1101 = vld [vmem:[%s1081 + $0x4c] sm:$0xf]
      %v1102 = vld [vmem:[%s1081 + $0x50] sm:$0xf]
      %v1103 = vld [vmem:[%s1081 + $0x54] sm:$0xf]
      %v1104 = vld [vmem:[%s1081 + $0x58] sm:$0xf]
      %v1105 = vld [vmem:[%s1081 + $0x5c] sm:$0xf]
      %v1106 = vld [vmem:[%s1081 + $0x60] sm:$0xf]
      %v1107 = vld [vmem:[%s1081 + $0x64] sm:$0xf]
      %v1108 = vld [vmem:[%s1081 + $0x68] sm:$0xf]
      %v1109 = vld [vmem:[%s1081 + $0x6c] sm:$0xf]
      %v1110 = vld [vmem:[%s1081 + $0x70] sm:$0xf]
      %v1111 = vld [vmem:[%s1081 + $0x74] sm:$0xf]
      %v1112 = vld [vmem:[%s1081 + $0x78] sm:$0xf]
      %v1113 = vld [vmem:[%s1081 + $0x7c] sm:$0xf]
      %v1114 = vld [vmem:[%s1081 + $0x80] sm:$0xf]
      %v1115 = vld [vmem:[%s1081 + $0x84] sm:$0xf]
      %v1116 = vld [vmem:[%s1081 + $0x88] sm:$0xf]
      %v1117 = vld [vmem:[%s1081 + $0x8c] sm:$0xf]
      %v1118 = vld [vmem:[%s1081 + $0x90] sm:$0xf]
      %v1119 = vld [vmem:[%s1081 + $0x94] sm:$0xf]
      %v1120 = vld [vmem:[%s1081 + $0x98] sm:$0xf]
      %v1121 = vld [vmem:[%s1081 + $0x9c] sm:$0xf]
      %v1122 = vld [vmem:[%s1081 + $0xa0] sm:$0xf]
      %v1123 = vld [vmem:[%s1081 + $0xa4] sm:$0xf]
      %v1124 = vld [vmem:[%s1081 + $0xa8] sm:$0xf]
      %v1125 = vld [vmem:[%s1081 + $0xac] sm:$0xf]
      %v1126 = vld [vmem:[%s1081 + $0xb0] sm:$0xf]
      %v1127 = vld [vmem:[%s1081 + $0xb4] sm:$0xf]
      %v1128 = vld [vmem:[%s1081 + $0xb8] sm:$0xf]
      %v1129 = vld [vmem:[%s1081 + $0xbc] sm:$0xf]
      %v1130 = vld [vmem:[%s1081 + $0xc0] sm:$0xf]
      %v1131 = vld [vmem:[%s1081 + $0xc4] sm:$0xf]
      %v1132 = vld [vmem:[%s1081 + $0xc8] sm:$0xf]
      %v1133 = vld [vmem:[%s1081 + $0xcc] sm:$0xf]
      %v1134 = vld [vmem:[%s1081 + $0xd0] sm:$0xf]
      %v1135 = vld [vmem:[%s1081 + $0xd4] sm:$0xf]
      %v1136 = vld [vmem:[%s1081 + $0xd8] sm:$0xf]
      %v1137 = vld [vmem:[%s1081 + $0xdc] sm:$0xf]
      %v1138 = vld [vmem:[%s1081 + $0xe0] sm:$0xf]
      %v1139 = vld [vmem:[%s1081 + $0xe4] sm:$0xf]
      %v1140 = vld [vmem:[%s1081 + $0xe8] sm:$0xf]
      %v1141 = vld [vmem:[%s1081 + $0xec] sm:$0xf]
      %v1142 = vld [vmem:[%s1081 + $0xf0] sm:$0xf]
      %v1143 = vld [vmem:[%s1081 + $0xf4] sm:$0xf]
      %v1144 = vld [vmem:[%s1081 + $0xf8] sm:$0xf]
      %v1145 = vld [vmem:[%s1081 + $0xfc] sm:$0xf]
      %v1146 = vld [vmem:[%s1081 + $0x100] sm:$0xf]
      %v1147 = vld [vmem:[%s1081 + $0x104] sm:$0xf]
      %v1148 = vld [vmem:[%s1081 + $0x108] sm:$0xf]
      %v1149 = vld [vmem:[%s1081 + $0x10c] sm:$0xf]
      %v1150 = vld [vmem:[%s1081 + $0x110] sm:$0xf]
      %v1151 = vld [vmem:[%s1081 + $0x114] sm:$0xf]
      %v1152 = vld [vmem:[%s1081 + $0x118] sm:$0xf]
      %v1153 = vld [vmem:[%s1081 + $0x11c] sm:$0xf]
      %v1154 = vld [vmem:[%s1081 + $0x120] sm:$0xf]
      %v1155 = vld [vmem:[%s1081 + $0x124] sm:$0xf]
      %v1156 = vld [vmem:[%s1081 + $0x128] sm:$0xf]
      %v1157 = vld [vmem:[%s1081 + $0x12c] sm:$0xf]
      %v1158 = vld [vmem:[%s1081 + $0x130] sm:$0xf]
      %v1159 = vld [vmem:[%s1081 + $0x134] sm:$0xf]
      %v1160 = vld [vmem:[%s1081 + $0x138] sm:$0xf]
      %v1161 = vld [vmem:[%s1081 + $0x13c] sm:$0xf]
      %v1162 = vld [vmem:[%s1081 + $0x140] sm:$0xf]
      %v1163 = vld [vmem:[%s1081 + $0x144] sm:$0xf]
      %v1164 = vld [vmem:[%s1081 + $0x148] sm:$0xf]
      %v1165 = vld [vmem:[%s1081 + $0x14c] sm:$0xf]
      %v1166 = vld [vmem:[%s1081 + $0x150] sm:$0xf]
      %v1167 = vld [vmem:[%s1081 + $0x154] sm:$0xf]
      %v1168 = vld [vmem:[%s1081 + $0x158] sm:$0xf]
      %v1169 = vld [vmem:[%s1081 + $0x15c] sm:$0xf]
      %v1170 = vld [vmem:[%s1081 + $0x160] sm:$0xf]
      %v1171 = vld [vmem:[%s1081 + $0x164] sm:$0xf]
      %v1172 = vld [vmem:[%s1081 + $0x168] sm:$0xf]
      %v1173 = vld [vmem:[%s1081 + $0x16c] sm:$0xf]
      %v1174 = vld [vmem:[%s1081 + $0x170] sm:$0xf]
      %v1175 = vld [vmem:[%s1081 + $0x174] sm:$0xf]
      %v1176 = vld [vmem:[%s1081 + $0x178] sm:$0xf]
      %v1177 = vld [vmem:[%s1081 + $0x17c] sm:$0xf]
      %v1178 = vld [vmem:[%s1081 + $0x180] sm:$0xf]
      %v1179 = vld [vmem:[%s1081 + $0x184] sm:$0xf]
      %v1180 = vld [vmem:[%s1081 + $0x188] sm:$0xf]
      %v1181 = vld [vmem:[%s1081 + $0x18c] sm:$0xf]
      %v1182 = vld [vmem:[%s1081 + $0x190] sm:$0xf]
      %v1183 = vld [vmem:[%s1081 + $0x194] sm:$0xf]
      %v1184 = vld [vmem:[%s1081 + $0x198] sm:$0xf]
      %v1185 = vld [vmem:[%s1081 + $0x19c] sm:$0xf]
      %v1186 = vld [vmem:[%s1081 + $0x1a0] sm:$0xf]
      %v1187 = vld [vmem:[%s1081 + $0x1a4] sm:$0xf]
      %v1188 = vld [vmem:[%s1081 + $0x1a8] sm:$0xf]
      %v1189 = vld [vmem:[%s1081 + $0x1ac] sm:$0xf]
      %v1190 = vld [vmem:[%s1081 + $0x1b0] sm:$0xf]
      %v1191 = vld [vmem:[%s1081 + $0x1b4] sm:$0xf]
      %v1192 = vld [vmem:[%s1081 + $0x1b8] sm:$0xf]
      %v1193 = vld [vmem:[%s1081 + $0x1bc] sm:$0xf]
      %v1194 = vld [vmem:[%s1081 + $0x1c0] sm:$0xf]
      %v1195 = vld [vmem:[%s1081 + $0x1c4] sm:$0xf]
      %v1196 = vld [vmem:[%s1081 + $0x1c8] sm:$0xf]
      %v1197 = vld [vmem:[%s1081 + $0x1cc] sm:$0xf]
      %v1198 = vld [vmem:[%s1081 + $0x1d0] sm:$0xf]
      %v1199 = vld [vmem:[%s1081 + $0x1d4] sm:$0xf]
      %v1200 = vld [vmem:[%s1081 + $0x1d8] sm:$0xf]
      %v1201 = vld [vmem:[%s1081 + $0x1dc] sm:$0xf]
      %v1202 = vld [vmem:[%s1081 + $0x1e0] sm:$0xf]
      %v1203 = vld [vmem:[%s1081 + $0x1e4] sm:$0xf]
      %v1204 = vld [vmem:[%s1081 + $0x1e8] sm:$0xf]
      %v1205 = vld [vmem:[%s1081 + $0x1ec] sm:$0xf]
      %v1206 = vld [vmem:[%s1081 + $0x1f0] sm:$0xf]
      %v1207 = vld [vmem:[%s1081 + $0x1f4] sm:$0xf]
      %v1208 = vld [vmem:[%s1081 + $0x1f8] sm:$0xf]
      %v1209 = vld [vmem:[%s1081 + $0x1fc] sm:$0xf]
      %v1210 = vld [vmem:[%s1081 + $0x200] sm:$0xf]
      %v1211 = vld [vmem:[%s1081 + $0x204] sm:$0xf]
      %v1212 = vld [vmem:[%s1081 + $0x208] sm:$0xf]
      %v1213 = vld [vmem:[%s1081 + $0x20c] sm:$0xf]
      %v1214 = vld [vmem:[%s1081 + $0x210] sm:$0xf]
      %v1215 = vld [vmem:[%s1081 + $0x214] sm:$0xf]
      %v1216 = vld [vmem:[%s1081 + $0x218] sm:$0xf]
      %v1217 = vld [vmem:[%s1081 + $0x21c] sm:$0xf]
      %v1218 = vld [vmem:[%s1081 + $0x220] sm:$0xf]
      %v1219 = vld [vmem:[%s1081 + $0x224] sm:$0xf]
      %v1220 = vld [vmem:[%s1081 + $0x228] sm:$0xf]
      %v1221 = vld [vmem:[%s1081 + $0x22c] sm:$0xf]
      %v1222 = vld [vmem:[%s1081 + $0x230] sm:$0xf]
      %v1223 = vld [vmem:[%s1081 + $0x234] sm:$0xf]
      %v1224 = vld [vmem:[%s1081 + $0x238] sm:$0xf]
      %v1225 = vld [vmem:[%s1081 + $0x23c] sm:$0xf]
      %v1226 = vld [vmem:[%s1081 + $0x240] sm:$0xf]
      %v1227 = vld [vmem:[%s1081 + $0x244] sm:$0xf]
      %v1228 = vld [vmem:[%s1081 + $0x248] sm:$0xf]
      %v1229 = vld [vmem:[%s1081 + $0x24c] sm:$0xf]
      %v1230 = vld [vmem:[%s1081 + $0x250] sm:$0xf]
      %v1231 = vld [vmem:[%s1081 + $0x254] sm:$0xf]
      %v1232 = vld [vmem:[%s1081 + $0x258] sm:$0xf]
      %v1233 = vld [vmem:[%s1081 + $0x25c] sm:$0xf]
      %v1234 = vld [vmem:[%s1081 + $0x260] sm:$0xf]
      %v1235 = vld [vmem:[%s1081 + $0x264] sm:$0xf]
      %v1236 = vld [vmem:[%s1081 + $0x268] sm:$0xf]
      %v1237 = vld [vmem:[%s1081 + $0x26c] sm:$0xf]
      %v1238 = vld [vmem:[%s1081 + $0x270] sm:$0xf]
      %v1239 = vld [vmem:[%s1081 + $0x274] sm:$0xf]
      %v1240 = vld [vmem:[%s1081 + $0x278] sm:$0xf]
      %v1241 = vld [vmem:[%s1081 + $0x27c] sm:$0xf]
      %v1402 = vunpack.c.l.b16 %v1082
      %v1403 = vunpack.c.l.b16 %v1083
      %v1404 = vunpack.c.l.b16 %v1084
      %v1405 = vunpack.c.l.b16 %v1085
      %v1406 = vunpack.c.l.b16 %v1086
      %v1407 = vunpack.c.l.b16 %v1087
      %v1408 = vunpack.c.l.b16 %v1088
      %v1409 = vunpack.c.l.b16 %v1089
      %v1410 = vunpack.c.l.b16 %v1090
      %v1411 = vunpack.c.l.b16 %v1091
      %v1412 = vunpack.c.l.b16 %v1092
      %v1413 = vunpack.c.l.b16 %v1093
      %v1414 = vunpack.c.l.b16 %v1094
      %v1415 = vunpack.c.l.b16 %v1095
      %v1416 = vunpack.c.l.b16 %v1096
      %v1417 = vunpack.c.l.b16 %v1097
      %v1418 = vunpack.c.l.b16 %v1098
      %v1419 = vunpack.c.l.b16 %v1099
      %v1420 = vunpack.c.l.b16 %v1100
      %v1421 = vunpack.c.l.b16 %v1101
      %v1422 = vunpack.c.l.b16 %v1102
      %v1423 = vunpack.c.l.b16 %v1103
      %v1424 = vunpack.c.l.b16 %v1104
      %v1425 = vunpack.c.l.b16 %v1105
      %v1426 = vunpack.c.l.b16 %v1106
      %v1427 = vunpack.c.l.b16 %v1107
      %v1428 = vunpack.c.l.b16 %v1108
      %v1429 = vunpack.c.l.b16 %v1109
      %v1430 = vunpack.c.l.b16 %v1110
      %v1431 = vunpack.c.l.b16 %v1111
      %v1432 = vunpack.c.l.b16 %v1112
      %v1433 = vunpack.c.l.b16 %v1113
      %v1434 = vunpack.c.l.b16 %v1114
      %v1435 = vunpack.c.l.b16 %v1115
      %v1436 = vunpack.c.l.b16 %v1116
      %v1437 = vunpack.c.l.b16 %v1117
      %v1438 = vunpack.c.l.b16 %v1118
      %v1439 = vunpack.c.l.b16 %v1119
      %v1440 = vunpack.c.l.b16 %v1120
      %v1441 = vunpack.c.l.b16 %v1121
      %v1442 = vunpack.c.l.b16 %v1122
      %v1443 = vunpack.c.l.b16 %v1123
      %v1444 = vunpack.c.l.b16 %v1124
      %v1445 = vunpack.c.l.b16 %v1125
      %v1446 = vunpack.c.l.b16 %v1126
      %v1447 = vunpack.c.l.b16 %v1127
      %v1448 = vunpack.c.l.b16 %v1128
      %v1449 = vunpack.c.l.b16 %v1129
      %v1450 = vunpack.c.l.b16 %v1130
      %v1451 = vunpack.c.l.b16 %v1131
      %v1452 = vunpack.c.l.b16 %v1132
      %v1453 = vunpack.c.l.b16 %v1133
      %v1454 = vunpack.c.l.b16 %v1134
      %v1455 = vunpack.c.l.b16 %v1135
      %v1456 = vunpack.c.l.b16 %v1136
      %v1457 = vunpack.c.l.b16 %v1137
      %v1458 = vunpack.c.l.b16 %v1138
      %v1459 = vunpack.c.l.b16 %v1139
      %v1460 = vunpack.c.l.b16 %v1140
      %v1461 = vunpack.c.l.b16 %v1141
      %v1462 = vunpack.c.l.b16 %v1142
      %v1463 = vunpack.c.l.b16 %v1143
      %v1464 = vunpack.c.l.b16 %v1144
      %v1465 = vunpack.c.l.b16 %v1145
      %v1466 = vunpack.c.l.b16 %v1146
      %v1467 = vunpack.c.l.b16 %v1147
      %v1468 = vunpack.c.l.b16 %v1148
      %v1469 = vunpack.c.l.b16 %v1149
      %v1470 = vunpack.c.l.b16 %v1150
      %v1471 = vunpack.c.l.b16 %v1151
      %v1472 = vunpack.c.l.b16 %v1152
      %v1473 = vunpack.c.l.b16 %v1153
      %v1474 = vunpack.c.l.b16 %v1154
      %v1475 = vunpack.c.l.b16 %v1155
      %v1476 = vunpack.c.l.b16 %v1156
      %v1477 = vunpack.c.l.b16 %v1157
      %v1478 = vunpack.c.l.b16 %v1158
      %v1479 = vunpack.c.l.b16 %v1159
      %v1480 = vunpack.c.l.b16 %v1160
      %v1481 = vunpack.c.l.b16 %v1161
      %v1482 = vunpack.c.l.b16 %v1162
      %v1483 = vunpack.c.l.b16 %v1163
      %v1484 = vunpack.c.l.b16 %v1164
      %v1485 = vunpack.c.l.b16 %v1165
      %v1486 = vunpack.c.l.b16 %v1166
      %v1487 = vunpack.c.l.b16 %v1167
      %v1488 = vunpack.c.l.b16 %v1168
      %v1489 = vunpack.c.l.b16 %v1169
      %v1490 = vunpack.c.l.b16 %v1170
      %v1491 = vunpack.c.l.b16 %v1171
      %v1492 = vunpack.c.l.b16 %v1172
      %v1493 = vunpack.c.l.b16 %v1173
      %v1494 = vunpack.c.l.b16 %v1174
      %v1495 = vunpack.c.l.b16 %v1175
      %v1496 = vunpack.c.l.b16 %v1176
      %v1497 = vunpack.c.l.b16 %v1177
      %v1498 = vunpack.c.l.b16 %v1178
      %v1499 = vunpack.c.l.b16 %v1179
      %v1500 = vunpack.c.l.b16 %v1180
      %v1501 = vunpack.c.l.b16 %v1181
      %v1502 = vunpack.c.l.b16 %v1182
      %v1503 = vunpack.c.l.b16 %v1183
      %v1504 = vunpack.c.l.b16 %v1184
      %v1505 = vunpack.c.l.b16 %v1185
      %v1506 = vunpack.c.l.b16 %v1186
      %v1507 = vunpack.c.l.b16 %v1187
      %v1508 = vunpack.c.l.b16 %v1188
      %v1509 = vunpack.c.l.b16 %v1189
      %v1510 = vunpack.c.l.b16 %v1190
      %v1511 = vunpack.c.l.b16 %v1191
      %v1512 = vunpack.c.l.b16 %v1192
      %v1513 = vunpack.c.l.b16 %v1193
      %v1514 = vunpack.c.l.b16 %v1194
      %v1515 = vunpack.c.l.b16 %v1195
      %v1516 = vunpack.c.l.b16 %v1196
      %v1517 = vunpack.c.l.b16 %v1197
      %v1518 = vunpack.c.l.b16 %v1198
      %v1519 = vunpack.c.l.b16 %v1199
      %v1520 = vunpack.c.l.b16 %v1200
      %v1521 = vunpack.c.l.b16 %v1201
      %v1522 = vunpack.c.l.b16 %v1202
      %v1523 = vunpack.c.l.b16 %v1203
      %v1524 = vunpack.c.l.b16 %v1204
      %v1525 = vunpack.c.l.b16 %v1205
      %v1526 = vunpack.c.l.b16 %v1206
      %v1527 = vunpack.c.l.b16 %v1207
      %v1528 = vunpack.c.l.b16 %v1208
      %v1529 = vunpack.c.l.b16 %v1209
      %v1530 = vunpack.c.l.b16 %v1210
      %v1531 = vunpack.c.l.b16 %v1211
      %v1532 = vunpack.c.l.b16 %v1212
      %v1533 = vunpack.c.l.b16 %v1213
      %v1534 = vunpack.c.l.b16 %v1214
      %v1535 = vunpack.c.l.b16 %v1215
      %v1536 = vunpack.c.l.b16 %v1216
      %v1537 = vunpack.c.l.b16 %v1217
      %v1538 = vunpack.c.l.b16 %v1218
      %v1539 = vunpack.c.l.b16 %v1219
      %v1540 = vunpack.c.l.b16 %v1220
      %v1541 = vunpack.c.l.b16 %v1221
      %v1542 = vunpack.c.l.b16 %v1222
      %v1543 = vunpack.c.l.b16 %v1223
      %v1544 = vunpack.c.l.b16 %v1224
      %v1545 = vunpack.c.l.b16 %v1225
      %v1546 = vunpack.c.l.b16 %v1226
      %v1547 = vunpack.c.l.b16 %v1227
      %v1548 = vunpack.c.l.b16 %v1228
      %v1549 = vunpack.c.l.b16 %v1229
      %v1550 = vunpack.c.l.b16 %v1230
      %v1551 = vunpack.c.l.b16 %v1231
      %v1552 = vunpack.c.l.b16 %v1232
      %v1553 = vunpack.c.l.b16 %v1233
      %v1554 = vunpack.c.l.b16 %v1234
      %v1555 = vunpack.c.l.b16 %v1235
      %v1556 = vunpack.c.l.b16 %v1236
      %v1557 = vunpack.c.l.b16 %v1237
      %v1558 = vunpack.c.l.b16 %v1238
      %v1559 = vunpack.c.l.b16 %v1239
      %v1560 = vunpack.c.l.b16 %v1240
      %v1561 = vunpack.c.l.b16 %v1241
      %v1562 = vpack.c.b16 %v1403, %v1402
      %v1563 = vpack.c.b16 %v1405, %v1404
      %v1564 = vpack.c.b16 %v1407, %v1406
      %v1565 = vpack.c.b16 %v1409, %v1408
      %v1566 = vpack.c.b16 %v1411, %v1410
      %v1567 = vpack.c.b16 %v1413, %v1412
      %v1568 = vpack.c.b16 %v1415, %v1414
      %v1569 = vpack.c.b16 %v1417, %v1416
      %v1570 = vpack.c.b16 %v1419, %v1418
      %v1571 = vpack.c.b16 %v1421, %v1420
      %v1572 = vpack.c.b16 %v1423, %v1422
      %v1573 = vpack.c.b16 %v1425, %v1424
      %v1574 = vpack.c.b16 %v1427, %v1426
      %v1575 = vpack.c.b16 %v1429, %v1428
      %v1576 = vpack.c.b16 %v1431, %v1430
      %v1577 = vpack.c.b16 %v1433, %v1432
      %v1578 = vpack.c.b16 %v1435, %v1434
      %v1579 = vpack.c.b16 %v1437, %v1436
      %v1580 = vpack.c.b16 %v1439, %v1438
      %v1581 = vpack.c.b16 %v1441, %v1440
      %v1582 = vpack.c.b16 %v1443, %v1442
      %v1583 = vpack.c.b16 %v1445, %v1444
      %v1584 = vpack.c.b16 %v1447, %v1446
      %v1585 = vpack.c.b16 %v1449, %v1448
      %v1586 = vpack.c.b16 %v1451, %v1450
      %v1587 = vpack.c.b16 %v1453, %v1452
      %v1588 = vpack.c.b16 %v1455, %v1454
      %v1589 = vpack.c.b16 %v1457, %v1456
      %v1590 = vpack.c.b16 %v1459, %v1458
      %v1591 = vpack.c.b16 %v1461, %v1460
      %v1592 = vpack.c.b16 %v1463, %v1462
      %v1593 = vpack.c.b16 %v1465, %v1464
      %v1594 = vpack.c.b16 %v1467, %v1466
      %v1595 = vpack.c.b16 %v1469, %v1468
      %v1596 = vpack.c.b16 %v1471, %v1470
      %v1597 = vpack.c.b16 %v1473, %v1472
      %v1598 = vpack.c.b16 %v1475, %v1474
      %v1599 = vpack.c.b16 %v1477, %v1476
      %v1600 = vpack.c.b16 %v1479, %v1478
      %v1601 = vpack.c.b16 %v1481, %v1480
      %v1602 = vpack.c.b16 %v1483, %v1482
      %v1603 = vpack.c.b16 %v1485, %v1484
      %v1604 = vpack.c.b16 %v1487, %v1486
      %v1605 = vpack.c.b16 %v1489, %v1488
      %v1606 = vpack.c.b16 %v1491, %v1490
      %v1607 = vpack.c.b16 %v1493, %v1492
      %v1608 = vpack.c.b16 %v1495, %v1494
      %v1609 = vpack.c.b16 %v1497, %v1496
      %v1610 = vpack.c.b16 %v1499, %v1498
      %v1611 = vpack.c.b16 %v1501, %v1500
      %v1612 = vpack.c.b16 %v1503, %v1502
      %v1613 = vpack.c.b16 %v1505, %v1504
      %v1614 = vpack.c.b16 %v1507, %v1506
      %v1615 = vpack.c.b16 %v1509, %v1508
      %v1616 = vpack.c.b16 %v1511, %v1510
      %v1617 = vpack.c.b16 %v1513, %v1512
      %v1618 = vpack.c.b16 %v1515, %v1514
      %v1619 = vpack.c.b16 %v1517, %v1516
      %v1620 = vpack.c.b16 %v1519, %v1518
      %v1621 = vpack.c.b16 %v1521, %v1520
      %v1622 = vpack.c.b16 %v1523, %v1522
      %v1623 = vpack.c.b16 %v1525, %v1524
      %v1624 = vpack.c.b16 %v1527, %v1526
      %v1625 = vpack.c.b16 %v1529, %v1528
      %v1626 = vpack.c.b16 %v1531, %v1530
      %v1627 = vpack.c.b16 %v1533, %v1532
      %v1628 = vpack.c.b16 %v1535, %v1534
      %v1629 = vpack.c.b16 %v1537, %v1536
      %v1630 = vpack.c.b16 %v1539, %v1538
      %v1631 = vpack.c.b16 %v1541, %v1540
      %v1632 = vpack.c.b16 %v1543, %v1542
      %v1633 = vpack.c.b16 %v1545, %v1544
      %v1634 = vpack.c.b16 %v1547, %v1546
      %v1635 = vpack.c.b16 %v1549, %v1548
      %v1636 = vpack.c.b16 %v1551, %v1550
      %v1637 = vpack.c.b16 %v1553, %v1552
      %v1638 = vpack.c.b16 %v1555, %v1554
      %v1639 = vpack.c.b16 %v1557, %v1556
      %v1640 = vpack.c.b16 %v1559, %v1558
      %v1641 = vpack.c.b16 %v1561, %v1560
      %1722 = vmatprep.subr.bf16.mxu0 0
      %1723 = vmatpush1.bf16.msra.mxu0 %v1562
      %1724 = vmatprep.subr.bf16.mxu0 0
      %1725 = vmatpush1.bf16.msra.mxu0 %v1563
      %1726 = vmatprep.subr.bf16.mxu0 0
      %1727 = vmatpush1.bf16.msra.mxu0 %v1564
      %1728 = vmatprep.subr.bf16.mxu0 0
      %1729 = vmatpush1.bf16.msra.mxu0 %v1565
      %1730 = vmatprep.subr.bf16.mxu0 0
      %1731 = vmatpush1.bf16.msra.mxu0 %v1566
      %1732 = vmatprep.subr.bf16.mxu0 0
      %1733 = vmatpush1.bf16.msra.mxu0 %v1567
      %1734 = vmatprep.subr.bf16.mxu0 0
      %1735 = vmatpush1.bf16.msra.mxu0 %v1568
      %1736 = vmatprep.subr.bf16.mxu0 0
      %1737 = vmatpush1.bf16.msra.mxu0 %v1569
      %1738 = vmatprep.subr.bf16.mxu0 0
      %1739 = vmatpush1.bf16.msra.mxu0 %v1570
      %1740 = vmatprep.subr.bf16.mxu0 0
      %1741 = vmatpush1.bf16.msra.mxu0 %v1571
      %1742 = vmatprep.subr.bf16.mxu0 0
      %1743 = vmatpush1.bf16.msra.mxu0 %v1572
      %1744 = vmatprep.subr.bf16.mxu0 0
      %1745 = vmatpush1.bf16.msra.mxu0 %v1573
      %1746 = vmatprep.subr.bf16.mxu0 0
      %1747 = vmatpush1.bf16.msra.mxu0 %v1574
      %1748 = vmatprep.subr.bf16.mxu0 0
      %1749 = vmatpush1.bf16.msra.mxu0 %v1575
      %1750 = vmatprep.subr.bf16.mxu0 0
      %1751 = vmatpush1.bf16.msra.mxu0 %v1576
      %1752 = vmatprep.subr.bf16.mxu0 0
      %1753 = vmatpush1.bf16.msra.mxu0 %v1577
      %1754 = vmatprep.mubr.bf16.mxu0 %v369
      %1755 = vmatmul.mubr.bf16.gmra.mrb[0].mxu0 %v368
      %v1756 = vpop.f32.mrb[0].mxu0
      %v1757 = vadd.f32 %v336, %v1756
      %v1758 = vpop.f32.mrb[0].mxu0
      %v1759 = vpop.f32.mrb[0].mxu0
      %v1760 = vadd.f32 %v336, %v1759
      %v1761 = vpop.f32.mrb[0].mxu0
      %1762 = vdwg.mxu0
      %1763 = vmatprep.subr.bf16.mxu0 0
      %1764 = vmatpush1.bf16.msra.mxu0 %v1578
      %1765 = vmatprep.subr.bf16.mxu0 0
      %1766 = vmatpush1.bf16.msra.mxu0 %v1579
      %1767 = vmatprep.subr.bf16.mxu0 0
      %1768 = vmatpush1.bf16.msra.mxu0 %v1580
      %1769 = vmatprep.subr.bf16.mxu0 0
      %1770 = vmatpush1.bf16.msra.mxu0 %v1581
      %1771 = vmatprep.subr.bf16.mxu0 0
      %1772 = vmatpush1.bf16.msra.mxu0 %v1582
      %1773 = vmatprep.subr.bf16.mxu0 0
      %1774 = vmatpush1.bf16.msra.mxu0 %v1583
      %1775 = vmatprep.subr.bf16.mxu0 0
      %1776 = vmatpush1.bf16.msra.mxu0 %v1584
      %1777 = vmatprep.subr.bf16.mxu0 0
      %1778 = vmatpush1.bf16.msra.mxu0 %v1585
      %1779 = vmatprep.subr.bf16.mxu0 0
      %1780 = vmatpush1.bf16.msra.mxu0 %v1586
      %1781 = vmatprep.subr.bf16.mxu0 0
      %1782 = vmatpush1.bf16.msra.mxu0 %v1587
      %1783 = vmatprep.subr.bf16.mxu0 0
      %1784 = vmatpush1.bf16.msra.mxu0 %v1588
      %1785 = vmatprep.subr.bf16.mxu0 0
      %1786 = vmatpush1.bf16.msra.mxu0 %v1589
      %1787 = vmatprep.subr.bf16.mxu0 0
      %1788 = vmatpush1.bf16.msra.mxu0 %v1590
      %1789 = vmatprep.subr.bf16.mxu0 0
      %1790 = vmatpush1.bf16.msra.mxu0 %v1591
      %1791 = vmatprep.subr.bf16.mxu0 0
      %1792 = vmatpush1.bf16.msra.mxu0 %v1592
      %1793 = vmatprep.subr.bf16.mxu0 0
      %1794 = vmatpush1.bf16.msra.mxu0 %v1593
      %1795 = vmatprep.mubr.bf16.mxu0 %v371
      %1796 = vmatmul.mubr.bf16.gmra.mrb[0].mxu0 %v370
      %v1797 = vpop.f32.mrb[0].mxu0
      %v1798 = vadd.f32 %v1757, %v1797
      %v1799 = vpop.f32.mrb[0].mxu0
      %v1800 = vpop.f32.mrb[0].mxu0
      %v1801 = vadd.f32 %v1760, %v1800
      %v1802 = vpop.f32.mrb[0].mxu0
      %1803 = vdwg.mxu0
      %1804 = vmatprep.subr.bf16.mxu0 0
      %1805 = vmatpush1.bf16.msra.mxu0 %v1594
      %1806 = vmatprep.subr.bf16.mxu0 0
      %1807 = vmatpush1.bf16.msra.mxu0 %v1595
      %1808 = vmatprep.subr.bf16.mxu0 0
      %1809 = vmatpush1.bf16.msra.mxu0 %v1596
      %1810 = vmatprep.subr.bf16.mxu0 0
      %1811 = vmatpush1.bf16.msra.mxu0 %v1597
      %1812 = vmatprep.subr.bf16.mxu0 0
      %1813 = vmatpush1.bf16.msra.mxu0 %v1598
      %1814 = vmatprep.subr.bf16.mxu0 0
      %1815 = vmatpush1.bf16.msra.mxu0 %v1599
      %1816 = vmatprep.subr.bf16.mxu0 0
      %1817 = vmatpush1.bf16.msra.mxu0 %v1600
      %1818 = vmatprep.subr.bf16.mxu0 0
      %1819 = vmatpush1.bf16.msra.mxu0 %v1601
      %1820 = vmatprep.subr.bf16.mxu0 0
      %1821 = vmatpush1.bf16.msra.mxu0 %v1602
      %1822 = vmatprep.subr.bf16.mxu0 0
      %1823 = vmatpush1.bf16.msra.mxu0 %v1603
      %1824 = vmatprep.subr.bf16.mxu0 0
      %1825 = vmatpush1.bf16.msra.mxu0 %v1604
      %1826 = vmatprep.subr.bf16.mxu0 0
      %1827 = vmatpush1.bf16.msra.mxu0 %v1605
      %1828 = vmatprep.subr.bf16.mxu0 0
      %1829 = vmatpush1.bf16.msra.mxu0 %v1606
      %1830 = vmatprep.subr.bf16.mxu0 0
      %1831 = vmatpush1.bf16.msra.mxu0 %v1607
      %1832 = vmatprep.subr.bf16.mxu0 0
      %1833 = vmatpush1.bf16.msra.mxu0 %v1608
      %1834 = vmatprep.subr.bf16.mxu0 0
      %1835 = vmatpush1.bf16.msra.mxu0 %v1609
      %1836 = vmatprep.mubr.bf16.mxu0 %v373
      %1837 = vmatmul.mubr.bf16.gmra.mrb[0].mxu0 %v372
      %v1838 = vpop.f32.mrb[0].mxu0
      %v1839 = vadd.f32 %v1798, %v1838
      %v1840 = vpop.f32.mrb[0].mxu0
      %v1841 = vpop.f32.mrb[0].mxu0
      %v1842 = vadd.f32 %v1801, %v1841
      %v1843 = vpop.f32.mrb[0].mxu0
      %1844 = vdwg.mxu0
      %1845 = vmatprep.subr.bf16.mxu0 0
      %1846 = vmatpush1.bf16.msra.mxu0 %v1610
      %1847 = vmatprep.subr.bf16.mxu0 0
      %1848 = vmatpush1.bf16.msra.mxu0 %v1611
      %1849 = vmatprep.subr.bf16.mxu0 0
      %1850 = vmatpush1.bf16.msra.mxu0 %v1612
      %1851 = vmatprep.subr.bf16.mxu0 0
      %1852 = vmatpush1.bf16.msra.mxu0 %v1613
      %1853 = vmatprep.subr.bf16.mxu0 0
      %1854 = vmatpush1.bf16.msra.mxu0 %v1614
      %1855 = vmatprep.subr.bf16.mxu0 0
      %1856 = vmatpush1.bf16.msra.mxu0 %v1615
      %1857 = vmatprep.subr.bf16.mxu0 0
      %1858 = vmatpush1.bf16.msra.mxu0 %v1616
      %1859 = vmatprep.subr.bf16.mxu0 0
      %1860 = vmatpush1.bf16.msra.mxu0 %v1617
      %1861 = vmatprep.subr.bf16.mxu0 0
      %1862 = vmatpush1.bf16.msra.mxu0 %v1618
      %1863 = vmatprep.subr.bf16.mxu0 0
      %1864 = vmatpush1.bf16.msra.mxu0 %v1619
      %1865 = vmatprep.subr.bf16.mxu0 0
      %1866 = vmatpush1.bf16.msra.mxu0 %v1620
      %1867 = vmatprep.subr.bf16.mxu0 0
      %1868 = vmatpush1.bf16.msra.mxu0 %v1621
      %1869 = vmatprep.subr.bf16.mxu0 0
      %1870 = vmatpush1.bf16.msra.mxu0 %v1622
      %1871 = vmatprep.subr.bf16.mxu0 0
      %1872 = vmatpush1.bf16.msra.mxu0 %v1623
      %1873 = vmatprep.subr.bf16.mxu0 0
      %1874 = vmatpush1.bf16.msra.mxu0 %v1624
      %1875 = vmatprep.subr.bf16.mxu0 0
      %1876 = vmatpush1.bf16.msra.mxu0 %v1625
      %1877 = vmatprep.mubr.bf16.mxu0 %v375
      %1878 = vmatmul.mubr.bf16.gmra.mrb[0].mxu0 %v374
      %v1879 = vpop.f32.mrb[0].mxu0
      %v1880 = vadd.f32 %v1839, %v1879
      %v1881 = vpop.f32.mrb[0].mxu0
      %v1882 = vpop.f32.mrb[0].mxu0
      %v1883 = vadd.f32 %v1842, %v1882
      %v1884 = vpop.f32.mrb[0].mxu0
      %1885 = vdwg.mxu0
      %1886 = vmatprep.subr.bf16.mxu0 0
      %1887 = vmatpush1.bf16.msra.mxu0 %v1626
      %1888 = vmatprep.subr.bf16.mxu0 0
      %1889 = vmatpush1.bf16.msra.mxu0 %v1627
      %1890 = vmatprep.subr.bf16.mxu0 0
      %1891 = vmatpush1.bf16.msra.mxu0 %v1628
      %1892 = vmatprep.subr.bf16.mxu0 0
      %1893 = vmatpush1.bf16.msra.mxu0 %v1629
      %1894 = vmatprep.subr.bf16.mxu0 0
      %1895 = vmatpush1.bf16.msra.mxu0 %v1630
      %1896 = vmatprep.subr.bf16.mxu0 0
      %1897 = vmatpush1.bf16.msra.mxu0 %v1631
      %1898 = vmatprep.subr.bf16.mxu0 0
      %1899 = vmatpush1.bf16.msra.mxu0 %v1632
      %1900 = vmatprep.subr.bf16.mxu0 0
      %1901 = vmatpush1.bf16.msra.mxu0 %v1633
      %1902 = vmatprep.subr.bf16.mxu0 0
      %1903 = vmatpush1.bf16.msra.mxu0 %v1634
      %1904 = vmatprep.subr.bf16.mxu0 0
      %1905 = vmatpush1.bf16.msra.mxu0 %v1635
      %1906 = vmatprep.subr.bf16.mxu0 0
      %1907 = vmatpush1.bf16.msra.mxu0 %v1636
      %1908 = vmatprep.subr.bf16.mxu0 0
      %1909 = vmatpush1.bf16.msra.mxu0 %v1637
      %1910 = vmatprep.subr.bf16.mxu0 0
      %1911 = vmatpush1.bf16.msra.mxu0 %v1638
      %1912 = vmatprep.subr.bf16.mxu0 0
      %1913 = vmatpush1.bf16.msra.mxu0 %v1639
      %1914 = vmatprep.subr.bf16.mxu0 0
      %1915 = vmatpush1.bf16.msra.mxu0 %v1640
      %1916 = vmatprep.subr.bf16.mxu0 0
      %1917 = vmatpush1.bf16.msra.mxu0 %v1641
      %1918 = vmatprep.mubr.bf16.mxu0 %v377
      %1919 = vmatmul.mubr.bf16.gmra.mrb[0].mxu0 %v376
      %v1920 = vpop.f32.mrb[0].mxu0
      %v1921 = vadd.f32 %v1880, %v1920
      %v1922 = vpop.f32.mrb[0].mxu0
      %v1923 = vpop.f32.mrb[0].mxu0
      %v1924 = vadd.f32 %v1883, %v1923
      %v1925 = vpop.f32.mrb[0].mxu0
      %1926 = vdwg.mxu0
      %s1927 = scalar_lea.vmem %s152, 16
      %1928 = vst.msk [vmem:[%s1927] sm:$0xff] %vm1073, %v1921
      %1929 = vst.msk [vmem:[%s1927 + $0x8] sm:$0xff] %vm1073, %v1924
      %s1930 = sadd.s32 %s166, 2
      %s1931 = smul.u32 %s1930, 80
      %s1932 = sshra.s32 %s1931, 3
      %s1933 = sand.u32 %s1931, 7
      %s1934 = smul.addr %s1932, 4
      %s1935 = scalar_lea.vmem %s0, %s1934
      %v1936 = vld [vmem:[%s1935] sm:$0xf]
      %v1937 = vld [vmem:[%s1935 + $0x4] sm:$0xf]
      %v1938 = vld [vmem:[%s1935 + $0x8] sm:$0xf]
      %v1939 = vld [vmem:[%s1935 + $0xc] sm:$0xf]
      %v1940 = vld [vmem:[%s1935 + $0x10] sm:$0xf]
      %v1941 = vld [vmem:[%s1935 + $0x14] sm:$0xf]
      %v1942 = vld [vmem:[%s1935 + $0x18] sm:$0xf]
      %v1943 = vld [vmem:[%s1935 + $0x1c] sm:$0xf]
      %v1944 = vld [vmem:[%s1935 + $0x20] sm:$0xf]
      %v1945 = vld [vmem:[%s1935 + $0x24] sm:$0xf]
      %v1946 = vld [vmem:[%s1935 + $0x28] sm:$0xf]
      %v1947 = vld [vmem:[%s1935 + $0x2c] sm:$0xf]
      %v1948 = vld [vmem:[%s1935 + $0x30] sm:$0xf]
      %v1949 = vld [vmem:[%s1935 + $0x34] sm:$0xf]
      %v1950 = vld [vmem:[%s1935 + $0x38] sm:$0xf]
      %v1951 = vld [vmem:[%s1935 + $0x3c] sm:$0xf]
      %v1952 = vld [vmem:[%s1935 + $0x40] sm:$0xf]
      %v1953 = vld [vmem:[%s1935 + $0x44] sm:$0xf]
      %v1954 = vld [vmem:[%s1935 + $0x48] sm:$0xf]
      %v1955 = vld [vmem:[%s1935 + $0x4c] sm:$0xf]
      %v1956 = vld [vmem:[%s1935 + $0x50] sm:$0xf]
      %v1957 = vld [vmem:[%s1935 + $0x54] sm:$0xf]
      %v1958 = vld [vmem:[%s1935 + $0x58] sm:$0xf]
      %v1959 = vld [vmem:[%s1935 + $0x5c] sm:$0xf]
      %v1960 = vld [vmem:[%s1935 + $0x60] sm:$0xf]
      %v1961 = vld [vmem:[%s1935 + $0x64] sm:$0xf]
      %v1962 = vld [vmem:[%s1935 + $0x68] sm:$0xf]
      %v1963 = vld [vmem:[%s1935 + $0x6c] sm:$0xf]
      %v1964 = vld [vmem:[%s1935 + $0x70] sm:$0xf]
      %v1965 = vld [vmem:[%s1935 + $0x74] sm:$0xf]
      %v1966 = vld [vmem:[%s1935 + $0x78] sm:$0xf]
      %v1967 = vld [vmem:[%s1935 + $0x7c] sm:$0xf]
      %v1968 = vld [vmem:[%s1935 + $0x80] sm:$0xf]
      %v1969 = vld [vmem:[%s1935 + $0x84] sm:$0xf]
      %v1970 = vld [vmem:[%s1935 + $0x88] sm:$0xf]
      %v1971 = vld [vmem:[%s1935 + $0x8c] sm:$0xf]
      %v1972 = vld [vmem:[%s1935 + $0x90] sm:$0xf]
      %v1973 = vld [vmem:[%s1935 + $0x94] sm:$0xf]
      %v1974 = vld [vmem:[%s1935 + $0x98] sm:$0xf]
      %v1975 = vld [vmem:[%s1935 + $0x9c] sm:$0xf]
      %v1976 = vld [vmem:[%s1935 + $0xa0] sm:$0xf]
      %v1977 = vld [vmem:[%s1935 + $0xa4] sm:$0xf]
      %v1978 = vld [vmem:[%s1935 + $0xa8] sm:$0xf]
      %v1979 = vld [vmem:[%s1935 + $0xac] sm:$0xf]
      %v1980 = vld [vmem:[%s1935 + $0xb0] sm:$0xf]
      %v1981 = vld [vmem:[%s1935 + $0xb4] sm:$0xf]
      %v1982 = vld [vmem:[%s1935 + $0xb8] sm:$0xf]
      %v1983 = vld [vmem:[%s1935 + $0xbc] sm:$0xf]
      %v1984 = vld [vmem:[%s1935 + $0xc0] sm:$0xf]
      %v1985 = vld [vmem:[%s1935 + $0xc4] sm:$0xf]
      %v1986 = vld [vmem:[%s1935 + $0xc8] sm:$0xf]
      %v1987 = vld [vmem:[%s1935 + $0xcc] sm:$0xf]
      %v1988 = vld [vmem:[%s1935 + $0xd0] sm:$0xf]
      %v1989 = vld [vmem:[%s1935 + $0xd4] sm:$0xf]
      %v1990 = vld [vmem:[%s1935 + $0xd8] sm:$0xf]
      %v1991 = vld [vmem:[%s1935 + $0xdc] sm:$0xf]
      %v1992 = vld [vmem:[%s1935 + $0xe0] sm:$0xf]
      %v1993 = vld [vmem:[%s1935 + $0xe4] sm:$0xf]
      %v1994 = vld [vmem:[%s1935 + $0xe8] sm:$0xf]
      %v1995 = vld [vmem:[%s1935 + $0xec] sm:$0xf]
      %v1996 = vld [vmem:[%s1935 + $0xf0] sm:$0xf]
      %v1997 = vld [vmem:[%s1935 + $0xf4] sm:$0xf]
      %v1998 = vld [vmem:[%s1935 + $0xf8] sm:$0xf]
      %v1999 = vld [vmem:[%s1935 + $0xfc] sm:$0xf]
      %v2000 = vld [vmem:[%s1935 + $0x100] sm:$0xf]
      %v2001 = vld [vmem:[%s1935 + $0x104] sm:$0xf]
      %v2002 = vld [vmem:[%s1935 + $0x108] sm:$0xf]
      %v2003 = vld [vmem:[%s1935 + $0x10c] sm:$0xf]
      %v2004 = vld [vmem:[%s1935 + $0x110] sm:$0xf]
      %v2005 = vld [vmem:[%s1935 + $0x114] sm:$0xf]
      %v2006 = vld [vmem:[%s1935 + $0x118] sm:$0xf]
      %v2007 = vld [vmem:[%s1935 + $0x11c] sm:$0xf]
      %v2008 = vld [vmem:[%s1935 + $0x120] sm:$0xf]
      %v2009 = vld [vmem:[%s1935 + $0x124] sm:$0xf]
      %v2010 = vld [vmem:[%s1935 + $0x128] sm:$0xf]
      %v2011 = vld [vmem:[%s1935 + $0x12c] sm:$0xf]
      %v2012 = vld [vmem:[%s1935 + $0x130] sm:$0xf]
      %v2013 = vld [vmem:[%s1935 + $0x134] sm:$0xf]
      %v2014 = vld [vmem:[%s1935 + $0x138] sm:$0xf]
      %v2015 = vld [vmem:[%s1935 + $0x13c] sm:$0xf]
      %v2016 = vld [vmem:[%s1935 + $0x140] sm:$0xf]
      %v2017 = vld [vmem:[%s1935 + $0x144] sm:$0xf]
      %v2018 = vld [vmem:[%s1935 + $0x148] sm:$0xf]
      %v2019 = vld [vmem:[%s1935 + $0x14c] sm:$0xf]
      %v2020 = vld [vmem:[%s1935 + $0x150] sm:$0xf]
      %v2021 = vld [vmem:[%s1935 + $0x154] sm:$0xf]
      %v2022 = vld [vmem:[%s1935 + $0x158] sm:$0xf]
      %v2023 = vld [vmem:[%s1935 + $0x15c] sm:$0xf]
      %v2024 = vld [vmem:[%s1935 + $0x160] sm:$0xf]
      %v2025 = vld [vmem:[%s1935 + $0x164] sm:$0xf]
      %v2026 = vld [vmem:[%s1935 + $0x168] sm:$0xf]
      %v2027 = vld [vmem:[%s1935 + $0x16c] sm:$0xf]
      %v2028 = vld [vmem:[%s1935 + $0x170] sm:$0xf]
      %v2029 = vld [vmem:[%s1935 + $0x174] sm:$0xf]
      %v2030 = vld [vmem:[%s1935 + $0x178] sm:$0xf]
      %v2031 = vld [vmem:[%s1935 + $0x17c] sm:$0xf]
      %v2032 = vld [vmem:[%s1935 + $0x180] sm:$0xf]
      %v2033 = vld [vmem:[%s1935 + $0x184] sm:$0xf]
      %v2034 = vld [vmem:[%s1935 + $0x188] sm:$0xf]
      %v2035 = vld [vmem:[%s1935 + $0x18c] sm:$0xf]
      %v2036 = vld [vmem:[%s1935 + $0x190] sm:$0xf]
      %v2037 = vld [vmem:[%s1935 + $0x194] sm:$0xf]
      %v2038 = vld [vmem:[%s1935 + $0x198] sm:$0xf]
      %v2039 = vld [vmem:[%s1935 + $0x19c] sm:$0xf]
      %v2040 = vld [vmem:[%s1935 + $0x1a0] sm:$0xf]
      %v2041 = vld [vmem:[%s1935 + $0x1a4] sm:$0xf]
      %v2042 = vld [vmem:[%s1935 + $0x1a8] sm:$0xf]
      %v2043 = vld [vmem:[%s1935 + $0x1ac] sm:$0xf]
      %v2044 = vld [vmem:[%s1935 + $0x1b0] sm:$0xf]
      %v2045 = vld [vmem:[%s1935 + $0x1b4] sm:$0xf]
      %v2046 = vld [vmem:[%s1935 + $0x1b8] sm:$0xf]
      %v2047 = vld [vmem:[%s1935 + $0x1bc] sm:$0xf]
      %v2048 = vld [vmem:[%s1935 + $0x1c0] sm:$0xf]
      %v2049 = vld [vmem:[%s1935 + $0x1c4] sm:$0xf]
      %v2050 = vld [vmem:[%s1935 + $0x1c8] sm:$0xf]
      %v2051 = vld [vmem:[%s1935 + $0x1cc] sm:$0xf]
      %v2052 = vld [vmem:[%s1935 + $0x1d0] sm:$0xf]
      %v2053 = vld [vmem:[%s1935 + $0x1d4] sm:$0xf]
      %v2054 = vld [vmem:[%s1935 + $0x1d8] sm:$0xf]
      %v2055 = vld [vmem:[%s1935 + $0x1dc] sm:$0xf]
      %v2056 = vld [vmem:[%s1935 + $0x1e0] sm:$0xf]
      %v2057 = vld [vmem:[%s1935 + $0x1e4] sm:$0xf]
      %v2058 = vld [vmem:[%s1935 + $0x1e8] sm:$0xf]
      %v2059 = vld [vmem:[%s1935 + $0x1ec] sm:$0xf]
      %v2060 = vld [vmem:[%s1935 + $0x1f0] sm:$0xf]
      %v2061 = vld [vmem:[%s1935 + $0x1f4] sm:$0xf]
      %v2062 = vld [vmem:[%s1935 + $0x1f8] sm:$0xf]
      %v2063 = vld [vmem:[%s1935 + $0x1fc] sm:$0xf]
      %v2064 = vld [vmem:[%s1935 + $0x200] sm:$0xf]
      %v2065 = vld [vmem:[%s1935 + $0x204] sm:$0xf]
      %v2066 = vld [vmem:[%s1935 + $0x208] sm:$0xf]
      %v2067 = vld [vmem:[%s1935 + $0x20c] sm:$0xf]
      %v2068 = vld [vmem:[%s1935 + $0x210] sm:$0xf]
      %v2069 = vld [vmem:[%s1935 + $0x214] sm:$0xf]
      %v2070 = vld [vmem:[%s1935 + $0x218] sm:$0xf]
      %v2071 = vld [vmem:[%s1935 + $0x21c] sm:$0xf]
      %v2072 = vld [vmem:[%s1935 + $0x220] sm:$0xf]
      %v2073 = vld [vmem:[%s1935 + $0x224] sm:$0xf]
      %v2074 = vld [vmem:[%s1935 + $0x228] sm:$0xf]
      %v2075 = vld [vmem:[%s1935 + $0x22c] sm:$0xf]
      %v2076 = vld [vmem:[%s1935 + $0x230] sm:$0xf]
      %v2077 = vld [vmem:[%s1935 + $0x234] sm:$0xf]
      %v2078 = vld [vmem:[%s1935 + $0x238] sm:$0xf]
      %v2079 = vld [vmem:[%s1935 + $0x23c] sm:$0xf]
      %v2080 = vld [vmem:[%s1935 + $0x240] sm:$0xf]
      %v2081 = vld [vmem:[%s1935 + $0x244] sm:$0xf]
      %v2082 = vld [vmem:[%s1935 + $0x248] sm:$0xf]
      %v2083 = vld [vmem:[%s1935 + $0x24c] sm:$0xf]
      %v2084 = vld [vmem:[%s1935 + $0x250] sm:$0xf]
      %v2085 = vld [vmem:[%s1935 + $0x254] sm:$0xf]
      %v2086 = vld [vmem:[%s1935 + $0x258] sm:$0xf]
      %v2087 = vld [vmem:[%s1935 + $0x25c] sm:$0xf]
      %v2088 = vld [vmem:[%s1935 + $0x260] sm:$0xf]
      %v2089 = vld [vmem:[%s1935 + $0x264] sm:$0xf]
      %v2090 = vld [vmem:[%s1935 + $0x268] sm:$0xf]
      %v2091 = vld [vmem:[%s1935 + $0x26c] sm:$0xf]
      %v2092 = vld [vmem:[%s1935 + $0x270] sm:$0xf]
      %v2093 = vld [vmem:[%s1935 + $0x274] sm:$0xf]
      %v2094 = vld [vmem:[%s1935 + $0x278] sm:$0xf]
      %v2095 = vld [vmem:[%s1935 + $0x27c] sm:$0xf]
      %v2256 = vunpack.c.l.b16 %v1936
      %v2257 = vunpack.c.l.b16 %v1937
      %v2258 = vunpack.c.l.b16 %v1938
      %v2259 = vunpack.c.l.b16 %v1939
      %v2260 = vunpack.c.l.b16 %v1940
      %v2261 = vunpack.c.l.b16 %v1941
      %v2262 = vunpack.c.l.b16 %v1942
      %v2263 = vunpack.c.l.b16 %v1943
      %v2264 = vunpack.c.l.b16 %v1944
      %v2265 = vunpack.c.l.b16 %v1945
      %v2266 = vunpack.c.l.b16 %v1946
      %v2267 = vunpack.c.l.b16 %v1947
      %v2268 = vunpack.c.l.b16 %v1948
      %v2269 = vunpack.c.l.b16 %v1949
      %v2270 = vunpack.c.l.b16 %v1950
      %v2271 = vunpack.c.l.b16 %v1951
      %v2272 = vunpack.c.l.b16 %v1952
      %v2273 = vunpack.c.l.b16 %v1953
      %v2274 = vunpack.c.l.b16 %v1954
      %v2275 = vunpack.c.l.b16 %v1955
      %v2276 = vunpack.c.l.b16 %v1956
      %v2277 = vunpack.c.l.b16 %v1957
      %v2278 = vunpack.c.l.b16 %v1958
      %v2279 = vunpack.c.l.b16 %v1959
      %v2280 = vunpack.c.l.b16 %v1960
      %v2281 = vunpack.c.l.b16 %v1961
      %v2282 = vunpack.c.l.b16 %v1962
      %v2283 = vunpack.c.l.b16 %v1963
      %v2284 = vunpack.c.l.b16 %v1964
      %v2285 = vunpack.c.l.b16 %v1965
      %v2286 = vunpack.c.l.b16 %v1966
      %v2287 = vunpack.c.l.b16 %v1967
      %v2288 = vunpack.c.l.b16 %v1968
      %v2289 = vunpack.c.l.b16 %v1969
      %v2290 = vunpack.c.l.b16 %v1970
      %v2291 = vunpack.c.l.b16 %v1971
      %v2292 = vunpack.c.l.b16 %v1972
      %v2293 = vunpack.c.l.b16 %v1973
      %v2294 = vunpack.c.l.b16 %v1974
      %v2295 = vunpack.c.l.b16 %v1975
      %v2296 = vunpack.c.l.b16 %v1976
      %v2297 = vunpack.c.l.b16 %v1977
      %v2298 = vunpack.c.l.b16 %v1978
      %v2299 = vunpack.c.l.b16 %v1979
      %v2300 = vunpack.c.l.b16 %v1980
      %v2301 = vunpack.c.l.b16 %v1981
      %v2302 = vunpack.c.l.b16 %v1982
      %v2303 = vunpack.c.l.b16 %v1983
      %v2304 = vunpack.c.l.b16 %v1984
      %v2305 = vunpack.c.l.b16 %v1985
      %v2306 = vunpack.c.l.b16 %v1986
      %v2307 = vunpack.c.l.b16 %v1987
      %v2308 = vunpack.c.l.b16 %v1988
      %v2309 = vunpack.c.l.b16 %v1989
      %v2310 = vunpack.c.l.b16 %v1990
      %v2311 = vunpack.c.l.b16 %v1991
      %v2312 = vunpack.c.l.b16 %v1992
      %v2313 = vunpack.c.l.b16 %v1993
      %v2314 = vunpack.c.l.b16 %v1994
      %v2315 = vunpack.c.l.b16 %v1995
      %v2316 = vunpack.c.l.b16 %v1996
      %v2317 = vunpack.c.l.b16 %v1997
      %v2318 = vunpack.c.l.b16 %v1998
      %v2319 = vunpack.c.l.b16 %v1999
      %v2320 = vunpack.c.l.b16 %v2000
      %v2321 = vunpack.c.l.b16 %v2001
      %v2322 = vunpack.c.l.b16 %v2002
      %v2323 = vunpack.c.l.b16 %v2003
      %v2324 = vunpack.c.l.b16 %v2004
      %v2325 = vunpack.c.l.b16 %v2005
      %v2326 = vunpack.c.l.b16 %v2006
      %v2327 = vunpack.c.l.b16 %v2007
      %v2328 = vunpack.c.l.b16 %v2008
      %v2329 = vunpack.c.l.b16 %v2009
      %v2330 = vunpack.c.l.b16 %v2010
      %v2331 = vunpack.c.l.b16 %v2011
      %v2332 = vunpack.c.l.b16 %v2012
      %v2333 = vunpack.c.l.b16 %v2013
      %v2334 = vunpack.c.l.b16 %v2014
      %v2335 = vunpack.c.l.b16 %v2015
      %v2336 = vunpack.c.l.b16 %v2016
      %v2337 = vunpack.c.l.b16 %v2017
      %v2338 = vunpack.c.l.b16 %v2018
      %v2339 = vunpack.c.l.b16 %v2019
      %v2340 = vunpack.c.l.b16 %v2020
      %v2341 = vunpack.c.l.b16 %v2021
      %v2342 = vunpack.c.l.b16 %v2022
      %v2343 = vunpack.c.l.b16 %v2023
      %v2344 = vunpack.c.l.b16 %v2024
      %v2345 = vunpack.c.l.b16 %v2025
      %v2346 = vunpack.c.l.b16 %v2026
      %v2347 = vunpack.c.l.b16 %v2027
      %v2348 = vunpack.c.l.b16 %v2028
      %v2349 = vunpack.c.l.b16 %v2029
      %v2350 = vunpack.c.l.b16 %v2030
      %v2351 = vunpack.c.l.b16 %v2031
      %v2352 = vunpack.c.l.b16 %v2032
      %v2353 = vunpack.c.l.b16 %v2033
      %v2354 = vunpack.c.l.b16 %v2034
      %v2355 = vunpack.c.l.b16 %v2035
      %v2356 = vunpack.c.l.b16 %v2036
      %v2357 = vunpack.c.l.b16 %v2037
      %v2358 = vunpack.c.l.b16 %v2038
      %v2359 = vunpack.c.l.b16 %v2039
      %v2360 = vunpack.c.l.b16 %v2040
      %v2361 = vunpack.c.l.b16 %v2041
      %v2362 = vunpack.c.l.b16 %v2042
      %v2363 = vunpack.c.l.b16 %v2043
      %v2364 = vunpack.c.l.b16 %v2044
      %v2365 = vunpack.c.l.b16 %v2045
      %v2366 = vunpack.c.l.b16 %v2046
      %v2367 = vunpack.c.l.b16 %v2047
      %v2368 = vunpack.c.l.b16 %v2048
      %v2369 = vunpack.c.l.b16 %v2049
      %v2370 = vunpack.c.l.b16 %v2050
      %v2371 = vunpack.c.l.b16 %v2051
      %v2372 = vunpack.c.l.b16 %v2052
      %v2373 = vunpack.c.l.b16 %v2053
      %v2374 = vunpack.c.l.b16 %v2054
      %v2375 = vunpack.c.l.b16 %v2055
      %v2376 = vunpack.c.l.b16 %v2056
      %v2377 = vunpack.c.l.b16 %v2057
      %v2378 = vunpack.c.l.b16 %v2058
      %v2379 = vunpack.c.l.b16 %v2059
      %v2380 = vunpack.c.l.b16 %v2060
      %v2381 = vunpack.c.l.b16 %v2061
      %v2382 = vunpack.c.l.b16 %v2062
      %v2383 = vunpack.c.l.b16 %v2063
      %v2384 = vunpack.c.l.b16 %v2064
      %v2385 = vunpack.c.l.b16 %v2065
      %v2386 = vunpack.c.l.b16 %v2066
      %v2387 = vunpack.c.l.b16 %v2067
      %v2388 = vunpack.c.l.b16 %v2068
      %v2389 = vunpack.c.l.b16 %v2069
      %v2390 = vunpack.c.l.b16 %v2070
      %v2391 = vunpack.c.l.b16 %v2071
      %v2392 = vunpack.c.l.b16 %v2072
      %v2393 = vunpack.c.l.b16 %v2073
      %v2394 = vunpack.c.l.b16 %v2074
      %v2395 = vunpack.c.l.b16 %v2075
      %v2396 = vunpack.c.l.b16 %v2076
      %v2397 = vunpack.c.l.b16 %v2077
      %v2398 = vunpack.c.l.b16 %v2078
      %v2399 = vunpack.c.l.b16 %v2079
      %v2400 = vunpack.c.l.b16 %v2080
      %v2401 = vunpack.c.l.b16 %v2081
      %v2402 = vunpack.c.l.b16 %v2082
      %v2403 = vunpack.c.l.b16 %v2083
      %v2404 = vunpack.c.l.b16 %v2084
      %v2405 = vunpack.c.l.b16 %v2085
      %v2406 = vunpack.c.l.b16 %v2086
      %v2407 = vunpack.c.l.b16 %v2087
      %v2408 = vunpack.c.l.b16 %v2088
      %v2409 = vunpack.c.l.b16 %v2089
      %v2410 = vunpack.c.l.b16 %v2090
      %v2411 = vunpack.c.l.b16 %v2091
      %v2412 = vunpack.c.l.b16 %v2092
      %v2413 = vunpack.c.l.b16 %v2093
      %v2414 = vunpack.c.l.b16 %v2094
      %v2415 = vunpack.c.l.b16 %v2095
      %v2416 = vpack.c.b16 %v2257, %v2256
      %v2417 = vpack.c.b16 %v2259, %v2258
      %v2418 = vpack.c.b16 %v2261, %v2260
      %v2419 = vpack.c.b16 %v2263, %v2262
      %v2420 = vpack.c.b16 %v2265, %v2264
      %v2421 = vpack.c.b16 %v2267, %v2266
      %v2422 = vpack.c.b16 %v2269, %v2268
      %v2423 = vpack.c.b16 %v2271, %v2270
      %v2424 = vpack.c.b16 %v2273, %v2272
      %v2425 = vpack.c.b16 %v2275, %v2274
      %v2426 = vpack.c.b16 %v2277, %v2276
      %v2427 = vpack.c.b16 %v2279, %v2278
      %v2428 = vpack.c.b16 %v2281, %v2280
      %v2429 = vpack.c.b16 %v2283, %v2282
      %v2430 = vpack.c.b16 %v2285, %v2284
      %v2431 = vpack.c.b16 %v2287, %v2286
      %v2432 = vpack.c.b16 %v2289, %v2288
      %v2433 = vpack.c.b16 %v2291, %v2290
      %v2434 = vpack.c.b16 %v2293, %v2292
      %v2435 = vpack.c.b16 %v2295, %v2294
      %v2436 = vpack.c.b16 %v2297, %v2296
      %v2437 = vpack.c.b16 %v2299, %v2298
      %v2438 = vpack.c.b16 %v2301, %v2300
      %v2439 = vpack.c.b16 %v2303, %v2302
      %v2440 = vpack.c.b16 %v2305, %v2304
      %v2441 = vpack.c.b16 %v2307, %v2306
      %v2442 = vpack.c.b16 %v2309, %v2308
      %v2443 = vpack.c.b16 %v2311, %v2310
      %v2444 = vpack.c.b16 %v2313, %v2312
      %v2445 = vpack.c.b16 %v2315, %v2314
      %v2446 = vpack.c.b16 %v2317, %v2316
      %v2447 = vpack.c.b16 %v2319, %v2318
      %v2448 = vpack.c.b16 %v2321, %v2320
      %v2449 = vpack.c.b16 %v2323, %v2322
      %v2450 = vpack.c.b16 %v2325, %v2324
      %v2451 = vpack.c.b16 %v2327, %v2326
      %v2452 = vpack.c.b16 %v2329, %v2328
      %v2453 = vpack.c.b16 %v2331, %v2330
      %v2454 = vpack.c.b16 %v2333, %v2332
      %v2455 = vpack.c.b16 %v2335, %v2334
      %v2456 = vpack.c.b16 %v2337, %v2336
      %v2457 = vpack.c.b16 %v2339, %v2338
      %v2458 = vpack.c.b16 %v2341, %v2340
      %v2459 = vpack.c.b16 %v2343, %v2342
      %v2460 = vpack.c.b16 %v2345, %v2344
      %v2461 = vpack.c.b16 %v2347, %v2346
      %v2462 = vpack.c.b16 %v2349, %v2348
      %v2463 = vpack.c.b16 %v2351, %v2350
      %v2464 = vpack.c.b16 %v2353, %v2352
      %v2465 = vpack.c.b16 %v2355, %v2354
      %v2466 = vpack.c.b16 %v2357, %v2356
      %v2467 = vpack.c.b16 %v2359, %v2358
      %v2468 = vpack.c.b16 %v2361, %v2360
      %v2469 = vpack.c.b16 %v2363, %v2362
      %v2470 = vpack.c.b16 %v2365, %v2364
      %v2471 = vpack.c.b16 %v2367, %v2366
      %v2472 = vpack.c.b16 %v2369, %v2368
      %v2473 = vpack.c.b16 %v2371, %v2370
      %v2474 = vpack.c.b16 %v2373, %v2372
      %v2475 = vpack.c.b16 %v2375, %v2374
      %v2476 = vpack.c.b16 %v2377, %v2376
      %v2477 = vpack.c.b16 %v2379, %v2378
      %v2478 = vpack.c.b16 %v2381, %v2380
      %v2479 = vpack.c.b16 %v2383, %v2382
      %v2480 = vpack.c.b16 %v2385, %v2384
      %v2481 = vpack.c.b16 %v2387, %v2386
      %v2482 = vpack.c.b16 %v2389, %v2388
      %v2483 = vpack.c.b16 %v2391, %v2390
      %v2484 = vpack.c.b16 %v2393, %v2392
      %v2485 = vpack.c.b16 %v2395, %v2394
      %v2486 = vpack.c.b16 %v2397, %v2396
      %v2487 = vpack.c.b16 %v2399, %v2398
      %v2488 = vpack.c.b16 %v2401, %v2400
      %v2489 = vpack.c.b16 %v2403, %v2402
      %v2490 = vpack.c.b16 %v2405, %v2404
      %v2491 = vpack.c.b16 %v2407, %v2406
      %v2492 = vpack.c.b16 %v2409, %v2408
      %v2493 = vpack.c.b16 %v2411, %v2410
      %v2494 = vpack.c.b16 %v2413, %v2412
      %v2495 = vpack.c.b16 %v2415, %v2414
      %2576 = vmatprep.subr.bf16.mxu0 0
      %2577 = vmatpush1.bf16.msra.mxu0 %v2416
      %2578 = vmatprep.subr.bf16.mxu0 0
      %2579 = vmatpush1.bf16.msra.mxu0 %v2417
      %2580 = vmatprep.subr.bf16.mxu0 0
      %2581 = vmatpush1.bf16.msra.mxu0 %v2418
      %2582 = vmatprep.subr.bf16.mxu0 0
      %2583 = vmatpush1.bf16.msra.mxu0 %v2419
      %2584 = vmatprep.subr.bf16.mxu0 0
      %2585 = vmatpush1.bf16.msra.mxu0 %v2420
      %2586 = vmatprep.subr.bf16.mxu0 0
      %2587 = vmatpush1.bf16.msra.mxu0 %v2421
      %2588 = vmatprep.subr.bf16.mxu0 0
      %2589 = vmatpush1.bf16.msra.mxu0 %v2422
      %2590 = vmatprep.subr.bf16.mxu0 0
      %2591 = vmatpush1.bf16.msra.mxu0 %v2423
      %2592 = vmatprep.subr.bf16.mxu0 0
      %2593 = vmatpush1.bf16.msra.mxu0 %v2424
      %2594 = vmatprep.subr.bf16.mxu0 0
      %2595 = vmatpush1.bf16.msra.mxu0 %v2425
      %2596 = vmatprep.subr.bf16.mxu0 0
      %2597 = vmatpush1.bf16.msra.mxu0 %v2426
      %2598 = vmatprep.subr.bf16.mxu0 0
      %2599 = vmatpush1.bf16.msra.mxu0 %v2427
      %2600 = vmatprep.subr.bf16.mxu0 0
      %2601 = vmatpush1.bf16.msra.mxu0 %v2428
      %2602 = vmatprep.subr.bf16.mxu0 0
      %2603 = vmatpush1.bf16.msra.mxu0 %v2429
      %2604 = vmatprep.subr.bf16.mxu0 0
      %2605 = vmatpush1.bf16.msra.mxu0 %v2430
      %2606 = vmatprep.subr.bf16.mxu0 0
      %2607 = vmatpush1.bf16.msra.mxu0 %v2431
      %2608 = vmatprep.mubr.bf16.mxu0 %v369
      %2609 = vmatmul.mubr.bf16.gmra.mrb[0].mxu0 %v368
      %v2610 = vpop.f32.mrb[0].mxu0
      %v2611 = vadd.f32 %v336, %v2610
      %v2612 = vpop.f32.mrb[0].mxu0
      %v2613 = vpop.f32.mrb[0].mxu0
      %v2614 = vadd.f32 %v336, %v2613
      %v2615 = vpop.f32.mrb[0].mxu0
      %2616 = vdwg.mxu0
      %2617 = vmatprep.subr.bf16.mxu0 0
      %2618 = vmatpush1.bf16.msra.mxu0 %v2432
      %2619 = vmatprep.subr.bf16.mxu0 0
      %2620 = vmatpush1.bf16.msra.mxu0 %v2433
      %2621 = vmatprep.subr.bf16.mxu0 0
      %2622 = vmatpush1.bf16.msra.mxu0 %v2434
      %2623 = vmatprep.subr.bf16.mxu0 0
      %2624 = vmatpush1.bf16.msra.mxu0 %v2435
      %2625 = vmatprep.subr.bf16.mxu0 0
      %2626 = vmatpush1.bf16.msra.mxu0 %v2436
      %2627 = vmatprep.subr.bf16.mxu0 0
      %2628 = vmatpush1.bf16.msra.mxu0 %v2437
      %2629 = vmatprep.subr.bf16.mxu0 0
      %2630 = vmatpush1.bf16.msra.mxu0 %v2438
      %2631 = vmatprep.subr.bf16.mxu0 0
      %2632 = vmatpush1.bf16.msra.mxu0 %v2439
      %2633 = vmatprep.subr.bf16.mxu0 0
      %2634 = vmatpush1.bf16.msra.mxu0 %v2440
      %2635 = vmatprep.subr.bf16.mxu0 0
      %2636 = vmatpush1.bf16.msra.mxu0 %v2441
      %2637 = vmatprep.subr.bf16.mxu0 0
      %2638 = vmatpush1.bf16.msra.mxu0 %v2442
      %2639 = vmatprep.subr.bf16.mxu0 0
      %2640 = vmatpush1.bf16.msra.mxu0 %v2443
      %2641 = vmatprep.subr.bf16.mxu0 0
      %2642 = vmatpush1.bf16.msra.mxu0 %v2444
      %2643 = vmatprep.subr.bf16.mxu0 0
      %2644 = vmatpush1.bf16.msra.mxu0 %v2445
      %2645 = vmatprep.subr.bf16.mxu0 0
      %2646 = vmatpush1.bf16.msra.mxu0 %v2446
      %2647 = vmatprep.subr.bf16.mxu0 0
      %2648 = vmatpush1.bf16.msra.mxu0 %v2447
      %2649 = vmatprep.mubr.bf16.mxu0 %v371
      %2650 = vmatmul.mubr.bf16.gmra.mrb[0].mxu0 %v370
      %v2651 = vpop.f32.mrb[0].mxu0
      %v2652 = vadd.f32 %v2611, %v2651
      %v2653 = vpop.f32.mrb[0].mxu0
      %v2654 = vpop.f32.mrb[0].mxu0
      %v2655 = vadd.f32 %v2614, %v2654
      %v2656 = vpop.f32.mrb[0].mxu0
      %2657 = vdwg.mxu0
      %2658 = vmatprep.subr.bf16.mxu0 0
      %2659 = vmatpush1.bf16.msra.mxu0 %v2448
      %2660 = vmatprep.subr.bf16.mxu0 0
      %2661 = vmatpush1.bf16.msra.mxu0 %v2449
      %2662 = vmatprep.subr.bf16.mxu0 0
      %2663 = vmatpush1.bf16.msra.mxu0 %v2450
      %2664 = vmatprep.subr.bf16.mxu0 0
      %2665 = vmatpush1.bf16.msra.mxu0 %v2451
      %2666 = vmatprep.subr.bf16.mxu0 0
      %2667 = vmatpush1.bf16.msra.mxu0 %v2452
      %2668 = vmatprep.subr.bf16.mxu0 0
      %2669 = vmatpush1.bf16.msra.mxu0 %v2453
      %2670 = vmatprep.subr.bf16.mxu0 0
      %2671 = vmatpush1.bf16.msra.mxu0 %v2454
      %2672 = vmatprep.subr.bf16.mxu0 0
      %2673 = vmatpush1.bf16.msra.mxu0 %v2455
      %2674 = vmatprep.subr.bf16.mxu0 0
      %2675 = vmatpush1.bf16.msra.mxu0 %v2456
      %2676 = vmatprep.subr.bf16.mxu0 0
      %2677 = vmatpush1.bf16.msra.mxu0 %v2457
      %2678 = vmatprep.subr.bf16.mxu0 0
      %2679 = vmatpush1.bf16.msra.mxu0 %v2458
      %2680 = vmatprep.subr.bf16.mxu0 0
      %2681 = vmatpush1.bf16.msra.mxu0 %v2459
      %2682 = vmatprep.subr.bf16.mxu0 0
      %2683 = vmatpush1.bf16.msra.mxu0 %v2460
      %2684 = vmatprep.subr.bf16.mxu0 0
      %2685 = vmatpush1.bf16.msra.mxu0 %v2461
      %2686 = vmatprep.subr.bf16.mxu0 0
      %2687 = vmatpush1.bf16.msra.mxu0 %v2462
      %2688 = vmatprep.subr.bf16.mxu0 0
      %2689 = vmatpush1.bf16.msra.mxu0 %v2463
      %2690 = vmatprep.mubr.bf16.mxu0 %v373
      %2691 = vmatmul.mubr.bf16.gmra.mrb[0].mxu0 %v372
      %v2692 = vpop.f32.mrb[0].mxu0
      %v2693 = vadd.f32 %v2652, %v2692
      %v2694 = vpop.f32.mrb[0].mxu0
      %v2695 = vpop.f32.mrb[0].mxu0
      %v2696 = vadd.f32 %v2655, %v2695
      %v2697 = vpop.f32.mrb[0].mxu0
      %2698 = vdwg.mxu0
      %2699 = vmatprep.subr.bf16.mxu0 0
      %2700 = vmatpush1.bf16.msra.mxu0 %v2464
      %2701 = vmatprep.subr.bf16.mxu0 0
      %2702 = vmatpush1.bf16.msra.mxu0 %v2465
      %2703 = vmatprep.subr.bf16.mxu0 0
      %2704 = vmatpush1.bf16.msra.mxu0 %v2466
      %2705 = vmatprep.subr.bf16.mxu0 0
      %2706 = vmatpush1.bf16.msra.mxu0 %v2467
      %2707 = vmatprep.subr.bf16.mxu0 0
      %2708 = vmatpush1.bf16.msra.mxu0 %v2468
      %2709 = vmatprep.subr.bf16.mxu0 0
      %2710 = vmatpush1.bf16.msra.mxu0 %v2469
      %2711 = vmatprep.subr.bf16.mxu0 0
      %2712 = vmatpush1.bf16.msra.mxu0 %v2470
      %2713 = vmatprep.subr.bf16.mxu0 0
      %2714 = vmatpush1.bf16.msra.mxu0 %v2471
      %2715 = vmatprep.subr.bf16.mxu0 0
      %2716 = vmatpush1.bf16.msra.mxu0 %v2472
      %2717 = vmatprep.subr.bf16.mxu0 0
      %2718 = vmatpush1.bf16.msra.mxu0 %v2473
      %2719 = vmatprep.subr.bf16.mxu0 0
      %2720 = vmatpush1.bf16.msra.mxu0 %v2474
      %2721 = vmatprep.subr.bf16.mxu0 0
      %2722 = vmatpush1.bf16.msra.mxu0 %v2475
      %2723 = vmatprep.subr.bf16.mxu0 0
      %2724 = vmatpush1.bf16.msra.mxu0 %v2476
      %2725 = vmatprep.subr.bf16.mxu0 0
      %2726 = vmatpush1.bf16.msra.mxu0 %v2477
      %2727 = vmatprep.subr.bf16.mxu0 0
      %2728 = vmatpush1.bf16.msra.mxu0 %v2478
      %2729 = vmatprep.subr.bf16.mxu0 0
      %2730 = vmatpush1.bf16.msra.mxu0 %v2479
      %2731 = vmatprep.mubr.bf16.mxu0 %v375
      %2732 = vmatmul.mubr.bf16.gmra.mrb[0].mxu0 %v374
      %v2733 = vpop.f32.mrb[0].mxu0
      %v2734 = vadd.f32 %v2693, %v2733
      %v2735 = vpop.f32.mrb[0].mxu0
      %v2736 = vpop.f32.mrb[0].mxu0
      %v2737 = vadd.f32 %v2696, %v2736
      %v2738 = vpop.f32.mrb[0].mxu0
      %2739 = vdwg.mxu0
      %2740 = vmatprep.subr.bf16.mxu0 0
      %2741 = vmatpush1.bf16.msra.mxu0 %v2480
      %2742 = vmatprep.subr.bf16.mxu0 0
      %2743 = vmatpush1.bf16.msra.mxu0 %v2481
      %2744 = vmatprep.subr.bf16.mxu0 0
      %2745 = vmatpush1.bf16.msra.mxu0 %v2482
      %2746 = vmatprep.subr.bf16.mxu0 0
      %2747 = vmatpush1.bf16.msra.mxu0 %v2483
      %2748 = vmatprep.subr.bf16.mxu0 0
      %2749 = vmatpush1.bf16.msra.mxu0 %v2484
      %2750 = vmatprep.subr.bf16.mxu0 0
      %2751 = vmatpush1.bf16.msra.mxu0 %v2485
      %2752 = vmatprep.subr.bf16.mxu0 0
      %2753 = vmatpush1.bf16.msra.mxu0 %v2486
      %2754 = vmatprep.subr.bf16.mxu0 0
      %2755 = vmatpush1.bf16.msra.mxu0 %v2487
      %2756 = vmatprep.subr.bf16.mxu0 0
      %2757 = vmatpush1.bf16.msra.mxu0 %v2488
      %2758 = vmatprep.subr.bf16.mxu0 0
      %2759 = vmatpush1.bf16.msra.mxu0 %v2489
      %2760 = vmatprep.subr.bf16.mxu0 0
      %2761 = vmatpush1.bf16.msra.mxu0 %v2490
      %2762 = vmatprep.subr.bf16.mxu0 0
      %2763 = vmatpush1.bf16.msra.mxu0 %v2491
      %2764 = vmatprep.subr.bf16.mxu0 0
      %2765 = vmatpush1.bf16.msra.mxu0 %v2492
      %2766 = vmatprep.subr.bf16.mxu0 0
      %2767 = vmatpush1.bf16.msra.mxu0 %v2493
      %2768 = vmatprep.subr.bf16.mxu0 0
      %2769 = vmatpush1.bf16.msra.mxu0 %v2494
      %2770 = vmatprep.subr.bf16.mxu0 0
      %2771 = vmatpush1.bf16.msra.mxu0 %v2495
      %2772 = vmatprep.mubr.bf16.mxu0 %v377
      %2773 = vmatmul.mubr.bf16.gmra.mrb[0].mxu0 %v376
      %v2774 = vpop.f32.mrb[0].mxu0
      %v2775 = vadd.f32 %v2734, %v2774
      %v2776 = vpop.f32.mrb[0].mxu0
      %v2777 = vpop.f32.mrb[0].mxu0
      %v2778 = vadd.f32 %v2737, %v2777
      %v2779 = vpop.f32.mrb[0].mxu0
      %2780 = vdwg.mxu0
      %s2781 = scalar_lea.vmem %s152, 32
      %2782 = vst.msk [vmem:[%s2781] sm:$0xff] %vm1073, %v2775
      %2783 = vst.msk [vmem:[%s2781 + $0x8] sm:$0xff] %vm1073, %v2778
      %s2784 = sadd.s32 %s166, 3
      %s2785 = smul.u32 %s2784, 80
      %s2786 = sshra.s32 %s2785, 3
      %s2787 = sand.u32 %s2785, 7
      %s2788 = smul.addr %s2786, 4
      %s2789 = scalar_lea.vmem %s0, %s2788
      %v2790 = vld [vmem:[%s2789] sm:$0xf]
      %v2791 = vld [vmem:[%s2789 + $0x4] sm:$0xf]
      %v2792 = vld [vmem:[%s2789 + $0x8] sm:$0xf]
      %v2793 = vld [vmem:[%s2789 + $0xc] sm:$0xf]
      %v2794 = vld [vmem:[%s2789 + $0x10] sm:$0xf]
      %v2795 = vld [vmem:[%s2789 + $0x14] sm:$0xf]
      %v2796 = vld [vmem:[%s2789 + $0x18] sm:$0xf]
      %v2797 = vld [vmem:[%s2789 + $0x1c] sm:$0xf]
      %v2798 = vld [vmem:[%s2789 + $0x20] sm:$0xf]
      %v2799 = vld [vmem:[%s2789 + $0x24] sm:$0xf]
      %v2800 = vld [vmem:[%s2789 + $0x28] sm:$0xf]
      %v2801 = vld [vmem:[%s2789 + $0x2c] sm:$0xf]
      %v2802 = vld [vmem:[%s2789 + $0x30] sm:$0xf]
      %v2803 = vld [vmem:[%s2789 + $0x34] sm:$0xf]
      %v2804 = vld [vmem:[%s2789 + $0x38] sm:$0xf]
      %v2805 = vld [vmem:[%s2789 + $0x3c] sm:$0xf]
      %v2806 = vld [vmem:[%s2789 + $0x40] sm:$0xf]
      %v2807 = vld [vmem:[%s2789 + $0x44] sm:$0xf]
      %v2808 = vld [vmem:[%s2789 + $0x48] sm:$0xf]
      %v2809 = vld [vmem:[%s2789 + $0x4c] sm:$0xf]
      %v2810 = vld [vmem:[%s2789 + $0x50] sm:$0xf]
      %v2811 = vld [vmem:[%s2789 + $0x54] sm:$0xf]
      %v2812 = vld [vmem:[%s2789 + $0x58] sm:$0xf]
      %v2813 = vld [vmem:[%s2789 + $0x5c] sm:$0xf]
      %v2814 = vld [vmem:[%s2789 + $0x60] sm:$0xf]
      %v2815 = vld [vmem:[%s2789 + $0x64] sm:$0xf]
      %v2816 = vld [vmem:[%s2789 + $0x68] sm:$0xf]
      %v2817 = vld [vmem:[%s2789 + $0x6c] sm:$0xf]
      %v2818 = vld [vmem:[%s2789 + $0x70] sm:$0xf]
      %v2819 = vld [vmem:[%s2789 + $0x74] sm:$0xf]
      %v2820 = vld [vmem:[%s2789 + $0x78] sm:$0xf]
      %v2821 = vld [vmem:[%s2789 + $0x7c] sm:$0xf]
      %v2822 = vld [vmem:[%s2789 + $0x80] sm:$0xf]
      %v2823 = vld [vmem:[%s2789 + $0x84] sm:$0xf]
      %v2824 = vld [vmem:[%s2789 + $0x88] sm:$0xf]
      %v2825 = vld [vmem:[%s2789 + $0x8c] sm:$0xf]
      %v2826 = vld [vmem:[%s2789 + $0x90] sm:$0xf]
      %v2827 = vld [vmem:[%s2789 + $0x94] sm:$0xf]
      %v2828 = vld [vmem:[%s2789 + $0x98] sm:$0xf]
      %v2829 = vld [vmem:[%s2789 + $0x9c] sm:$0xf]
      %v2830 = vld [vmem:[%s2789 + $0xa0] sm:$0xf]
      %v2831 = vld [vmem:[%s2789 + $0xa4] sm:$0xf]
      %v2832 = vld [vmem:[%s2789 + $0xa8] sm:$0xf]
      %v2833 = vld [vmem:[%s2789 + $0xac] sm:$0xf]
      %v2834 = vld [vmem:[%s2789 + $0xb0] sm:$0xf]
      %v2835 = vld [vmem:[%s2789 + $0xb4] sm:$0xf]
      %v2836 = vld [vmem:[%s2789 + $0xb8] sm:$0xf]
      %v2837 = vld [vmem:[%s2789 + $0xbc] sm:$0xf]
      %v2838 = vld [vmem:[%s2789 + $0xc0] sm:$0xf]
      %v2839 = vld [vmem:[%s2789 + $0xc4] sm:$0xf]
      %v2840 = vld [vmem:[%s2789 + $0xc8] sm:$0xf]
      %v2841 = vld [vmem:[%s2789 + $0xcc] sm:$0xf]
      %v2842 = vld [vmem:[%s2789 + $0xd0] sm:$0xf]
      %v2843 = vld [vmem:[%s2789 + $0xd4] sm:$0xf]
      %v2844 = vld [vmem:[%s2789 + $0xd8] sm:$0xf]
      %v2845 = vld [vmem:[%s2789 + $0xdc] sm:$0xf]
      %v2846 = vld [vmem:[%s2789 + $0xe0] sm:$0xf]
      %v2847 = vld [vmem:[%s2789 + $0xe4] sm:$0xf]
      %v2848 = vld [vmem:[%s2789 + $0xe8] sm:$0xf]
      %v2849 = vld [vmem:[%s2789 + $0xec] sm:$0xf]
      %v2850 = vld [vmem:[%s2789 + $0xf0] sm:$0xf]
      %v2851 = vld [vmem:[%s2789 + $0xf4] sm:$0xf]
      %v2852 = vld [vmem:[%s2789 + $0xf8] sm:$0xf]
      %v2853 = vld [vmem:[%s2789 + $0xfc] sm:$0xf]
      %v2854 = vld [vmem:[%s2789 + $0x100] sm:$0xf]
      %v2855 = vld [vmem:[%s2789 + $0x104] sm:$0xf]
      %v2856 = vld [vmem:[%s2789 + $0x108] sm:$0xf]
      %v2857 = vld [vmem:[%s2789 + $0x10c] sm:$0xf]
      %v2858 = vld [vmem:[%s2789 + $0x110] sm:$0xf]
      %v2859 = vld [vmem:[%s2789 + $0x114] sm:$0xf]
      %v2860 = vld [vmem:[%s2789 + $0x118] sm:$0xf]
      %v2861 = vld [vmem:[%s2789 + $0x11c] sm:$0xf]
      %v2862 = vld [vmem:[%s2789 + $0x120] sm:$0xf]
      %v2863 = vld [vmem:[%s2789 + $0x124] sm:$0xf]
      %v2864 = vld [vmem:[%s2789 + $0x128] sm:$0xf]
      %v2865 = vld [vmem:[%s2789 + $0x12c] sm:$0xf]
      %v2866 = vld [vmem:[%s2789 + $0x130] sm:$0xf]
      %v2867 = vld [vmem:[%s2789 + $0x134] sm:$0xf]
      %v2868 = vld [vmem:[%s2789 + $0x138] sm:$0xf]
      %v2869 = vld [vmem:[%s2789 + $0x13c] sm:$0xf]
      %v2870 = vld [vmem:[%s2789 + $0x140] sm:$0xf]
      %v2871 = vld [vmem:[%s2789 + $0x144] sm:$0xf]
      %v2872 = vld [vmem:[%s2789 + $0x148] sm:$0xf]
      %v2873 = vld [vmem:[%s2789 + $0x14c] sm:$0xf]
      %v2874 = vld [vmem:[%s2789 + $0x150] sm:$0xf]
      %v2875 = vld [vmem:[%s2789 + $0x154] sm:$0xf]
      %v2876 = vld [vmem:[%s2789 + $0x158] sm:$0xf]
      %v2877 = vld [vmem:[%s2789 + $0x15c] sm:$0xf]
      %v2878 = vld [vmem:[%s2789 + $0x160] sm:$0xf]
      %v2879 = vld [vmem:[%s2789 + $0x164] sm:$0xf]
      %v2880 = vld [vmem:[%s2789 + $0x168] sm:$0xf]
      %v2881 = vld [vmem:[%s2789 + $0x16c] sm:$0xf]
      %v2882 = vld [vmem:[%s2789 + $0x170] sm:$0xf]
      %v2883 = vld [vmem:[%s2789 + $0x174] sm:$0xf]
      %v2884 = vld [vmem:[%s2789 + $0x178] sm:$0xf]
      %v2885 = vld [vmem:[%s2789 + $0x17c] sm:$0xf]
      %v2886 = vld [vmem:[%s2789 + $0x180] sm:$0xf]
      %v2887 = vld [vmem:[%s2789 + $0x184] sm:$0xf]
      %v2888 = vld [vmem:[%s2789 + $0x188] sm:$0xf]
      %v2889 = vld [vmem:[%s2789 + $0x18c] sm:$0xf]
      %v2890 = vld [vmem:[%s2789 + $0x190] sm:$0xf]
      %v2891 = vld [vmem:[%s2789 + $0x194] sm:$0xf]
      %v2892 = vld [vmem:[%s2789 + $0x198] sm:$0xf]
      %v2893 = vld [vmem:[%s2789 + $0x19c] sm:$0xf]
      %v2894 = vld [vmem:[%s2789 + $0x1a0] sm:$0xf]
      %v2895 = vld [vmem:[%s2789 + $0x1a4] sm:$0xf]
      %v2896 = vld [vmem:[%s2789 + $0x1a8] sm:$0xf]
      %v2897 = vld [vmem:[%s2789 + $0x1ac] sm:$0xf]
      %v2898 = vld [vmem:[%s2789 + $0x1b0] sm:$0xf]
      %v2899 = vld [vmem:[%s2789 + $0x1b4] sm:$0xf]
      %v2900 = vld [vmem:[%s2789 + $0x1b8] sm:$0xf]
      %v2901 = vld [vmem:[%s2789 + $0x1bc] sm:$0xf]
      %v2902 = vld [vmem:[%s2789 + $0x1c0] sm:$0xf]
      %v2903 = vld [vmem:[%s2789 + $0x1c4] sm:$0xf]
      %v2904 = vld [vmem:[%s2789 + $0x1c8] sm:$0xf]
      %v2905 = vld [vmem:[%s2789 + $0x1cc] sm:$0xf]
      %v2906 = vld [vmem:[%s2789 + $0x1d0] sm:$0xf]
      %v2907 = vld [vmem:[%s2789 + $0x1d4] sm:$0xf]
      %v2908 = vld [vmem:[%s2789 + $0x1d8] sm:$0xf]
      %v2909 = vld [vmem:[%s2789 + $0x1dc] sm:$0xf]
      %v2910 = vld [vmem:[%s2789 + $0x1e0] sm:$0xf]
      %v2911 = vld [vmem:[%s2789 + $0x1e4] sm:$0xf]
      %v2912 = vld [vmem:[%s2789 + $0x1e8] sm:$0xf]
      %v2913 = vld [vmem:[%s2789 + $0x1ec] sm:$0xf]
      %v2914 = vld [vmem:[%s2789 + $0x1f0] sm:$0xf]
      %v2915 = vld [vmem:[%s2789 + $0x1f4] sm:$0xf]
      %v2916 = vld [vmem:[%s2789 + $0x1f8] sm:$0xf]
      %v2917 = vld [vmem:[%s2789 + $0x1fc] sm:$0xf]
      %v2918 = vld [vmem:[%s2789 + $0x200] sm:$0xf]
      %v2919 = vld [vmem:[%s2789 + $0x204] sm:$0xf]
      %v2920 = vld [vmem:[%s2789 + $0x208] sm:$0xf]
      %v2921 = vld [vmem:[%s2789 + $0x20c] sm:$0xf]
      %v2922 = vld [vmem:[%s2789 + $0x210] sm:$0xf]
      %v2923 = vld [vmem:[%s2789 + $0x214] sm:$0xf]
      %v2924 = vld [vmem:[%s2789 + $0x218] sm:$0xf]
      %v2925 = vld [vmem:[%s2789 + $0x21c] sm:$0xf]
      %v2926 = vld [vmem:[%s2789 + $0x220] sm:$0xf]
      %v2927 = vld [vmem:[%s2789 + $0x224] sm:$0xf]
      %v2928 = vld [vmem:[%s2789 + $0x228] sm:$0xf]
      %v2929 = vld [vmem:[%s2789 + $0x22c] sm:$0xf]
      %v2930 = vld [vmem:[%s2789 + $0x230] sm:$0xf]
      %v2931 = vld [vmem:[%s2789 + $0x234] sm:$0xf]
      %v2932 = vld [vmem:[%s2789 + $0x238] sm:$0xf]
      %v2933 = vld [vmem:[%s2789 + $0x23c] sm:$0xf]
      %v2934 = vld [vmem:[%s2789 + $0x240] sm:$0xf]
      %v2935 = vld [vmem:[%s2789 + $0x244] sm:$0xf]
      %v2936 = vld [vmem:[%s2789 + $0x248] sm:$0xf]
      %v2937 = vld [vmem:[%s2789 + $0x24c] sm:$0xf]
      %v2938 = vld [vmem:[%s2789 + $0x250] sm:$0xf]
      %v2939 = vld [vmem:[%s2789 + $0x254] sm:$0xf]
      %v2940 = vld [vmem:[%s2789 + $0x258] sm:$0xf]
      %v2941 = vld [vmem:[%s2789 + $0x25c] sm:$0xf]
      %v2942 = vld [vmem:[%s2789 + $0x260] sm:$0xf]
      %v2943 = vld [vmem:[%s2789 + $0x264] sm:$0xf]
      %v2944 = vld [vmem:[%s2789 + $0x268] sm:$0xf]
      %v2945 = vld [vmem:[%s2789 + $0x26c] sm:$0xf]
      %v2946 = vld [vmem:[%s2789 + $0x270] sm:$0xf]
      %v2947 = vld [vmem:[%s2789 + $0x274] sm:$0xf]
      %v2948 = vld [vmem:[%s2789 + $0x278] sm:$0xf]
      %v2949 = vld [vmem:[%s2789 + $0x27c] sm:$0xf]
      %v3110 = vunpack.c.l.b16 %v2790
      %v3111 = vunpack.c.l.b16 %v2791
      %v3112 = vunpack.c.l.b16 %v2792
      %v3113 = vunpack.c.l.b16 %v2793
      %v3114 = vunpack.c.l.b16 %v2794
      %v3115 = vunpack.c.l.b16 %v2795
      %v3116 = vunpack.c.l.b16 %v2796
      %v3117 = vunpack.c.l.b16 %v2797
      %v3118 = vunpack.c.l.b16 %v2798
      %v3119 = vunpack.c.l.b16 %v2799
      %v3120 = vunpack.c.l.b16 %v2800
      %v3121 = vunpack.c.l.b16 %v2801
      %v3122 = vunpack.c.l.b16 %v2802
      %v3123 = vunpack.c.l.b16 %v2803
      %v3124 = vunpack.c.l.b16 %v2804
      %v3125 = vunpack.c.l.b16 %v2805
      %v3126 = vunpack.c.l.b16 %v2806
      %v3127 = vunpack.c.l.b16 %v2807
      %v3128 = vunpack.c.l.b16 %v2808
      %v3129 = vunpack.c.l.b16 %v2809
      %v3130 = vunpack.c.l.b16 %v2810
      %v3131 = vunpack.c.l.b16 %v2811
      %v3132 = vunpack.c.l.b16 %v2812
      %v3133 = vunpack.c.l.b16 %v2813
      %v3134 = vunpack.c.l.b16 %v2814
      %v3135 = vunpack.c.l.b16 %v2815
      %v3136 = vunpack.c.l.b16 %v2816
      %v3137 = vunpack.c.l.b16 %v2817
      %v3138 = vunpack.c.l.b16 %v2818
      %v3139 = vunpack.c.l.b16 %v2819
      %v3140 = vunpack.c.l.b16 %v2820
      %v3141 = vunpack.c.l.b16 %v2821
      %v3142 = vunpack.c.l.b16 %v2822
      %v3143 = vunpack.c.l.b16 %v2823
      %v3144 = vunpack.c.l.b16 %v2824
      %v3145 = vunpack.c.l.b16 %v2825
      %v3146 = vunpack.c.l.b16 %v2826
      %v3147 = vunpack.c.l.b16 %v2827
      %v3148 = vunpack.c.l.b16 %v2828
      %v3149 = vunpack.c.l.b16 %v2829
      %v3150 = vunpack.c.l.b16 %v2830
      %v3151 = vunpack.c.l.b16 %v2831
      %v3152 = vunpack.c.l.b16 %v2832
      %v3153 = vunpack.c.l.b16 %v2833
      %v3154 = vunpack.c.l.b16 %v2834
      %v3155 = vunpack.c.l.b16 %v2835
      %v3156 = vunpack.c.l.b16 %v2836
      %v3157 = vunpack.c.l.b16 %v2837
      %v3158 = vunpack.c.l.b16 %v2838
      %v3159 = vunpack.c.l.b16 %v2839
      %v3160 = vunpack.c.l.b16 %v2840
      %v3161 = vunpack.c.l.b16 %v2841
      %v3162 = vunpack.c.l.b16 %v2842
      %v3163 = vunpack.c.l.b16 %v2843
      %v3164 = vunpack.c.l.b16 %v2844
      %v3165 = vunpack.c.l.b16 %v2845
      %v3166 = vunpack.c.l.b16 %v2846
      %v3167 = vunpack.c.l.b16 %v2847
      %v3168 = vunpack.c.l.b16 %v2848
      %v3169 = vunpack.c.l.b16 %v2849
      %v3170 = vunpack.c.l.b16 %v2850
      %v3171 = vunpack.c.l.b16 %v2851
      %v3172 = vunpack.c.l.b16 %v2852
      %v3173 = vunpack.c.l.b16 %v2853
      %v3174 = vunpack.c.l.b16 %v2854
      %v3175 = vunpack.c.l.b16 %v2855
      %v3176 = vunpack.c.l.b16 %v2856
      %v3177 = vunpack.c.l.b16 %v2857
      %v3178 = vunpack.c.l.b16 %v2858
      %v3179 = vunpack.c.l.b16 %v2859
      %v3180 = vunpack.c.l.b16 %v2860
      %v3181 = vunpack.c.l.b16 %v2861
      %v3182 = vunpack.c.l.b16 %v2862
      %v3183 = vunpack.c.l.b16 %v2863
      %v3184 = vunpack.c.l.b16 %v2864
      %v3185 = vunpack.c.l.b16 %v2865
      %v3186 = vunpack.c.l.b16 %v2866
      %v3187 = vunpack.c.l.b16 %v2867
      %v3188 = vunpack.c.l.b16 %v2868
      %v3189 = vunpack.c.l.b16 %v2869
      %v3190 = vunpack.c.l.b16 %v2870
      %v3191 = vunpack.c.l.b16 %v2871
      %v3192 = vunpack.c.l.b16 %v2872
      %v3193 = vunpack.c.l.b16 %v2873
      %v3194 = vunpack.c.l.b16 %v2874
      %v3195 = vunpack.c.l.b16 %v2875
      %v3196 = vunpack.c.l.b16 %v2876
      %v3197 = vunpack.c.l.b16 %v2877
      %v3198 = vunpack.c.l.b16 %v2878
      %v3199 = vunpack.c.l.b16 %v2879
      %v3200 = vunpack.c.l.b16 %v2880
      %v3201 = vunpack.c.l.b16 %v2881
      %v3202 = vunpack.c.l.b16 %v2882
      %v3203 = vunpack.c.l.b16 %v2883
      %v3204 = vunpack.c.l.b16 %v2884
      %v3205 = vunpack.c.l.b16 %v2885
      %v3206 = vunpack.c.l.b16 %v2886
      %v3207 = vunpack.c.l.b16 %v2887
      %v3208 = vunpack.c.l.b16 %v2888
      %v3209 = vunpack.c.l.b16 %v2889
      %v3210 = vunpack.c.l.b16 %v2890
      %v3211 = vunpack.c.l.b16 %v2891
      %v3212 = vunpack.c.l.b16 %v2892
      %v3213 = vunpack.c.l.b16 %v2893
      %v3214 = vunpack.c.l.b16 %v2894
      %v3215 = vunpack.c.l.b16 %v2895
      %v3216 = vunpack.c.l.b16 %v2896
      %v3217 = vunpack.c.l.b16 %v2897
      %v3218 = vunpack.c.l.b16 %v2898
      %v3219 = vunpack.c.l.b16 %v2899
      %v3220 = vunpack.c.l.b16 %v2900
      %v3221 = vunpack.c.l.b16 %v2901
      %v3222 = vunpack.c.l.b16 %v2902
      %v3223 = vunpack.c.l.b16 %v2903
      %v3224 = vunpack.c.l.b16 %v2904
      %v3225 = vunpack.c.l.b16 %v2905
      %v3226 = vunpack.c.l.b16 %v2906
      %v3227 = vunpack.c.l.b16 %v2907
      %v3228 = vunpack.c.l.b16 %v2908
      %v3229 = vunpack.c.l.b16 %v2909
      %v3230 = vunpack.c.l.b16 %v2910
      %v3231 = vunpack.c.l.b16 %v2911
      %v3232 = vunpack.c.l.b16 %v2912
      %v3233 = vunpack.c.l.b16 %v2913
      %v3234 = vunpack.c.l.b16 %v2914
      %v3235 = vunpack.c.l.b16 %v2915
      %v3236 = vunpack.c.l.b16 %v2916
      %v3237 = vunpack.c.l.b16 %v2917
      %v3238 = vunpack.c.l.b16 %v2918
      %v3239 = vunpack.c.l.b16 %v2919
      %v3240 = vunpack.c.l.b16 %v2920
      %v3241 = vunpack.c.l.b16 %v2921
      %v3242 = vunpack.c.l.b16 %v2922
      %v3243 = vunpack.c.l.b16 %v2923
      %v3244 = vunpack.c.l.b16 %v2924
      %v3245 = vunpack.c.l.b16 %v2925
      %v3246 = vunpack.c.l.b16 %v2926
      %v3247 = vunpack.c.l.b16 %v2927
      %v3248 = vunpack.c.l.b16 %v2928
      %v3249 = vunpack.c.l.b16 %v2929
      %v3250 = vunpack.c.l.b16 %v2930
      %v3251 = vunpack.c.l.b16 %v2931
      %v3252 = vunpack.c.l.b16 %v2932
      %v3253 = vunpack.c.l.b16 %v2933
      %v3254 = vunpack.c.l.b16 %v2934
      %v3255 = vunpack.c.l.b16 %v2935
      %v3256 = vunpack.c.l.b16 %v2936
      %v3257 = vunpack.c.l.b16 %v2937
      %v3258 = vunpack.c.l.b16 %v2938
      %v3259 = vunpack.c.l.b16 %v2939
      %v3260 = vunpack.c.l.b16 %v2940
      %v3261 = vunpack.c.l.b16 %v2941
      %v3262 = vunpack.c.l.b16 %v2942
      %v3263 = vunpack.c.l.b16 %v2943
      %v3264 = vunpack.c.l.b16 %v2944
      %v3265 = vunpack.c.l.b16 %v2945
      %v3266 = vunpack.c.l.b16 %v2946
      %v3267 = vunpack.c.l.b16 %v2947
      %v3268 = vunpack.c.l.b16 %v2948
      %v3269 = vunpack.c.l.b16 %v2949
      %v3270 = vpack.c.b16 %v3111, %v3110
      %v3271 = vpack.c.b16 %v3113, %v3112
      %v3272 = vpack.c.b16 %v3115, %v3114
      %v3273 = vpack.c.b16 %v3117, %v3116
      %v3274 = vpack.c.b16 %v3119, %v3118
      %v3275 = vpack.c.b16 %v3121, %v3120
      %v3276 = vpack.c.b16 %v3123, %v3122
      %v3277 = vpack.c.b16 %v3125, %v3124
      %v3278 = vpack.c.b16 %v3127, %v3126
      %v3279 = vpack.c.b16 %v3129, %v3128
      %v3280 = vpack.c.b16 %v3131, %v3130
      %v3281 = vpack.c.b16 %v3133, %v3132
      %v3282 = vpack.c.b16 %v3135, %v3134
      %v3283 = vpack.c.b16 %v3137, %v3136
      %v3284 = vpack.c.b16 %v3139, %v3138
      %v3285 = vpack.c.b16 %v3141, %v3140
      %v3286 = vpack.c.b16 %v3143, %v3142
      %v3287 = vpack.c.b16 %v3145, %v3144
      %v3288 = vpack.c.b16 %v3147, %v3146
      %v3289 = vpack.c.b16 %v3149, %v3148
      %v3290 = vpack.c.b16 %v3151, %v3150
      %v3291 = vpack.c.b16 %v3153, %v3152
      %v3292 = vpack.c.b16 %v3155, %v3154
      %v3293 = vpack.c.b16 %v3157, %v3156
      %v3294 = vpack.c.b16 %v3159, %v3158
      %v3295 = vpack.c.b16 %v3161, %v3160
      %v3296 = vpack.c.b16 %v3163, %v3162
      %v3297 = vpack.c.b16 %v3165, %v3164
      %v3298 = vpack.c.b16 %v3167, %v3166
      %v3299 = vpack.c.b16 %v3169, %v3168
      %v3300 = vpack.c.b16 %v3171, %v3170
      %v3301 = vpack.c.b16 %v3173, %v3172
      %v3302 = vpack.c.b16 %v3175, %v3174
      %v3303 = vpack.c.b16 %v3177, %v3176
      %v3304 = vpack.c.b16 %v3179, %v3178
      %v3305 = vpack.c.b16 %v3181, %v3180
      %v3306 = vpack.c.b16 %v3183, %v3182
      %v3307 = vpack.c.b16 %v3185, %v3184
      %v3308 = vpack.c.b16 %v3187, %v3186
      %v3309 = vpack.c.b16 %v3189, %v3188
      %v3310 = vpack.c.b16 %v3191, %v3190
      %v3311 = vpack.c.b16 %v3193, %v3192
      %v3312 = vpack.c.b16 %v3195, %v3194
      %v3313 = vpack.c.b16 %v3197, %v3196
      %v3314 = vpack.c.b16 %v3199, %v3198
      %v3315 = vpack.c.b16 %v3201, %v3200
      %v3316 = vpack.c.b16 %v3203, %v3202
      %v3317 = vpack.c.b16 %v3205, %v3204
      %v3318 = vpack.c.b16 %v3207, %v3206
      %v3319 = vpack.c.b16 %v3209, %v3208
      %v3320 = vpack.c.b16 %v3211, %v3210
      %v3321 = vpack.c.b16 %v3213, %v3212
      %v3322 = vpack.c.b16 %v3215, %v3214
      %v3323 = vpack.c.b16 %v3217, %v3216
      %v3324 = vpack.c.b16 %v3219, %v3218
      %v3325 = vpack.c.b16 %v3221, %v3220
      %v3326 = vpack.c.b16 %v3223, %v3222
      %v3327 = vpack.c.b16 %v3225, %v3224
      %v3328 = vpack.c.b16 %v3227, %v3226
      %v3329 = vpack.c.b16 %v3229, %v3228
      %v3330 = vpack.c.b16 %v3231, %v3230
      %v3331 = vpack.c.b16 %v3233, %v3232
      %v3332 = vpack.c.b16 %v3235, %v3234
      %v3333 = vpack.c.b16 %v3237, %v3236
      %v3334 = vpack.c.b16 %v3239, %v3238
      %v3335 = vpack.c.b16 %v3241, %v3240
      %v3336 = vpack.c.b16 %v3243, %v3242
      %v3337 = vpack.c.b16 %v3245, %v3244
      %v3338 = vpack.c.b16 %v3247, %v3246
      %v3339 = vpack.c.b16 %v3249, %v3248
      %v3340 = vpack.c.b16 %v3251, %v3250
      %v3341 = vpack.c.b16 %v3253, %v3252
      %v3342 = vpack.c.b16 %v3255, %v3254
      %v3343 = vpack.c.b16 %v3257, %v3256
      %v3344 = vpack.c.b16 %v3259, %v3258
      %v3345 = vpack.c.b16 %v3261, %v3260
      %v3346 = vpack.c.b16 %v3263, %v3262
      %v3347 = vpack.c.b16 %v3265, %v3264
      %v3348 = vpack.c.b16 %v3267, %v3266
      %v3349 = vpack.c.b16 %v3269, %v3268
      %3430 = vmatprep.subr.bf16.mxu0 0
      %3431 = vmatpush1.bf16.msra.mxu0 %v3270
      %3432 = vmatprep.subr.bf16.mxu0 0
      %3433 = vmatpush1.bf16.msra.mxu0 %v3271
      %3434 = vmatprep.subr.bf16.mxu0 0
      %3435 = vmatpush1.bf16.msra.mxu0 %v3272
      %3436 = vmatprep.subr.bf16.mxu0 0
      %3437 = vmatpush1.bf16.msra.mxu0 %v3273
      %3438 = vmatprep.subr.bf16.mxu0 0
      %3439 = vmatpush1.bf16.msra.mxu0 %v3274
      %3440 = vmatprep.subr.bf16.mxu0 0
      %3441 = vmatpush1.bf16.msra.mxu0 %v3275
      %3442 = vmatprep.subr.bf16.mxu0 0
      %3443 = vmatpush1.bf16.msra.mxu0 %v3276
      %3444 = vmatprep.subr.bf16.mxu0 0
      %3445 = vmatpush1.bf16.msra.mxu0 %v3277
      %3446 = vmatprep.subr.bf16.mxu0 0
      %3447 = vmatpush1.bf16.msra.mxu0 %v3278
      %3448 = vmatprep.subr.bf16.mxu0 0
      %3449 = vmatpush1.bf16.msra.mxu0 %v3279
      %3450 = vmatprep.subr.bf16.mxu0 0
      %3451 = vmatpush1.bf16.msra.mxu0 %v3280
      %3452 = vmatprep.subr.bf16.mxu0 0
      %3453 = vmatpush1.bf16.msra.mxu0 %v3281
      %3454 = vmatprep.subr.bf16.mxu0 0
      %3455 = vmatpush1.bf16.msra.mxu0 %v3282
      %3456 = vmatprep.subr.bf16.mxu0 0
      %3457 = vmatpush1.bf16.msra.mxu0 %v3283
      %3458 = vmatprep.subr.bf16.mxu0 0
      %3459 = vmatpush1.bf16.msra.mxu0 %v3284
      %3460 = vmatprep.subr.bf16.mxu0 0
      %3461 = vmatpush1.bf16.msra.mxu0 %v3285
      %3462 = vmatprep.mubr.bf16.mxu0 %v369
      %3463 = vmatmul.mubr.bf16.gmra.mrb[0].mxu0 %v368
      %v3464 = vpop.f32.mrb[0].mxu0
      %v3465 = vadd.f32 %v336, %v3464
      %v3466 = vpop.f32.mrb[0].mxu0
      %v3467 = vpop.f32.mrb[0].mxu0
      %v3468 = vadd.f32 %v336, %v3467
      %v3469 = vpop.f32.mrb[0].mxu0
      %3470 = vdwg.mxu0
      %3471 = vmatprep.subr.bf16.mxu0 0
      %3472 = vmatpush1.bf16.msra.mxu0 %v3286
      %3473 = vmatprep.subr.bf16.mxu0 0
      %3474 = vmatpush1.bf16.msra.mxu0 %v3287
      %3475 = vmatprep.subr.bf16.mxu0 0
      %3476 = vmatpush1.bf16.msra.mxu0 %v3288
      %3477 = vmatprep.subr.bf16.mxu0 0
      %3478 = vmatpush1.bf16.msra.mxu0 %v3289
      %3479 = vmatprep.subr.bf16.mxu0 0
      %3480 = vmatpush1.bf16.msra.mxu0 %v3290
      %3481 = vmatprep.subr.bf16.mxu0 0
      %3482 = vmatpush1.bf16.msra.mxu0 %v3291
      %3483 = vmatprep.subr.bf16.mxu0 0
      %3484 = vmatpush1.bf16.msra.mxu0 %v3292
      %3485 = vmatprep.subr.bf16.mxu0 0
      %3486 = vmatpush1.bf16.msra.mxu0 %v3293
      %3487 = vmatprep.subr.bf16.mxu0 0
      %3488 = vmatpush1.bf16.msra.mxu0 %v3294
      %3489 = vmatprep.subr.bf16.mxu0 0
      %3490 = vmatpush1.bf16.msra.mxu0 %v3295
      %3491 = vmatprep.subr.bf16.mxu0 0
      %3492 = vmatpush1.bf16.msra.mxu0 %v3296
      %3493 = vmatprep.subr.bf16.mxu0 0
      %3494 = vmatpush1.bf16.msra.mxu0 %v3297
      %3495 = vmatprep.subr.bf16.mxu0 0
      %3496 = vmatpush1.bf16.msra.mxu0 %v3298
      %3497 = vmatprep.subr.bf16.mxu0 0
      %3498 = vmatpush1.bf16.msra.mxu0 %v3299
      %3499 = vmatprep.subr.bf16.mxu0 0
      %3500 = vmatpush1.bf16.msra.mxu0 %v3300
      %3501 = vmatprep.subr.bf16.mxu0 0
      %3502 = vmatpush1.bf16.msra.mxu0 %v3301
      %3503 = vmatprep.mubr.bf16.mxu0 %v371
      %3504 = vmatmul.mubr.bf16.gmra.mrb[0].mxu0 %v370
      %v3505 = vpop.f32.mrb[0].mxu0
      %v3506 = vadd.f32 %v3465, %v3505
      %v3507 = vpop.f32.mrb[0].mxu0
      %v3508 = vpop.f32.mrb[0].mxu0
      %v3509 = vadd.f32 %v3468, %v3508
      %v3510 = vpop.f32.mrb[0].mxu0
      %3511 = vdwg.mxu0
      %3512 = vmatprep.subr.bf16.mxu0 0
      %3513 = vmatpush1.bf16.msra.mxu0 %v3302
      %3514 = vmatprep.subr.bf16.mxu0 0
      %3515 = vmatpush1.bf16.msra.mxu0 %v3303
      %3516 = vmatprep.subr.bf16.mxu0 0
      %3517 = vmatpush1.bf16.msra.mxu0 %v3304
      %3518 = vmatprep.subr.bf16.mxu0 0
      %3519 = vmatpush1.bf16.msra.mxu0 %v3305
      %3520 = vmatprep.subr.bf16.mxu0 0
      %3521 = vmatpush1.bf16.msra.mxu0 %v3306
      %3522 = vmatprep.subr.bf16.mxu0 0
      %3523 = vmatpush1.bf16.msra.mxu0 %v3307
      %3524 = vmatprep.subr.bf16.mxu0 0
      %3525 = vmatpush1.bf16.msra.mxu0 %v3308
      %3526 = vmatprep.subr.bf16.mxu0 0
      %3527 = vmatpush1.bf16.msra.mxu0 %v3309
      %3528 = vmatprep.subr.bf16.mxu0 0
      %3529 = vmatpush1.bf16.msra.mxu0 %v3310
      %3530 = vmatprep.subr.bf16.mxu0 0
      %3531 = vmatpush1.bf16.msra.mxu0 %v3311
      %3532 = vmatprep.subr.bf16.mxu0 0
      %3533 = vmatpush1.bf16.msra.mxu0 %v3312
      %3534 = vmatprep.subr.bf16.mxu0 0
      %3535 = vmatpush1.bf16.msra.mxu0 %v3313
      %3536 = vmatprep.subr.bf16.mxu0 0
      %3537 = vmatpush1.bf16.msra.mxu0 %v3314
      %3538 = vmatprep.subr.bf16.mxu0 0
      %3539 = vmatpush1.bf16.msra.mxu0 %v3315
      %3540 = vmatprep.subr.bf16.mxu0 0
      %3541 = vmatpush1.bf16.msra.mxu0 %v3316
      %3542 = vmatprep.subr.bf16.mxu0 0
      %3543 = vmatpush1.bf16.msra.mxu0 %v3317
      %3544 = vmatprep.mubr.bf16.mxu0 %v373
      %3545 = vmatmul.mubr.bf16.gmra.mrb[0].mxu0 %v372
      %v3546 = vpop.f32.mrb[0].mxu0
      %v3547 = vadd.f32 %v3506, %v3546
      %v3548 = vpop.f32.mrb[0].mxu0
      %v3549 = vpop.f32.mrb[0].mxu0
      %v3550 = vadd.f32 %v3509, %v3549
      %v3551 = vpop.f32.mrb[0].mxu0
      %3552 = vdwg.mxu0
      %3553 = vmatprep.subr.bf16.mxu0 0
      %3554 = vmatpush1.bf16.msra.mxu0 %v3318
      %3555 = vmatprep.subr.bf16.mxu0 0
      %3556 = vmatpush1.bf16.msra.mxu0 %v3319
      %3557 = vmatprep.subr.bf16.mxu0 0
      %3558 = vmatpush1.bf16.msra.mxu0 %v3320
      %3559 = vmatprep.subr.bf16.mxu0 0
      %3560 = vmatpush1.bf16.msra.mxu0 %v3321
      %3561 = vmatprep.subr.bf16.mxu0 0
      %3562 = vmatpush1.bf16.msra.mxu0 %v3322
      %3563 = vmatprep.subr.bf16.mxu0 0
      %3564 = vmatpush1.bf16.msra.mxu0 %v3323
      %3565 = vmatprep.subr.bf16.mxu0 0
      %3566 = vmatpush1.bf16.msra.mxu0 %v3324
      %3567 = vmatprep.subr.bf16.mxu0 0
      %3568 = vmatpush1.bf16.msra.mxu0 %v3325
      %3569 = vmatprep.subr.bf16.mxu0 0
      %3570 = vmatpush1.bf16.msra.mxu0 %v3326
      %3571 = vmatprep.subr.bf16.mxu0 0
      %3572 = vmatpush1.bf16.msra.mxu0 %v3327
      %3573 = vmatprep.subr.bf16.mxu0 0
      %3574 = vmatpush1.bf16.msra.mxu0 %v3328
      %3575 = vmatprep.subr.bf16.mxu0 0
      %3576 = vmatpush1.bf16.msra.mxu0 %v3329
      %3577 = vmatprep.subr.bf16.mxu0 0
      %3578 = vmatpush1.bf16.msra.mxu0 %v3330
      %3579 = vmatprep.subr.bf16.mxu0 0
      %3580 = vmatpush1.bf16.msra.mxu0 %v3331
      %3581 = vmatprep.subr.bf16.mxu0 0
      %3582 = vmatpush1.bf16.msra.mxu0 %v3332
      %3583 = vmatprep.subr.bf16.mxu0 0
      %3584 = vmatpush1.bf16.msra.mxu0 %v3333
      %3585 = vmatprep.mubr.bf16.mxu0 %v375
      %3586 = vmatmul.mubr.bf16.gmra.mrb[0].mxu0 %v374
      %v3587 = vpop.f32.mrb[0].mxu0
      %v3588 = vadd.f32 %v3547, %v3587
      %v3589 = vpop.f32.mrb[0].mxu0
      %v3590 = vpop.f32.mrb[0].mxu0
      %v3591 = vadd.f32 %v3550, %v3590
      %v3592 = vpop.f32.mrb[0].mxu0
      %3593 = vdwg.mxu0
      %3594 = vmatprep.subr.bf16.mxu0 0
      %3595 = vmatpush1.bf16.msra.mxu0 %v3334
      %3596 = vmatprep.subr.bf16.mxu0 0
      %3597 = vmatpush1.bf16.msra.mxu0 %v3335
      %3598 = vmatprep.subr.bf16.mxu0 0
      %3599 = vmatpush1.bf16.msra.mxu0 %v3336
      %3600 = vmatprep.subr.bf16.mxu0 0
      %3601 = vmatpush1.bf16.msra.mxu0 %v3337
      %3602 = vmatprep.subr.bf16.mxu0 0
      %3603 = vmatpush1.bf16.msra.mxu0 %v3338
      %3604 = vmatprep.subr.bf16.mxu0 0
      %3605 = vmatpush1.bf16.msra.mxu0 %v3339
      %3606 = vmatprep.subr.bf16.mxu0 0
      %3607 = vmatpush1.bf16.msra.mxu0 %v3340
      %3608 = vmatprep.subr.bf16.mxu0 0
      %3609 = vmatpush1.bf16.msra.mxu0 %v3341
      %3610 = vmatprep.subr.bf16.mxu0 0
      %3611 = vmatpush1.bf16.msra.mxu0 %v3342
      %3612 = vmatprep.subr.bf16.mxu0 0
      %3613 = vmatpush1.bf16.msra.mxu0 %v3343
      %3614 = vmatprep.subr.bf16.mxu0 0
      %3615 = vmatpush1.bf16.msra.mxu0 %v3344
      %3616 = vmatprep.subr.bf16.mxu0 0
      %3617 = vmatpush1.bf16.msra.mxu0 %v3345
      %3618 = vmatprep.subr.bf16.mxu0 0
      %3619 = vmatpush1.bf16.msra.mxu0 %v3346
      %3620 = vmatprep.subr.bf16.mxu0 0
      %3621 = vmatpush1.bf16.msra.mxu0 %v3347
      %3622 = vmatprep.subr.bf16.mxu0 0
      %3623 = vmatpush1.bf16.msra.mxu0 %v3348
      %3624 = vmatprep.subr.bf16.mxu0 0
      %3625 = vmatpush1.bf16.msra.mxu0 %v3349
      %3626 = vmatprep.mubr.bf16.mxu0 %v377
      %3627 = vmatmul.mubr.bf16.gmra.mrb[0].mxu0 %v376
      %v3628 = vpop.f32.mrb[0].mxu0
      %v3629 = vadd.f32 %v3588, %v3628
      %v3630 = vpop.f32.mrb[0].mxu0
      %v3631 = vpop.f32.mrb[0].mxu0
      %v3632 = vadd.f32 %v3591, %v3631
      %v3633 = vpop.f32.mrb[0].mxu0
      %3634 = vdwg.mxu0
      %s3635 = scalar_lea.vmem %s152, 48
      %3636 = vst.msk [vmem:[%s3635] sm:$0xff] %vm1073, %v3629
      %3637 = vst.msk [vmem:[%s3635 + $0x8] sm:$0xff] %vm1073, %v3632
      %s3638 = smul.u32 4, %s14
      %p3639 = scmp.lt.s32.totalorder %s3638, 15
      %s3640 = scalar_select %p3639, %s3638, 15
      %s3641 = smul.addr %s3640, 2
      %s3642 = smul.addr %s3641, 8
      %s3643 = scalar_lea.vmem %s3, %s3642
      // Predicated region
      $region33: #{disco_conv_forward.1} parent=31 // pred_check
        %p3644 = pneg %p95
      $region34: #{disco_conv_forward.1} parent=31 // pred_check_branch
        %3646 = sbr.rel (%p3644) target = $region36
      $region35: #{disco_conv_forward.1} parent=31 // pred_region
        %s3647 = smul.u32 4, %s14
      $region36: #{disco_conv_forward.1} parent=31 // pred_fallthru
        _
    $region32: #{disco_conv_forward.1} parent=5 // pred_fallthru
      _
    %p3648 = scmp.le.s32.totalorder 2, %s9
    // Predicated region
    $region37: #{disco_conv_forward.1} parent=5 // pred_check
      %p3649 = pneg %p3648
    $region38: #{disco_conv_forward.1} parent=5 // pred_check_branch
      %3651 = sbr.rel (%p3649) target = $region40
    $region39: #{disco_conv_forward.1} parent=5 // pred_region
      %s3652 = ssub.s32 %s9, 2
      // Predicated region
      $region41: #{disco_conv_forward.1} parent=39 // pred_check
        %p3653 = pneg %p101
      $region42: #{disco_conv_forward.1} parent=39 // pred_check_branch
        %3655 = sbr.rel (%p3653) target = $region44
      $region43: #{disco_conv_forward.1} parent=39 // pred_region
        %s3656 = smul.u32 4, %s15
        %p3657 = scmp.lt.s32.totalorder %s3656, 15
        %s3658 = scalar_select %p3657, %s3656, 15
        %s3659 = smul.addr %s3658, 2
        %s3660 = smul.addr %s3659, 8
        %s3661 = scalar_lea.vmem %s3, %s3660
      $region44: #{disco_conv_forward.1} parent=39 // pred_fallthru
        _
    $region40: #{disco_conv_forward.1} parent=5 // pred_fallthru
      _
  $region6: #{disco_conv_forward.1} parent=0 // loop_footer
    %s13 = sadd.s32 1, %s9
  $region7: #{disco_conv_forward.1} parent=0 // loop_footer_branch
    %8 = sbr.rel target = $region3
  $region8: #{disco_conv_forward.1} parent=0 // loop_exit
    _

</llo_original>
